<compile_context>
chip_gen: v6e
topology: v6e:2x2x1
jax: 0.10.0
libtpu: 0.0.40
codegen_flags: <defaults>
</compile_context>

<pallas_src>
import functools

import jax
import jax.numpy as jnp
from jax.experimental import pallas as pl
from jax.experimental.pallas import tpu as pltpu

LN_EPS = 1e-5
LANE = 128


def _round_up(x, m):
    return ((x + m - 1) // m) * m


def _cdiv(a, b):
    return -(-a // b)


def _layernorm(x, gamma, beta, h_real, lane_mask):
    """LayerNorm over the real (unpadded) feature width h_real, f32 math.

    x: (M, Hp) with padded lanes guaranteed zero; gamma/beta: (1, Hp) with
    padded lanes zero, so padded output lanes stay zero.
    """
    inv_h = jnp.float32(1.0 / h_real)
    mean = jnp.sum(x, axis=-1, keepdims=True) * inv_h
    d = (x - mean) * lane_mask                      # zero out padded lanes
    var = jnp.sum(d * d, axis=-1, keepdims=True) * inv_h
    return d * jax.lax.rsqrt(var + jnp.float32(LN_EPS)) * gamma + beta


def encoder_block_kernel(
    lens_ref,                                   # SMEM (B_pad,) int32 [prefetch]
    tok_ref,                                    # (M, 1) int32 token ids
    emb_ref,                                    # (Vp, Hp) bf16   resident
    pos_ref,                                    # (M, Hp)  f32    resident (tiled)
    wqkv_ref, bqkv_ref,                         # (Hp, 3Hp) bf16 / (1, 3Hp) f32
    wo_ref, bo_ref,                             # (Hp, Hp)  bf16 / (1, Hp)  f32
    w1_ref, b1_ref,                             # (Hp, F)   bf16 / (1, F)   f32
    w2_ref, b2_ref,                             # (F, Hp)   bf16 / (1, Hp)  f32
    g1_ref, be1_ref, g2_ref, be2_ref,           # (1, Hp) f32
    out_ref,                                    # (M, Hp) f32
    *, h_real, bblk, sp,
):
    M, Hp = out_ref.shape
    Vp = emb_ref.shape[0]

    lane = jax.lax.broadcasted_iota(jnp.int32, (1, Hp), 1)
    lane_mask = (lane < h_real).astype(jnp.float32)

    # ---- embedding gather, in-kernel (one-hot MXU matmul: only int32 ids
    #      cross HBM, the bf16 table stays resident in VMEM). ----
    # TODO(synk): for large vocabularies switch to a scalar-prefetch DMA row
    #             gather instead of the dense one-hot matmul.
    vocab_iota = jax.lax.broadcasted_iota(jnp.int32, (M, Vp), 1)
    one_hot = (vocab_iota == tok_ref[...]).astype(jnp.float32).astype(jnp.bfloat16)
    emb = jnp.dot(one_hot, emb_ref[...], preferred_element_type=jnp.float32)

    x = emb + pos_ref[...]                                        # (M, Hp) f32

    # ---- single-head self-attention (fused QKV, batch folded into M) ----
    qkv = jnp.dot(x.astype(jnp.bfloat16), wqkv_ref[...],
                  preferred_element_type=jnp.float32) + bqkv_ref[...]
    q = qkv[:, 0 * Hp:1 * Hp]
    k = qkv[:, 1 * Hp:2 * Hp]
    v = qkv[:, 2 * Hp:3 * Hp]

    # Per-sequence attention: split the folded rows back into (bblk, sp, Hp);
    # this is a pure leading-dim split (sp is a multiple of 8), no relayout.
    scale = jnp.float32(1.0 / float(h_real) ** 0.5)
    q3 = (q * scale).reshape(bblk, sp, Hp).astype(jnp.bfloat16)
    k3 = k.reshape(bblk, sp, Hp).astype(jnp.bfloat16)
    v3 = v.reshape(bblk, sp, Hp).astype(jnp.bfloat16)

    scores = jnp.einsum('bqd,bkd->bqk', q3, k3,
                        preferred_element_type=jnp.float32)      # (bblk, sp, sp)

    # Key-padding mask built in-kernel from the SMEM lengths (no HBM mask).
    base = pl.program_id(0) * bblk
    batch_iota = jax.lax.broadcasted_iota(jnp.int32, (bblk, 1, 1), 0)
    len_b = jnp.zeros((bblk, 1, 1), jnp.int32)
    for bb in range(bblk):                         # bblk scalar SMEM reads
        len_b = len_b + jnp.where(batch_iota == bb, lens_ref[base + bb], 0)
    key_iota = jax.lax.broadcasted_iota(jnp.int32, (bblk, 1, sp), 2)
    scores = scores + jnp.where(key_iota >= len_b,
                                jnp.float32(-1e30), jnp.float32(0.0))

    # Exact softmax in f32 (no approx reciprocal) for parity with PyTorch.
    # NOTE: a zero-length sequence gives a 0 denominator -> NaN, exactly like
    # the PyTorch reference; padded batch rows are given length sp to avoid it.
    scores = scores - jnp.max(scores, axis=-1, keepdims=True)
    p = jnp.exp(scores)
    p = p / jnp.sum(p, axis=-1, keepdims=True)

    ctx = jnp.einsum('bqk,bkd->bqd', p.astype(jnp.bfloat16), v3,
                     preferred_element_type=jnp.float32).reshape(M, Hp)

    attn = jnp.dot(ctx.astype(jnp.bfloat16), wo_ref[...],
                   preferred_element_type=jnp.float32) + bo_ref[...]

    # residual + LayerNorm (post-norm), f32 statistics over the real H only.
    x1 = _layernorm(x + attn, g1_ref[...], be1_ref[...], h_real, lane_mask)

    # ---- feed-forward: relu(x @ W1 + b1) @ W2 + b2, single un-tiled pass ----
    h = jnp.dot(x1.astype(jnp.bfloat16), w1_ref[...],
                preferred_element_type=jnp.float32) + b1_ref[...]
    h = jnp.maximum(h, 0.0)
    ff = jnp.dot(h.astype(jnp.bfloat16), w2_ref[...],
                 preferred_element_type=jnp.float32) + b2_ref[...]

    out_ref[...] = _layernorm(x1 + ff, g2_ref[...], be2_ref[...],
                              h_real, lane_mask)


# ----------------------------------------------------------------------------
# Parameter construction (PyTorch-layout) and one-time kernel-layout prep.
# ----------------------------------------------------------------------------

def init_params(key, input_size, hidden_size, max_length, dim_feedforward=2048):
    ks = jax.random.split(key, 8)
    h, f = hidden_size, dim_feedforward
    s = 1.0 / jnp.sqrt(jnp.float32(h))
    sf = 1.0 / jnp.sqrt(jnp.float32(f))
    return {
        'embedding': jax.random.normal(ks[0], (input_size, h), jnp.float32),
        # nn.Parameter(torch.zeros(...)) in the module; use small deterministic
        # values so the broadcast-add path is actually exercised.
        'pos': 0.02 * jax.random.normal(ks[1], (max_length, h), jnp.float32),
        'in_proj_w': s * jax.random.normal(ks[2], (3 * h, h), jnp.float32),
        'in_proj_b': 0.01 * jax.random.normal(ks[3], (3 * h,), jnp.float32),
        'out_proj_w': s * jax.random.normal(ks[4], (h, h), jnp.float32),
        'out_proj_b': jnp.zeros((h,), jnp.float32),
        'lin1_w': s * jax.random.normal(ks[5], (f, h), jnp.float32),
        'lin1_b': jnp.zeros((f,), jnp.float32),
        'lin2_w': sf * jax.random.normal(ks[6], (h, f), jnp.float32),
        'lin2_b': jnp.zeros((h,), jnp.float32),
        'ln1_g': jnp.ones((h,), jnp.float32),
        'ln1_b': jnp.zeros((h,), jnp.float32),
        'ln2_g': jnp.ones((h,), jnp.float32),
        'ln2_b': jnp.zeros((h,), jnp.float32),
    }


def _pad_axis(x, axis, target):
    pad = target - x.shape[axis]
    if pad <= 0:
        return x
    widths = [(0, 0)] * x.ndim
    widths[axis] = (0, pad)
    return jnp.pad(x, widths)


def prepare_params(params, hidden_size):
    """One-time: transpose, fuse QKV, zero-pad H/V to 128 lanes, and cast the
    matmul weights (embedding, wqkv, wo, w1, w2) to bf16.  Biases, LayerNorm
    params and the positional table stay f32 so elementwise math is f32."""
    h = hidden_size
    hp = _round_up(h, LANE)
    f = params['lin1_w'].shape[0]
    vp = _round_up(params['embedding'].shape[0], LANE)
    bf16 = jnp.bfloat16

    def pad_hh(w):          # (h, h) -> (hp, hp)
        return _pad_axis(_pad_axis(w, 0, hp), 1, hp)

    def row(v):             # (h,) -> (1, hp)
        return _pad_axis(v.reshape(1, -1), 1, hp)

    wq = pad_hh(params['in_proj_w'][0 * h:1 * h].T)
    wk = pad_hh(params['in_proj_w'][1 * h:2 * h].T)
    wv = pad_hh(params['in_proj_w'][2 * h:3 * h].T)
    bq = row(params['in_proj_b'][0 * h:1 * h])
    bk = row(params['in_proj_b'][1 * h:2 * h])
    bv = row(params['in_proj_b'][2 * h:3 * h])

    return {
        'embedding': _pad_axis(_pad_axis(params['embedding'], 0, vp),
                               1, hp).astype(bf16),               # (Vp, Hp)
        'pos': _pad_axis(params['pos'], 1, hp).astype(jnp.float32),
        'wqkv': jnp.concatenate([wq, wk, wv], axis=1).astype(bf16),   # (Hp, 3Hp)
        'bqkv': jnp.concatenate([bq, bk, bv], axis=1).astype(jnp.float32),
        'wo': pad_hh(params['out_proj_w'].T).astype(bf16),        # (Hp, Hp)
        'bo': row(params['out_proj_b']).astype(jnp.float32),
        'w1': _pad_axis(params['lin1_w'].T, 0, hp).astype(bf16),  # (Hp, F)
        'b1': params['lin1_b'].reshape(1, f).astype(jnp.float32),
        'w2': _pad_axis(params['lin2_w'].T, 1, hp).astype(bf16),  # (F, Hp)
        'b2': row(params['lin2_b']).astype(jnp.float32),
        'ln1_g': row(params['ln1_g']).astype(jnp.float32),
        'ln1_b': row(params['ln1_b']).astype(jnp.float32),
        'ln2_g': row(params['ln2_g']).astype(jnp.float32),
        'ln2_b': row(params['ln2_b']).astype(jnp.float32),
    }


# ----------------------------------------------------------------------------
# Forward pass
# ----------------------------------------------------------------------------

@functools.partial(jax.jit, static_argnames=("h_real", "batch_block"))
def encoder_forward(params, input_tensor, lengths, *, h_real, batch_block=None):
    """input_tensor: (S, B) int32 token ids; lengths: (B,) int32.
    Returns encoder outputs (S, B, H), matching the PyTorch module."""
    S, B = input_tensor.shape
    Vp, Hp = params['embedding'].shape
    F = params['w1'].shape[1]
    Sp = max(8, _round_up(S, 8))              # sublane-pad the sequence axis

    # Batch folding: aim for M = batch_block*Sp in the 128-512 row range.
    # v7x megacore: prefer an even number of grid steps (2 TensorCores), but
    # only split when that still leaves M >= 128 rows per step.
    if batch_block is None:
        batch_block = max(1, min(B, max(1, 512 // Sp)))
    nblk = _cdiv(B, batch_block)
    if nblk == 1 and B > 1 and _cdiv(B, 2) * Sp >= 128:
        batch_block = _cdiv(B, 2)
        nblk = 2
    B_pad = nblk * batch_block
    M = batch_block * Sp

    # Token ids batch-major, padded, shipped as (nblk, M, 1) int32: only ids
    # cross HBM; the embedding gather happens inside the kernel.
    tok = jnp.pad(input_tensor.T.astype(jnp.int32),
                  ((0, B_pad - B), (0, Sp - S))).reshape(nblk, M, 1)

    # Lengths go to SMEM via scalar prefetch.  Padded batch rows get length Sp
    # (all keys valid) so their (discarded) outputs stay finite.
    lens = jnp.pad(lengths.astype(jnp.int32), (0, B_pad - B),
                   constant_values=Sp)

    # Positional encoding tiled once to the (M, Hp) block layout (resident).
    pos = jnp.tile(jnp.pad(params['pos'][:S], ((0, Sp - S), (0, 0))),
                   (batch_block, 1))

    kernel = functools.partial(encoder_block_kernel, h_real=h_real,
                               bblk=batch_block, sp=Sp)

    # Weights use constant index_maps -> DMA'd once and resident in VMEM for
    # the whole grid.  bf16 weight set ~1.2 MiB; 32 MiB scoped VMEM leaves
    # ample headroom on v5e/v6e (128 MiB) and under v7x's 64 MiB/TC.
    res = lambda i, _: (0, 0)
    grid_spec = pltpu.PrefetchScalarGridSpec(
        num_scalar_prefetch=1,
        grid=(nblk,),
        in_specs=[
            pl.BlockSpec((None, M, 1), lambda i, _: (i, 0, 0)),   # token ids
            pl.BlockSpec((Vp, Hp), res),                          # embedding
            pl.BlockSpec((M, Hp), res),                           # pos (tiled)
            pl.BlockSpec((Hp, 3 * Hp), res),                      # wqkv
            pl.BlockSpec((1, 3 * Hp), res),                       # bqkv
            pl.BlockSpec((Hp, Hp), res),                          # wo
            pl.BlockSpec((1, Hp), res),                           # bo
            pl.BlockSpec((Hp, F), res),                           # w1
            pl.BlockSpec((1, F), res),                            # b1
            pl.BlockSpec((F, Hp), res),                           # w2
            pl.BlockSpec((1, Hp), res),                           # b2
            pl.BlockSpec((1, Hp), res),                           # ln1_g
            pl.BlockSpec((1, Hp), res),                           # ln1_b
            pl.BlockSpec((1, Hp), res),                           # ln2_g
            pl.BlockSpec((1, Hp), res),                           # ln2_b
        ],
        out_specs=pl.BlockSpec((None, M, Hp), lambda i, _: (i, 0, 0)),
    )

    out_p = pl.pallas_call(
        kernel,
        out_shape=jax.ShapeDtypeStruct((nblk, M, Hp), jnp.float32),
        grid_spec=grid_spec,
        compiler_params=pltpu.CompilerParams(
            dimension_semantics=("parallel",),
            vmem_limit_bytes=32 * 1024 * 1024),
    )(lens, tok, params['embedding'], pos,
      params['wqkv'], params['bqkv'], params['wo'], params['bo'],
      params['w1'], params['b1'], params['w2'], params['b2'],
      params['ln1_g'], params['ln1_b'], params['ln2_g'], params['ln2_b'])

    out = out_p.reshape(B_pad, Sp, Hp)[:B, :S, :h_real]   # drop all padding
    return jnp.transpose(out, (1, 0, 2))                  # back to (S, B, H)


if __name__ == "__main__":
    # Small shapes consistent with the module's forward.
    INPUT_SIZE = 50     # vocab
    HIDDEN = 32
    MAX_LENGTH = 16
    SEQ = 8
    BATCH = 2

    key = jax.random.PRNGKey(0)
    pkey, tkey = jax.random.split(key)

    raw_params = init_params(pkey, INPUT_SIZE, HIDDEN, MAX_LENGTH)
    params = prepare_params(raw_params, hidden_size=HIDDEN)   # hoisted, one-time

    input_tensor = jax.random.randint(tkey, (SEQ, BATCH), 0, INPUT_SIZE,
                                      dtype=jnp.int32)
    lengths = jnp.array([SEQ, 5], dtype=jnp.int32)

    out = encoder_forward(params, input_tensor, lengths, h_real=HIDDEN)
    jax.block_until_ready(out)
    assert out.shape == (SEQ, BATCH, HIDDEN)
    assert bool(jnp.all(jnp.isfinite(out)))
    print("KERNEL_OK")
</pallas_src>

<mosaic_0001>
module attributes {stable_mosaic.version = 11 : i64} {
  func.func @encoder_block_kernel(%arg0: i32, %arg1: memref<2xi32, #tpu.memory_space<smem>>, %arg2: memref<1x16x1xi32, #tpu.memory_space<vmem>>, %arg3: memref<128x128xbf16, #tpu.memory_space<vmem>>, %arg4: memref<16x128xf32, #tpu.memory_space<vmem>>, %arg5: memref<128x384xbf16, #tpu.memory_space<vmem>>, %arg6: memref<1x384xf32, #tpu.memory_space<vmem>>, %arg7: memref<128x128xbf16, #tpu.memory_space<vmem>>, %arg8: memref<1x128xf32, #tpu.memory_space<vmem>>, %arg9: memref<128x2048xbf16, #tpu.memory_space<vmem>>, %arg10: memref<1x2048xf32, #tpu.memory_space<vmem>>, %arg11: memref<2048x128xbf16, #tpu.memory_space<vmem>>, %arg12: memref<1x128xf32, #tpu.memory_space<vmem>>, %arg13: memref<1x128xf32, #tpu.memory_space<vmem>>, %arg14: memref<1x128xf32, #tpu.memory_space<vmem>>, %arg15: memref<1x128xf32, #tpu.memory_space<vmem>>, %arg16: memref<1x128xf32, #tpu.memory_space<vmem>>, %arg17: memref<1x16x128xf32, #tpu.memory_space<vmem>>) attributes {dimension_semantics = [#tpu.dimension_semantics<parallel>], iteration_bounds = array<i64: 1>, scalar_prefetch = 1 : i64, scratch_operands = 0 : i64, tpu.core_type = #tpu.core_type<tc>, window_params = [{transform_indices = @transform_0, window_bounds = array<i64: 1, 16, 1>}, {pipeline_mode = #tpu.pipeline_mode<synchronous>, transform_indices = @transform_1, window_bounds = array<i64: 128, 128>}, {pipeline_mode = #tpu.pipeline_mode<synchronous>, transform_indices = @transform_2, window_bounds = array<i64: 16, 128>}, {pipeline_mode = #tpu.pipeline_mode<synchronous>, transform_indices = @transform_3, window_bounds = array<i64: 128, 384>}, {pipeline_mode = #tpu.pipeline_mode<synchronous>, transform_indices = @transform_4, window_bounds = array<i64: 1, 384>}, {pipeline_mode = #tpu.pipeline_mode<synchronous>, transform_indices = @transform_5, window_bounds = array<i64: 128, 128>}, {pipeline_mode = #tpu.pipeline_mode<synchronous>, transform_indices = @transform_6, window_bounds = array<i64: 1, 128>}, {pipeline_mode = #tpu.pipeline_mode<synchronous>, transform_indices = @transform_7, window_bounds = array<i64: 128, 2048>}, {pipeline_mode = #tpu.pipeline_mode<synchronous>, transform_indices = @transform_8, window_bounds = array<i64: 1, 2048>}, {pipeline_mode = #tpu.pipeline_mode<synchronous>, transform_indices = @transform_9, window_bounds = array<i64: 2048, 128>}, {pipeline_mode = #tpu.pipeline_mode<synchronous>, transform_indices = @transform_10, window_bounds = array<i64: 1, 128>}, {pipeline_mode = #tpu.pipeline_mode<synchronous>, transform_indices = @transform_11, window_bounds = array<i64: 1, 128>}, {pipeline_mode = #tpu.pipeline_mode<synchronous>, transform_indices = @transform_12, window_bounds = array<i64: 1, 128>}, {pipeline_mode = #tpu.pipeline_mode<synchronous>, transform_indices = @transform_13, window_bounds = array<i64: 1, 128>}, {pipeline_mode = #tpu.pipeline_mode<synchronous>, transform_indices = @transform_14, window_bounds = array<i64: 1, 128>}, {transform_indices = @transform_15, window_bounds = array<i64: 1, 16, 128>}]} {
    %0 = tpu.iota {dimensions = array<i32: 1>} : vector<1x128xi32>
    %c32_i32 = arith.constant 32 : i32
    %1 = vector.broadcast %c32_i32 : i32 to vector<1x128xi32>
    %2 = arith.cmpi slt, %0, %1 : vector<1x128xi32>
    %3 = arith.extui %2 : vector<1x128xi1> to vector<1x128xi32>
    %4 = arith.sitofp %3 : vector<1x128xi32> to vector<1x128xf32>
    %5 = tpu.iota {dimensions = array<i32: 1>} : vector<16x128xi32>
    %c0 = arith.constant 0 : index
    %c0_0 = arith.constant 0 : index
    %c0_1 = arith.constant 0 : index
    %6 = vector.load %arg2[%c0, %c0_0, %c0_1] : memref<1x16x1xi32, #tpu.memory_space<vmem>>, vector<1x16x1xi32>
    %7 = vector.shape_cast %6 : vector<1x16x1xi32> to vector<16x1xi32>
    %8 = vector.broadcast %7 : vector<16x1xi32> to vector<16x128xi32>
    %9 = arith.cmpi eq, %5, %8 : vector<16x128xi32>
    %10 = arith.extui %9 : vector<16x128xi1> to vector<16x128xi32>
    %11 = arith.sitofp %10 : vector<16x128xi32> to vector<16x128xf32>
    %12 = arith.truncf %11 : vector<16x128xf32> to vector<16x128xbf16>
    %c0_2 = arith.constant 0 : index
    %c0_3 = arith.constant 0 : index
    %13 = vector.load %arg3[%c0_2, %c0_3] : memref<128x128xbf16, #tpu.memory_space<vmem>>, vector<128x128xbf16>
    %cst = arith.constant dense<0.000000e+00> : vector<16x128xf32>
    %14 = tpu.matmul %12, %13, %cst {dimension_numbers = #tpu.dot_dimension_numbers<[1], [0], [0], [1], [0, 0, 1, 1], [], []>} : vector<16x128xbf16>, vector<128x128xbf16>, vector<16x128xf32> -> vector<16x128xf32>
    %c0_4 = arith.constant 0 : index
    %c0_5 = arith.constant 0 : index
    %15 = vector.load %arg4[%c0_4, %c0_5] : memref<16x128xf32, #tpu.memory_space<vmem>>, vector<16x128xf32>
    %16 = arith.addf %14, %15 : vector<16x128xf32>
    %17 = arith.truncf %16 : vector<16x128xf32> to vector<16x128xbf16>
    %c0_6 = arith.constant 0 : index
    %c0_7 = arith.constant 0 : index
    %18 = vector.load %arg5[%c0_6, %c0_7] : memref<128x384xbf16, #tpu.memory_space<vmem>>, vector<128x384xbf16>
    %cst_8 = arith.constant dense<0.000000e+00> : vector<16x384xf32>
    %19 = tpu.matmul %17, %18, %cst_8 {dimension_numbers = #tpu.dot_dimension_numbers<[1], [0], [0], [1], [0, 0, 1, 1], [], []>} : vector<16x128xbf16>, vector<128x384xbf16>, vector<16x384xf32> -> vector<16x384xf32>
    %c0_9 = arith.constant 0 : index
    %c0_10 = arith.constant 0 : index
    %20 = vector.load %arg6[%c0_9, %c0_10] : memref<1x384xf32, #tpu.memory_space<vmem>>, vector<1x384xf32>
    %21 = vector.broadcast %20 : vector<1x384xf32> to vector<16x384xf32>
    %22 = arith.addf %19, %21 : vector<16x384xf32>
    %23 = vector.extract_strided_slice %22 {offsets = [0, 0], sizes = [16, 128], strides = [1, 1]} : vector<16x384xf32> to vector<16x128xf32>
    %24 = vector.extract_strided_slice %22 {offsets = [0, 128], sizes = [16, 128], strides = [1, 1]} : vector<16x384xf32> to vector<16x128xf32>
    %25 = vector.extract_strided_slice %22 {offsets = [0, 256], sizes = [16, 128], strides = [1, 1]} : vector<16x384xf32> to vector<16x128xf32>
    %cst_11 = arith.constant 0.176776692 : f32
    %26 = vector.broadcast %cst_11 : f32 to vector<16x128xf32>
    %27 = arith.mulf %23, %26 : vector<16x128xf32>
    %28 = vector.shape_cast %27 : vector<16x128xf32> to vector<2x8x128xf32>
    %29 = arith.truncf %28 : vector<2x8x128xf32> to vector<2x8x128xbf16>
    %30 = vector.shape_cast %24 : vector<16x128xf32> to vector<2x8x128xf32>
    %31 = arith.truncf %30 : vector<2x8x128xf32> to vector<2x8x128xbf16>
    %32 = vector.shape_cast %25 : vector<16x128xf32> to vector<2x8x128xf32>
    %33 = arith.truncf %32 : vector<2x8x128xf32> to vector<2x8x128xbf16>
    "tpu.trace_start"() <{level = 10 : i32, message = "bqd,bkd->bqk"}> : () -> ()
    %cst_12 = arith.constant dense<0.000000e+00> : vector<2x8x8xf32>
    %34 = tpu.matmul %29, %31, %cst_12 {dimension_numbers = #tpu.dot_dimension_numbers<[2], [2], [1], [1], [0, 0, 0, 1, 1, 1], [0], [0]>} : vector<2x8x128xbf16>, vector<2x8x128xbf16>, vector<2x8x8xf32> -> vector<2x8x8xf32>
    "tpu.trace_stop"() : () -> ()
    %c2_i32 = arith.constant 2 : i32
    %35 = arith.muli %arg0, %c2_i32 : i32
    %36 = tpu.iota {dimensions = array<i32: 0>} : vector<2x1x1xi32>
    %c0_i32 = arith.constant 0 : i32
    %37 = vector.broadcast %c0_i32 : i32 to vector<2x1x1xi32>
    %c0_i32_13 = arith.constant 0 : i32
    %38 = vector.broadcast %c0_i32_13 : i32 to vector<2x1x1xi32>
    %39 = arith.cmpi eq, %36, %38 : vector<2x1x1xi32>
    %c0_i32_14 = arith.constant 0 : i32
    %40 = arith.addi %35, %c0_i32_14 : i32
    %41 = arith.index_cast %40 : i32 to index
    %42 = memref.load %arg1[%41] : memref<2xi32, #tpu.memory_space<smem>>
    %c0_i32_15 = arith.constant 0 : i32
    %43 = vector.broadcast %42 : i32 to vector<2x1x1xi32>
    %44 = vector.broadcast %c0_i32_15 : i32 to vector<2x1x1xi32>
    %45 = arith.select %39, %43, %44 : vector<2x1x1xi1>, vector<2x1x1xi32>
    %46 = arith.addi %37, %45 : vector<2x1x1xi32>
    %c1_i32 = arith.constant 1 : i32
    %47 = vector.broadcast %c1_i32 : i32 to vector<2x1x1xi32>
    %48 = arith.cmpi eq, %36, %47 : vector<2x1x1xi32>
    %c1_i32_16 = arith.constant 1 : i32
    %49 = arith.addi %35, %c1_i32_16 : i32
    %50 = arith.index_cast %49 : i32 to index
    %51 = memref.load %arg1[%50] : memref<2xi32, #tpu.memory_space<smem>>
    %c0_i32_17 = arith.constant 0 : i32
    %52 = vector.broadcast %51 : i32 to vector<2x1x1xi32>
    %53 = vector.broadcast %c0_i32_17 : i32 to vector<2x1x1xi32>
    %54 = arith.select %48, %52, %53 : vector<2x1x1xi1>, vector<2x1x1xi32>
    %55 = arith.addi %46, %54 : vector<2x1x1xi32>
    %56 = tpu.iota {dimensions = array<i32: 2>} : vector<2x1x8xi32>
    %57 = vector.broadcast %55 : vector<2x1x1xi32> to vector<2x1x8xi32>
    %58 = arith.cmpi sge, %56, %57 : vector<2x1x8xi32>
    %cst_18 = arith.constant -1.000000e+30 : f32
    %cst_19 = arith.constant 0.000000e+00 : f32
    %59 = vector.broadcast %cst_18 : f32 to vector<2x1x8xf32>
    %60 = vector.broadcast %cst_19 : f32 to vector<2x1x8xf32>
    %61 = arith.select %58, %59, %60 : vector<2x1x8xi1>, vector<2x1x8xf32>
    %62 = vector.broadcast %61 : vector<2x1x8xf32> to vector<2x8x8xf32>
    %63 = arith.addf %34, %62 : vector<2x8x8xf32>
    %cst_20 = arith.constant dense<0xFF800000> : vector<2x8xf32>
    %64 = vector.multi_reduction <maximumf>, %63, %cst_20 [2] : vector<2x8x8xf32> to vector<2x8xf32>
    %65 = vector.shape_cast %64 : vector<2x8xf32> to vector<2x8x1xf32>
    %66 = vector.broadcast %65 : vector<2x8x1xf32> to vector<2x8x8xf32>
    %67 = arith.subf %63, %66 : vector<2x8x8xf32>
    %68 = math.exp %67 : vector<2x8x8xf32>
    %cst_21 = arith.constant dense<0.000000e+00> : vector<2x8xf32>
    %69 = vector.multi_reduction <add>, %68, %cst_21 [2] : vector<2x8x8xf32> to vector<2x8xf32>
    %70 = vector.shape_cast %69 : vector<2x8xf32> to vector<2x8x1xf32>
    %71 = vector.broadcast %70 : vector<2x8x1xf32> to vector<2x8x8xf32>
    %72 = arith.divf %68, %71 : vector<2x8x8xf32>
    %73 = arith.truncf %72 : vector<2x8x8xf32> to vector<2x8x8xbf16>
    "tpu.trace_start"() <{level = 10 : i32, message = "bqk,bkd->bqd"}> : () -> ()
    %cst_22 = arith.constant dense<0.000000e+00> : vector<2x8x128xf32>
    %74 = tpu.matmul %73, %33, %cst_22 {dimension_numbers = #tpu.dot_dimension_numbers<[2], [1], [1], [2], [0, 0, 0, 1, 1, 2], [0], [0]>} : vector<2x8x8xbf16>, vector<2x8x128xbf16>, vector<2x8x128xf32> -> vector<2x8x128xf32>
    "tpu.trace_stop"() : () -> ()
    %75 = vector.shape_cast %74 : vector<2x8x128xf32> to vector<16x128xf32>
    %76 = arith.truncf %75 : vector<16x128xf32> to vector<16x128xbf16>
    %c0_23 = arith.constant 0 : index
    %c0_24 = arith.constant 0 : index
    %77 = vector.load %arg7[%c0_23, %c0_24] : memref<128x128xbf16, #tpu.memory_space<vmem>>, vector<128x128xbf16>
    %cst_25 = arith.constant dense<0.000000e+00> : vector<16x128xf32>
    %78 = tpu.matmul %76, %77, %cst_25 {dimension_numbers = #tpu.dot_dimension_numbers<[1], [0], [0], [1], [0, 0, 1, 1], [], []>} : vector<16x128xbf16>, vector<128x128xbf16>, vector<16x128xf32> -> vector<16x128xf32>
    %c0_26 = arith.constant 0 : index
    %c0_27 = arith.constant 0 : index
    %79 = vector.load %arg8[%c0_26, %c0_27] : memref<1x128xf32, #tpu.memory_space<vmem>>, vector<1x128xf32>
    %80 = vector.broadcast %79 : vector<1x128xf32> to vector<16x128xf32>
    %81 = arith.addf %78, %80 : vector<16x128xf32>
    %82 = arith.addf %16, %81 : vector<16x128xf32>
    %c0_28 = arith.constant 0 : index
    %c0_29 = arith.constant 0 : index
    %83 = vector.load %arg13[%c0_28, %c0_29] : memref<1x128xf32, #tpu.memory_space<vmem>>, vector<1x128xf32>
    %c0_30 = arith.constant 0 : index
    %c0_31 = arith.constant 0 : index
    %84 = vector.load %arg14[%c0_30, %c0_31] : memref<1x128xf32, #tpu.memory_space<vmem>>, vector<1x128xf32>
    %cst_32 = arith.constant dense<0.000000e+00> : vector<16xf32>
    %85 = vector.multi_reduction <add>, %82, %cst_32 [1] : vector<16x128xf32> to vector<16xf32>
    %86 = vector.shape_cast %85 : vector<16xf32> to vector<16x1xf32>
    %cst_33 = arith.constant 3.125000e-02 : f32
    %87 = vector.broadcast %cst_33 : f32 to vector<16x1xf32>
    %88 = arith.mulf %86, %87 : vector<16x1xf32>
    %89 = vector.broadcast %88 : vector<16x1xf32> to vector<16x128xf32>
    %90 = arith.subf %82, %89 : vector<16x128xf32>
    %91 = vector.broadcast %4 : vector<1x128xf32> to vector<16x128xf32>
    %92 = arith.mulf %90, %91 : vector<16x128xf32>
    %93 = arith.mulf %92, %92 : vector<16x128xf32>
    %cst_34 = arith.constant dense<0.000000e+00> : vector<16xf32>
    %94 = vector.multi_reduction <add>, %93, %cst_34 [1] : vector<16x128xf32> to vector<16xf32>
    %95 = vector.shape_cast %94 : vector<16xf32> to vector<16x1xf32>
    %cst_35 = arith.constant 3.125000e-02 : f32
    %96 = vector.broadcast %cst_35 : f32 to vector<16x1xf32>
    %97 = arith.mulf %95, %96 : vector<16x1xf32>
    %cst_36 = arith.constant 9.99999974E-6 : f32
    %98 = vector.broadcast %cst_36 : f32 to vector<16x1xf32>
    %99 = arith.addf %97, %98 : vector<16x1xf32>
    %100 = math.rsqrt %99 : vector<16x1xf32>
    %101 = vector.broadcast %100 : vector<16x1xf32> to vector<16x128xf32>
    %102 = arith.mulf %92, %101 : vector<16x128xf32>
    %103 = vector.broadcast %83 : vector<1x128xf32> to vector<16x128xf32>
    %104 = arith.mulf %102, %103 : vector<16x128xf32>
    %105 = vector.broadcast %84 : vector<1x128xf32> to vector<16x128xf32>
    %106 = arith.addf %104, %105 : vector<16x128xf32>
    %107 = arith.truncf %106 : vector<16x128xf32> to vector<16x128xbf16>
    %c0_37 = arith.constant 0 : index
    %c0_38 = arith.constant 0 : index
    %108 = vector.load %arg9[%c0_37, %c0_38] : memref<128x2048xbf16, #tpu.memory_space<vmem>>, vector<128x2048xbf16>
    %cst_39 = arith.constant dense<0.000000e+00> : vector<16x2048xf32>
    %109 = tpu.matmul %107, %108, %cst_39 {dimension_numbers = #tpu.dot_dimension_numbers<[1], [0], [0], [1], [0, 0, 1, 1], [], []>} : vector<16x128xbf16>, vector<128x2048xbf16>, vector<16x2048xf32> -> vector<16x2048xf32>
    %c0_40 = arith.constant 0 : index
    %c0_41 = arith.constant 0 : index
    %110 = vector.load %arg10[%c0_40, %c0_41] : memref<1x2048xf32, #tpu.memory_space<vmem>>, vector<1x2048xf32>
    %111 = vector.broadcast %110 : vector<1x2048xf32> to vector<16x2048xf32>
    %112 = arith.addf %109, %111 : vector<16x2048xf32>
    %cst_42 = arith.constant 0.000000e+00 : f32
    %113 = vector.broadcast %cst_42 : f32 to vector<16x2048xf32>
    %114 = arith.maximumf %112, %113 : vector<16x2048xf32>
    %115 = arith.truncf %114 : vector<16x2048xf32> to vector<16x2048xbf16>
    %c0_43 = arith.constant 0 : index
    %c0_44 = arith.constant 0 : index
    %116 = vector.load %arg11[%c0_43, %c0_44] : memref<2048x128xbf16, #tpu.memory_space<vmem>>, vector<2048x128xbf16>
    %cst_45 = arith.constant dense<0.000000e+00> : vector<16x128xf32>
    %117 = tpu.matmul %115, %116, %cst_45 {dimension_numbers = #tpu.dot_dimension_numbers<[1], [0], [0], [1], [0, 0, 1, 1], [], []>} : vector<16x2048xbf16>, vector<2048x128xbf16>, vector<16x128xf32> -> vector<16x128xf32>
    %c0_46 = arith.constant 0 : index
    %c0_47 = arith.constant 0 : index
    %118 = vector.load %arg12[%c0_46, %c0_47] : memref<1x128xf32, #tpu.memory_space<vmem>>, vector<1x128xf32>
    %119 = vector.broadcast %118 : vector<1x128xf32> to vector<16x128xf32>
    %120 = arith.addf %117, %119 : vector<16x128xf32>
    %121 = arith.addf %106, %120 : vector<16x128xf32>
    %c0_48 = arith.constant 0 : index
    %c0_49 = arith.constant 0 : index
    %122 = vector.load %arg15[%c0_48, %c0_49] : memref<1x128xf32, #tpu.memory_space<vmem>>, vector<1x128xf32>
    %c0_50 = arith.constant 0 : index
    %c0_51 = arith.constant 0 : index
    %123 = vector.load %arg16[%c0_50, %c0_51] : memref<1x128xf32, #tpu.memory_space<vmem>>, vector<1x128xf32>
    %cst_52 = arith.constant dense<0.000000e+00> : vector<16xf32>
    %124 = vector.multi_reduction <add>, %121, %cst_52 [1] : vector<16x128xf32> to vector<16xf32>
    %125 = vector.shape_cast %124 : vector<16xf32> to vector<16x1xf32>
    %cst_53 = arith.constant 3.125000e-02 : f32
    %126 = vector.broadcast %cst_53 : f32 to vector<16x1xf32>
    %127 = arith.mulf %125, %126 : vector<16x1xf32>
    %128 = vector.broadcast %127 : vector<16x1xf32> to vector<16x128xf32>
    %129 = arith.subf %121, %128 : vector<16x128xf32>
    %130 = vector.broadcast %4 : vector<1x128xf32> to vector<16x128xf32>
    %131 = arith.mulf %129, %130 : vector<16x128xf32>
    %132 = arith.mulf %131, %131 : vector<16x128xf32>
    %cst_54 = arith.constant dense<0.000000e+00> : vector<16xf32>
    %133 = vector.multi_reduction <add>, %132, %cst_54 [1] : vector<16x128xf32> to vector<16xf32>
    %134 = vector.shape_cast %133 : vector<16xf32> to vector<16x1xf32>
    %cst_55 = arith.constant 3.125000e-02 : f32
    %135 = vector.broadcast %cst_55 : f32 to vector<16x1xf32>
    %136 = arith.mulf %134, %135 : vector<16x1xf32>
    %cst_56 = arith.constant 9.99999974E-6 : f32
    %137 = vector.broadcast %cst_56 : f32 to vector<16x1xf32>
    %138 = arith.addf %136, %137 : vector<16x1xf32>
    %139 = math.rsqrt %138 : vector<16x1xf32>
    %140 = vector.broadcast %139 : vector<16x1xf32> to vector<16x128xf32>
    %141 = arith.mulf %131, %140 : vector<16x128xf32>
    %142 = vector.broadcast %122 : vector<1x128xf32> to vector<16x128xf32>
    %143 = arith.mulf %141, %142 : vector<16x128xf32>
    %144 = vector.broadcast %123 : vector<1x128xf32> to vector<16x128xf32>
    %145 = arith.addf %143, %144 : vector<16x128xf32>
    %c0_57 = arith.constant 0 : index
    %c0_58 = arith.constant 0 : index
    %c0_59 = arith.constant 0 : index
    %146 = vector.load %arg17[%c0_57, %c0_58, %c0_59] : memref<1x16x128xf32, #tpu.memory_space<vmem>>, vector<1x16x128xf32>
    %147 = vector.shape_cast %146 : vector<1x16x128xf32> to vector<16x128xf32>
    %148 = vector.shape_cast %145 : vector<16x128xf32> to vector<1x16x128xf32>
    tpu.vector_store %arg17[%c0_57, %c0_58, %c0_59], %148 {strides = array<i32>} : memref<1x16x128xf32, #tpu.memory_space<vmem>>, vector<1x16x128xf32>,
    return
  }
  func.func @transform_0(%arg0: i32, %arg1: memref<2xi32, #tpu.memory_space<smem>>) -> (i32, i32, i32) {
    %c0_i32 = arith.constant 0 : i32
    %c0_i32_0 = arith.constant 0 : i32
    %c0_i32_1 = arith.constant 0 : i32
    return %arg0, %c0_i32, %c0_i32_0 : i32, i32, i32
  }
  func.func @transform_1(%arg0: i32, %arg1: memref<2xi32, #tpu.memory_space<smem>>) -> (i32, i32) {
    %c0_i32 = arith.constant 0 : i32
    %c0_i32_0 = arith.constant 0 : i32
    %c0_i32_1 = arith.constant 0 : i32
    return %c0_i32, %c0_i32_0 : i32, i32
  }
  func.func @transform_2(%arg0: i32, %arg1: memref<2xi32, #tpu.memory_space<smem>>) -> (i32, i32) {
    %c0_i32 = arith.constant 0 : i32
    %c0_i32_0 = arith.constant 0 : i32
    %c0_i32_1 = arith.constant 0 : i32
    return %c0_i32, %c0_i32_0 : i32, i32
  }
  func.func @transform_3(%arg0: i32, %arg1: memref<2xi32, #tpu.memory_space<smem>>) -> (i32, i32) {
    %c0_i32 = arith.constant 0 : i32
    %c0_i32_0 = arith.constant 0 : i32
    %c0_i32_1 = arith.constant 0 : i32
    return %c0_i32, %c0_i32_0 : i32, i32
  }
  func.func @transform_4(%arg0: i32, %arg1: memref<2xi32, #tpu.memory_space<smem>>) -> (i32, i32) {
    %c0_i32 = arith.constant 0 : i32
    %c0_i32_0 = arith.constant 0 : i32
    %c0_i32_1 = arith.constant 0 : i32
    return %c0_i32, %c0_i32_0 : i32, i32
  }
  func.func @transform_5(%arg0: i32, %arg1: memref<2xi32, #tpu.memory_space<smem>>) -> (i32, i32) {
    %c0_i32 = arith.constant 0 : i32
    %c0_i32_0 = arith.constant 0 : i32
    %c0_i32_1 = arith.constant 0 : i32
    return %c0_i32, %c0_i32_0 : i32, i32
  }
  func.func @transform_6(%arg0: i32, %arg1: memref<2xi32, #tpu.memory_space<smem>>) -> (i32, i32) {
    %c0_i32 = arith.constant 0 : i32
    %c0_i32_0 = arith.constant 0 : i32
    %c0_i32_1 = arith.constant 0 : i32
    return %c0_i32, %c0_i32_0 : i32, i32
  }
  func.func @transform_7(%arg0: i32, %arg1: memref<2xi32, #tpu.memory_space<smem>>) -> (i32, i32) {
    %c0_i32 = arith.constant 0 : i32
    %c0_i32_0 = arith.constant 0 : i32
    %c0_i32_1 = arith.constant 0 : i32
    return %c0_i32, %c0_i32_0 : i32, i32
  }
  func.func @transform_8(%arg0: i32, %arg1: memref<2xi32, #tpu.memory_space<smem>>) -> (i32, i32) {
    %c0_i32 = arith.constant 0 : i32
    %c0_i32_0 = arith.constant 0 : i32
    %c0_i32_1 = arith.constant 0 : i32
    return %c0_i32, %c0_i32_0 : i32, i32
  }
  func.func @transform_9(%arg0: i32, %arg1: memref<2xi32, #tpu.memory_space<smem>>) -> (i32, i32) {
    %c0_i32 = arith.constant 0 : i32
    %c0_i32_0 = arith.constant 0 : i32
    %c0_i32_1 = arith.constant 0 : i32
    return %c0_i32, %c0_i32_0 : i32, i32
  }
  func.func @transform_10(%arg0: i32, %arg1: memref<2xi32, #tpu.memory_space<smem>>) -> (i32, i32) {
    %c0_i32 = arith.constant 0 : i32
    %c0_i32_0 = arith.constant 0 : i32
    %c0_i32_1 = arith.constant 0 : i32
    return %c0_i32, %c0_i32_0 : i32, i32
  }
  func.func @transform_11(%arg0: i32, %arg1: memref<2xi32, #tpu.memory_space<smem>>) -> (i32, i32) {
    %c0_i32 = arith.constant 0 : i32
    %c0_i32_0 = arith.constant 0 : i32
    %c0_i32_1 = arith.constant 0 : i32
    return %c0_i32, %c0_i32_0 : i32, i32
  }
  func.func @transform_12(%arg0: i32, %arg1: memref<2xi32, #tpu.memory_space<smem>>) -> (i32, i32) {
    %c0_i32 = arith.constant 0 : i32
    %c0_i32_0 = arith.constant 0 : i32
    %c0_i32_1 = arith.constant 0 : i32
    return %c0_i32, %c0_i32_0 : i32, i32
  }
  func.func @transform_13(%arg0: i32, %arg1: memref<2xi32, #tpu.memory_space<smem>>) -> (i32, i32) {
    %c0_i32 = arith.constant 0 : i32
    %c0_i32_0 = arith.constant 0 : i32
    %c0_i32_1 = arith.constant 0 : i32
    return %c0_i32, %c0_i32_0 : i32, i32
  }
  func.func @transform_14(%arg0: i32, %arg1: memref<2xi32, #tpu.memory_space<smem>>) -> (i32, i32) {
    %c0_i32 = arith.constant 0 : i32
    %c0_i32_0 = arith.constant 0 : i32
    %c0_i32_1 = arith.constant 0 : i32
    return %c0_i32, %c0_i32_0 : i32, i32
  }
  func.func @transform_15(%arg0: i32, %arg1: memref<2xi32, #tpu.memory_space<smem>>) -> (i32, i32, i32) {
    %c0_i32 = arith.constant 0 : i32
    %c0_i32_0 = arith.constant 0 : i32
    %c0_i32_1 = arith.constant 0 : i32
    return %arg0, %c0_i32, %c0_i32_0 : i32, i32, i32
  }
}

</mosaic_0001>

<llo_original>
// kernel: encoder_forward.1
$region0: #{encoder_forward.1}
  #allocation0 [shape = 'u32[]', space=smem, size = 0x4, offset = 0x4, fixed_abs, tag = 'smem constant byte address 0x4 - core index']
  #allocation1 [shape = 'u32[144,128]{1,0:T(1,128)}', space=vmem, size = 0x12000, scoped, tag = 'internal scratch']
  #allocation2 [shape = 's32[1]{0}', space=sflag, size = 0x4, scoped, tag = 'scoped memory for encoder_forward.1']
  #allocation3 [shape = 'u8[512]{0}', space=smem, size = 0x200, scoped, tag = 'prefetched SMEM operand 0']
  %s0 = inlined_call_operand.vmem [shape: s32[2], index: 0, kind: input, shape index: {}]
  %s1 = inlined_call_operand.vmem [shape: s32[1,16,1], index: 1, kind: input, shape index: {}]
  %s2 = inlined_call_operand.vmem [shape: bf16[128,128], index: 2, kind: input, shape index: {}]
  %s3 = inlined_call_operand.vmem [shape: f32[16,128], index: 3, kind: input, shape index: {}]
  %s4 = inlined_call_operand.hbm [shape: bf16[128,384], index: 4, kind: input, shape index: {}]
  %s5 = inlined_call_operand.hbm [shape: f32[1,384], index: 5, kind: input, shape index: {}]
  %s6 = inlined_call_operand.hbm [shape: bf16[128,128], index: 6, kind: input, shape index: {}]
  %s7 = inlined_call_operand.hbm [shape: f32[1,128], index: 7, kind: input, shape index: {}]
  %s8 = inlined_call_operand.hbm [shape: bf16[128,2048], index: 8, kind: input, shape index: {}]
  %s9 = inlined_call_operand.hbm [shape: f32[1,2048], index: 9, kind: input, shape index: {}]
  %s10 = inlined_call_operand.hbm [shape: bf16[2048,128], index: 10, kind: input, shape index: {}]
  %s11 = inlined_call_operand.hbm [shape: f32[1,128], index: 11, kind: input, shape index: {}]
  %s12 = inlined_call_operand.hbm [shape: f32[1,128], index: 12, kind: input, shape index: {}]
  %s13 = inlined_call_operand.hbm [shape: f32[1,128], index: 13, kind: input, shape index: {}]
  %s14 = inlined_call_operand.hbm [shape: f32[1,128], index: 14, kind: input, shape index: {}]
  %s15 = inlined_call_operand.hbm [shape: f32[1,128], index: 15, kind: input, shape index: {}]
  %s16 = inlined_call_operand.vmem [shape: f32[1,16,128], index: 16, kind: output, shape index: {}]
  %s17 = sld [smem:[#allocation0]]
  $region118: #{encoder_forward.1} parent=0
    _
  %s19 = ssub.s32 1, %s17
  %s20 = scalar_select 0, %s19, %s17
  %s21 = sshll.u32 %s0, 4
  %s22 = int_to_ptr.vmem [resolvable:$true] %s21
  %24 = dma.vmem_to_smem %s22, 16, [#allocation3], [#allocation2]
  %25 = dma.done [#allocation2], 16
  %26 = sfence
  $region1: #{encoder_forward.1} parent=0
    #allocation4 [shape = 'u8[98304]{0}', space=vmem, size = 0x18000, scoped, tag = 'input window, operand 4, single buffered']
    #allocation5 [shape = 's32[1]{0}', space=sflag, size = 0x4, scoped, tag = 'scoped memory for encoder_forward.1']
    #allocation6 [shape = 'u8[1536]{0}', space=vmem, size = 0x800, scoped, tag = 'input window, operand 5, single buffered']
    #allocation7 [shape = 's32[1]{0}', space=sflag, size = 0x4, scoped, tag = 'scoped memory for encoder_forward.1']
    #allocation8 [shape = 'u8[32768]{0}', space=vmem, size = 0x8000, scoped, tag = 'input window, operand 6, single buffered']
    #allocation9 [shape = 'u8[512]{0}', space=vmem, size = 0x400, scoped, tag = 'input window, operand 7, single buffered']
    #allocation10 [shape = 's32[1]{0}', space=sflag, size = 0x4, scoped, tag = 'scoped memory for encoder_forward.1']
    #allocation11 [shape = 'u8[524288]{0}', space=vmem, size = 0x80000, scoped, tag = 'input window, operand 8, single buffered']
    #allocation12 [shape = 'u8[8192]{0}', space=vmem, size = 0x2000, scoped, tag = 'input window, operand 9, single buffered']
    #allocation13 [shape = 's32[1]{0}', space=sflag, size = 0x4, scoped, tag = 'scoped memory for encoder_forward.1']
    #allocation14 [shape = 'u8[524288]{0}', space=vmem, size = 0x80000, scoped, tag = 'input window, operand 10, single buffered']
    #allocation15 [shape = 'u8[512]{0}', space=vmem, size = 0x400, scoped, tag = 'input window, operand 11, single buffered']
    #allocation16 [shape = 's32[1]{0}', space=sflag, size = 0x4, scoped, tag = 'scoped memory for encoder_forward.1']
    #allocation17 [shape = 'u8[512]{0}', space=vmem, size = 0x400, scoped, tag = 'input window, operand 12, single buffered']
    #allocation18 [shape = 'u8[512]{0}', space=vmem, size = 0x400, scoped, tag = 'input window, operand 13, single buffered']
    #allocation19 [shape = 's32[1]{0}', space=sflag, size = 0x4, scoped, tag = 'scoped memory for encoder_forward.1']
    #allocation20 [shape = 'u8[512]{0}', space=vmem, size = 0x400, scoped, tag = 'input window, operand 14, single buffered']
    #allocation21 [shape = 'u8[512]{0}', space=vmem, size = 0x400, scoped, tag = 'input window, operand 15, single buffered']
    #allocation22 [shape = 's32[1]{0}', space=sflag, size = 0x4, scoped, tag = 'scoped memory for encoder_forward.1']
    %27 = vsyncpa [#allocation5], 0
    %28 = vsyncpa [#allocation7], 0
    %29 = vsyncpa [#allocation10], 0
    %30 = vsyncpa [#allocation13], 0
    %31 = vsyncpa [#allocation16], 0
    %32 = vsyncpa [#allocation19], 0
    %33 = vsyncpa [#allocation22], 0
    // Predicated region
    $region2: #{encoder_forward.1} parent=1 // pred_check
      _
    $region3: #{encoder_forward.1} parent=1 // pred_check_branch
      %35 = sbr.rel (0) target = $region5
    $region4: #{encoder_forward.1} parent=1 // pred_region
      _
    $region5: #{encoder_forward.1} parent=1 // pred_fallthru
      _
    // Predicated region
    $region6: #{encoder_forward.1} parent=1 // pred_check
      _
    $region7: #{encoder_forward.1} parent=1 // pred_check_branch
      %37 = sbr.rel (0) target = $region9
    $region8: #{encoder_forward.1} parent=1 // pred_region
      _
    $region9: #{encoder_forward.1} parent=1 // pred_fallthru
      _
    // Predicated region
    $region10: #{encoder_forward.1} parent=1 // pred_check
      _
    $region11: #{encoder_forward.1} parent=1 // pred_check_branch
      %39 = sbr.rel (0) target = $region13
    $region12: #{encoder_forward.1} parent=1 // pred_region
      _
    $region13: #{encoder_forward.1} parent=1 // pred_fallthru
      _
    // Predicated region
    $region14: #{encoder_forward.1} parent=1 // pred_check
      _
    $region15: #{encoder_forward.1} parent=1 // pred_check_branch
      %41 = sbr.rel (0) target = $region17
    $region16: #{encoder_forward.1} parent=1 // pred_region
      %s43 = ssub.s32 3072, 3072
      %44 = vsyncadd [#allocation5], %s43
      %s45 = sshll.u32 [#allocation4], 4
      %s46 = int_to_ptr.vmem [resolvable:$true] %s45
      %51 = dma.hbm_to_vmem [thread:$0]  %s4, 3072, %s46, [#allocation5], 192, 192, 12
    $region17: #{encoder_forward.1} parent=1 // pred_fallthru
      _
    // Predicated region
    $region18: #{encoder_forward.1} parent=1 // pred_check
      _
    $region19: #{encoder_forward.1} parent=1 // pred_check_branch
      %53 = sbr.rel (0) target = $region21
    $region20: #{encoder_forward.1} parent=1 // pred_region
      %s55 = ssub.s32 48, 48
      %56 = vsyncadd [#allocation7], %s55
      %s58 = sshll.u32 [#allocation6], 4
      %s59 = int_to_ptr.vmem [resolvable:$true] %s58
      %61 = dma.hbm_to_vmem [thread:$0]  %s5, 48, %s59, [#allocation7]
    $region21: #{encoder_forward.1} parent=1 // pred_fallthru
      _
    // Predicated region
    $region22: #{encoder_forward.1} parent=1 // pred_check
      _
    $region23: #{encoder_forward.1} parent=1 // pred_check_branch
      %63 = sbr.rel (0) target = $region25
    $region24: #{encoder_forward.1} parent=1 // pred_region
      %s65 = ssub.s32 1024, 1024
      %66 = vsyncadd [#allocation7], %s65
      %s67 = sshll.u32 [#allocation8], 4
      %s68 = int_to_ptr.vmem [resolvable:$true] %s67
      %73 = dma.hbm_to_vmem [thread:$0]  %s6, 1024, %s68, [#allocation7], 64, 64, 4
    $region25: #{encoder_forward.1} parent=1 // pred_fallthru
      _
    // Predicated region
    $region26: #{encoder_forward.1} parent=1 // pred_check
      _
    $region27: #{encoder_forward.1} parent=1 // pred_check_branch
      %75 = sbr.rel (0) target = $region29
    $region28: #{encoder_forward.1} parent=1 // pred_region
      %s77 = ssub.s32 16, 16
      %78 = vsyncadd [#allocation10], %s77
      %s80 = sshll.u32 [#allocation9], 4
      %s81 = int_to_ptr.vmem [resolvable:$true] %s80
      %83 = dma.hbm_to_vmem [thread:$0]  %s7, 16, %s81, [#allocation10]
    $region29: #{encoder_forward.1} parent=1 // pred_fallthru
      _
    // Predicated region
    $region30: #{encoder_forward.1} parent=1 // pred_check
      _
    $region31: #{encoder_forward.1} parent=1 // pred_check_branch
      %85 = sbr.rel (0) target = $region33
    $region32: #{encoder_forward.1} parent=1 // pred_region
      %s87 = ssub.s32 16384, 16384
      %88 = vsyncadd [#allocation10], %s87
      %s89 = sshll.u32 [#allocation11], 4
      %s90 = int_to_ptr.vmem [resolvable:$true] %s89
      %95 = dma.hbm_to_vmem [thread:$0]  %s8, 16384, %s90, [#allocation10], 1024, 1024, 64
    $region33: #{encoder_forward.1} parent=1 // pred_fallthru
      _
    // Predicated region
    $region34: #{encoder_forward.1} parent=1 // pred_check
      _
    $region35: #{encoder_forward.1} parent=1 // pred_check_branch
      %97 = sbr.rel (0) target = $region37
    $region36: #{encoder_forward.1} parent=1 // pred_region
      %s99 = ssub.s32 256, 256
      %100 = vsyncadd [#allocation13], %s99
      %s102 = sshll.u32 [#allocation12], 4
      %s103 = int_to_ptr.vmem [resolvable:$true] %s102
      %105 = dma.hbm_to_vmem [thread:$0]  %s9, 256, %s103, [#allocation13]
    $region37: #{encoder_forward.1} parent=1 // pred_fallthru
      _
    // Predicated region
    $region38: #{encoder_forward.1} parent=1 // pred_check
      _
    $region39: #{encoder_forward.1} parent=1 // pred_check_branch
      %107 = sbr.rel (0) target = $region41
    $region40: #{encoder_forward.1} parent=1 // pred_region
      %s109 = ssub.s32 16384, 16384
      %110 = vsyncadd [#allocation13], %s109
      %s111 = sshll.u32 [#allocation14], 4
      %s112 = int_to_ptr.vmem [resolvable:$true] %s111
      %117 = dma.hbm_to_vmem [thread:$0]  %s10, 16384, %s112, [#allocation13], 64, 64, 4
    $region41: #{encoder_forward.1} parent=1 // pred_fallthru
      _
    // Predicated region
    $region42: #{encoder_forward.1} parent=1 // pred_check
      _
    $region43: #{encoder_forward.1} parent=1 // pred_check_branch
      %119 = sbr.rel (0) target = $region45
    $region44: #{encoder_forward.1} parent=1 // pred_region
      %s121 = ssub.s32 16, 16
      %122 = vsyncadd [#allocation16], %s121
      %s124 = sshll.u32 [#allocation15], 4
      %s125 = int_to_ptr.vmem [resolvable:$true] %s124
      %127 = dma.hbm_to_vmem [thread:$0]  %s11, 16, %s125, [#allocation16]
    $region45: #{encoder_forward.1} parent=1 // pred_fallthru
      _
    // Predicated region
    $region46: #{encoder_forward.1} parent=1 // pred_check
      _
    $region47: #{encoder_forward.1} parent=1 // pred_check_branch
      %129 = sbr.rel (0) target = $region49
    $region48: #{encoder_forward.1} parent=1 // pred_region
      %s131 = ssub.s32 16, 16
      %132 = vsyncadd [#allocation16], %s131
      %s134 = sshll.u32 [#allocation17], 4
      %s135 = int_to_ptr.vmem [resolvable:$true] %s134
      %137 = dma.hbm_to_vmem [thread:$0]  %s12, 16, %s135, [#allocation16]
    $region49: #{encoder_forward.1} parent=1 // pred_fallthru
      _
    // Predicated region
    $region50: #{encoder_forward.1} parent=1 // pred_check
      _
    $region51: #{encoder_forward.1} parent=1 // pred_check_branch
      %139 = sbr.rel (0) target = $region53
    $region52: #{encoder_forward.1} parent=1 // pred_region
      %s141 = ssub.s32 16, 16
      %142 = vsyncadd [#allocation19], %s141
      %s144 = sshll.u32 [#allocation18], 4
      %s145 = int_to_ptr.vmem [resolvable:$true] %s144
      %147 = dma.hbm_to_vmem [thread:$0]  %s13, 16, %s145, [#allocation19]
    $region53: #{encoder_forward.1} parent=1 // pred_fallthru
      _
    // Predicated region
    $region54: #{encoder_forward.1} parent=1 // pred_check
      _
    $region55: #{encoder_forward.1} parent=1 // pred_check_branch
      %149 = sbr.rel (0) target = $region57
    $region56: #{encoder_forward.1} parent=1 // pred_region
      %s151 = ssub.s32 16, 16
      %152 = vsyncadd [#allocation19], %s151
      %s154 = sshll.u32 [#allocation20], 4
      %s155 = int_to_ptr.vmem [resolvable:$true] %s154
      %157 = dma.hbm_to_vmem [thread:$0]  %s14, 16, %s155, [#allocation19]
    $region57: #{encoder_forward.1} parent=1 // pred_fallthru
      _
    // Predicated region
    $region58: #{encoder_forward.1} parent=1 // pred_check
      _
    $region59: #{encoder_forward.1} parent=1 // pred_check_branch
      %159 = sbr.rel (0) target = $region61
    $region60: #{encoder_forward.1} parent=1 // pred_region
      %s161 = ssub.s32 16, 16
      %162 = vsyncadd [#allocation22], %s161
      %s164 = sshll.u32 [#allocation21], 4
      %s165 = int_to_ptr.vmem [resolvable:$true] %s164
      %167 = dma.hbm_to_vmem [thread:$0]  %s15, 16, %s165, [#allocation22]
    $region61: #{encoder_forward.1} parent=1 // pred_fallthru
      _
    // Predicated region
    $region62: #{encoder_forward.1} parent=1 // pred_check
      _
    $region63: #{encoder_forward.1} parent=1 // pred_check_branch
      %169 = sbr.rel (0) target = $region65
    $region64: #{encoder_forward.1} parent=1 // pred_region
      %170 = dma.done [#allocation5], 3072
    $region65: #{encoder_forward.1} parent=1 // pred_fallthru
      _
    // Predicated region
    $region66: #{encoder_forward.1} parent=1 // pred_check
      _
    $region67: #{encoder_forward.1} parent=1 // pred_check_branch
      %172 = sbr.rel (0) target = $region69
    $region68: #{encoder_forward.1} parent=1 // pred_region
      %173 = dma.done [#allocation7], 48
    $region69: #{encoder_forward.1} parent=1 // pred_fallthru
      _
    // Predicated region
    $region70: #{encoder_forward.1} parent=1 // pred_check
      _
    $region71: #{encoder_forward.1} parent=1 // pred_check_branch
      %175 = sbr.rel (0) target = $region73
    $region72: #{encoder_forward.1} parent=1 // pred_region
      %176 = dma.done [#allocation7], 1024
    $region73: #{encoder_forward.1} parent=1 // pred_fallthru
      _
    // Predicated region
    $region74: #{encoder_forward.1} parent=1 // pred_check
      _
    $region75: #{encoder_forward.1} parent=1 // pred_check_branch
      %178 = sbr.rel (0) target = $region77
    $region76: #{encoder_forward.1} parent=1 // pred_region
      %179 = dma.done [#allocation10], 16
    $region77: #{encoder_forward.1} parent=1 // pred_fallthru
      _
    // Predicated region
    $region78: #{encoder_forward.1} parent=1 // pred_check
      _
    $region79: #{encoder_forward.1} parent=1 // pred_check_branch
      %181 = sbr.rel (0) target = $region81
    $region80: #{encoder_forward.1} parent=1 // pred_region
      %182 = dma.done [#allocation10], 16384
    $region81: #{encoder_forward.1} parent=1 // pred_fallthru
      _
    // Predicated region
    $region82: #{encoder_forward.1} parent=1 // pred_check
      _
    $region83: #{encoder_forward.1} parent=1 // pred_check_branch
      %184 = sbr.rel (0) target = $region85
    $region84: #{encoder_forward.1} parent=1 // pred_region
      %185 = dma.done [#allocation13], 256
    $region85: #{encoder_forward.1} parent=1 // pred_fallthru
      _
    // Predicated region
    $region86: #{encoder_forward.1} parent=1 // pred_check
      _
    $region87: #{encoder_forward.1} parent=1 // pred_check_branch
      %187 = sbr.rel (0) target = $region89
    $region88: #{encoder_forward.1} parent=1 // pred_region
      %188 = dma.done [#allocation13], 16384
    $region89: #{encoder_forward.1} parent=1 // pred_fallthru
      _
    // Predicated region
    $region90: #{encoder_forward.1} parent=1 // pred_check
      _
    $region91: #{encoder_forward.1} parent=1 // pred_check_branch
      %190 = sbr.rel (0) target = $region93
    $region92: #{encoder_forward.1} parent=1 // pred_region
      %191 = dma.done [#allocation16], 16
    $region93: #{encoder_forward.1} parent=1 // pred_fallthru
      _
    // Predicated region
    $region94: #{encoder_forward.1} parent=1 // pred_check
      _
    $region95: #{encoder_forward.1} parent=1 // pred_check_branch
      %193 = sbr.rel (0) target = $region97
    $region96: #{encoder_forward.1} parent=1 // pred_region
      %194 = dma.done [#allocation16], 16
    $region97: #{encoder_forward.1} parent=1 // pred_fallthru
      _
    // Predicated region
    $region98: #{encoder_forward.1} parent=1 // pred_check
      _
    $region99: #{encoder_forward.1} parent=1 // pred_check_branch
      %196 = sbr.rel (0) target = $region101
    $region100: #{encoder_forward.1} parent=1 // pred_region
      %197 = dma.done [#allocation19], 16
    $region101: #{encoder_forward.1} parent=1 // pred_fallthru
      _
    // Predicated region
    $region102: #{encoder_forward.1} parent=1 // pred_check
      _
    $region103: #{encoder_forward.1} parent=1 // pred_check_branch
      %199 = sbr.rel (0) target = $region105
    $region104: #{encoder_forward.1} parent=1 // pred_region
      %200 = dma.done [#allocation19], 16
    $region105: #{encoder_forward.1} parent=1 // pred_fallthru
      _
    // Predicated region
    $region106: #{encoder_forward.1} parent=1 // pred_check
      _
    $region107: #{encoder_forward.1} parent=1 // pred_check_branch
      %202 = sbr.rel (0) target = $region109
    $region108: #{encoder_forward.1} parent=1 // pred_region
      %203 = dma.done [#allocation22], 16
    $region109: #{encoder_forward.1} parent=1 // pred_fallthru
      _
    %v205 = vlaneseq
    %v206 = vand.u32 %v205, 127
    %vm207 = vcmp.lt.s32.totalorder %v206, 32
    %v208 = vsel %vm207, 1, 0
    %v209 = vcvt.s32.f32 %v208
    %v210 = vld [vmem:[%s1] sm:$0xff]
    %v211 = vld [vmem:[%s1 + $0x8] sm:$0xff]
    %212 = vset.pattern.permute.xlu0 0
    %213 = vperm.xlu0 %212, %v210
    %v214 = vpop.permute.xlu0 %213
    %215 = vset.pattern.permute.xlu0 0
    %216 = vperm.xlu0 %215, %v211
    %v217 = vpop.permute.xlu0 %216
    %vm218 = vcmp.eq.s32.totalorder %v206, %v214
    %vm219 = vcmp.eq.s32.totalorder %v206, %v217
    %v220 = vsel %vm218, 1, 0
    %v221 = vsel %vm219, 1, 0
    %v222 = vcvt.s32.f32 %v220
    %v223 = vcvt.s32.f32 %v221
    %v224 = vpack.c.bf16 %v223, %v222
    %v225 = vld [vmem:[%s2] sm:$0xf]
    %v226 = vld [vmem:[%s2 + $0x4] sm:$0xf]
    %v227 = vld [vmem:[%s2 + $0x8] sm:$0xf]
    %v228 = vld [vmem:[%s2 + $0xc] sm:$0xf]
    %v229 = vld [vmem:[%s2 + $0x10] sm:$0xf]
    %v230 = vld [vmem:[%s2 + $0x14] sm:$0xf]
    %v231 = vld [vmem:[%s2 + $0x18] sm:$0xf]
    %v232 = vld [vmem:[%s2 + $0x1c] sm:$0xf]
    %v233 = vld [vmem:[%s2 + $0x20] sm:$0xf]
    %v234 = vld [vmem:[%s2 + $0x24] sm:$0xf]
    %v235 = vld [vmem:[%s2 + $0x28] sm:$0xf]
    %v236 = vld [vmem:[%s2 + $0x2c] sm:$0xf]
    %v237 = vld [vmem:[%s2 + $0x30] sm:$0xf]
    %v238 = vld [vmem:[%s2 + $0x34] sm:$0xf]
    %v239 = vld [vmem:[%s2 + $0x38] sm:$0xf]
    %v240 = vld [vmem:[%s2 + $0x3c] sm:$0xf]
    %v241 = vld [vmem:[%s3] sm:$0xff]
    %v242 = vld [vmem:[%s3 + $0x8] sm:$0xff]
    %v259 = vunpack.c.l.b16 %v225
    %v260 = vunpack.c.l.b16 %v226
    %v261 = vunpack.c.l.b16 %v227
    %v262 = vunpack.c.l.b16 %v228
    %v263 = vunpack.c.l.b16 %v229
    %v264 = vunpack.c.l.b16 %v230
    %v265 = vunpack.c.l.b16 %v231
    %v266 = vunpack.c.l.b16 %v232
    %v267 = vunpack.c.l.b16 %v233
    %v268 = vunpack.c.l.b16 %v234
    %v269 = vunpack.c.l.b16 %v235
    %v270 = vunpack.c.l.b16 %v236
    %v271 = vunpack.c.l.b16 %v237
    %v272 = vunpack.c.l.b16 %v238
    %v273 = vunpack.c.l.b16 %v239
    %v274 = vunpack.c.l.b16 %v240
    %v275 = vpack.c.b16 %v260, %v259
    %v276 = vpack.c.b16 %v262, %v261
    %v277 = vpack.c.b16 %v264, %v263
    %v278 = vpack.c.b16 %v266, %v265
    %v279 = vpack.c.b16 %v268, %v267
    %v280 = vpack.c.b16 %v270, %v269
    %v281 = vpack.c.b16 %v272, %v271
    %v282 = vpack.c.b16 %v274, %v273
    %291 = vmatprep.subr.bf16.mxu0 0
    %292 = vmatpush1.bf16.msra.mxu0 %v282
    %293 = vmatprep.subr.bf16.mxu0 0
    %294 = vmatpush1.bf16.msra.mxu0 %v281
    %295 = vmatprep.subr.bf16.mxu0 0
    %296 = vmatpush1.bf16.msra.mxu0 %v280
    %297 = vmatprep.subr.bf16.mxu0 0
    %298 = vmatpush1.bf16.msra.mxu0 %v279
    %299 = vmatprep.subr.bf16.mxu0 0
    %300 = vmatpush1.bf16.msra.mxu0 %v278
    %301 = vmatprep.subr.bf16.mxu0 0
    %302 = vmatpush1.bf16.msra.mxu0 %v277
    %303 = vmatprep.subr.bf16.mxu0 0
    %304 = vmatpush1.bf16.msra.mxu0 %v276
    %305 = vmatprep.subr.bf16.mxu0 0
    %306 = vmatpush1.bf16.msra.mxu0 %v275
    %307 = vmatprep.subr.bf16.mxu0 0
    %308 = vmatpush2.bf16.msra.mxu0 0
    %309 = vmatprep.subr.bf16.mxu0 0
    %310 = vmatpush2.bf16.msra.mxu0 0
    %311 = vmatprep.subr.bf16.mxu0 0
    %312 = vmatpush2.bf16.msra.mxu0 0
    %313 = vmatprep.subr.bf16.mxu0 0
    %314 = vmatpush2.bf16.msra.mxu0 0
    %315 = vmatprep.subr.bf16.mxu0 0
    %316 = vmatpush2.bf16.msra.mxu0 0
    %317 = vmatprep.subr.bf16.mxu0 0
    %318 = vmatpush2.bf16.msra.mxu0 0
    %319 = vmatprep.subr.bf16.mxu0 0
    %320 = vmatpush2.bf16.msra.mxu0 0
    %321 = vmatprep.subr.bf16.mxu0 0
    %322 = vmatpush2.bf16.msra.mxu0 0
    %323 = vmatprep.mubr.bf16.mxu0 0
    %324 = vmatmul.mubr.bf16.gmra.mxu0 %v224
    %v325 = vpop.f32.mrf.mxu0
    %v326 = vadd.f32 %v241, %v325
    %v327 = vpop.f32.mrf.mxu0
    %v328 = vpop.f32.mrf.mxu0
    %v329 = vadd.f32 %v242, %v328
    %v330 = vpop.f32.mrf.mxu0
    %331 = vdwg.mxu0
    %v332 = vpack.c.bf16 %v329, %v326
    %v333 = vld [vmem:[#allocation4] sm:$0xff]
    %v334 = vld [vmem:[#allocation4 + $0x8] sm:$0xf]
    %v335 = vld [vmem:[#allocation4 + $0xc] sm:$0xff]
    %v336 = vld [vmem:[#allocation4 + $0x14] sm:$0xf]
    %v337 = vld [vmem:[#allocation4 + $0x18] sm:$0xff]
    %v338 = vld [vmem:[#allocation4 + $0x20] sm:$0xf]
    %v339 = vld [vmem:[#allocation4 + $0x24] sm:$0xff]
    %v340 = vld [vmem:[#allocation4 + $0x2c] sm:$0xf]
    %v341 = vld [vmem:[#allocation4 + $0x30] sm:$0xff]
    %v342 = vld [vmem:[#allocation4 + $0x38] sm:$0xf]
    %v343 = vld [vmem:[#allocation4 + $0x3c] sm:$0xff]
    %v344 = vld [vmem:[#allocation4 + $0x44] sm:$0xf]
    %v345 = vld [vmem:[#allocation4 + $0x48] sm:$0xff]
    %v346 = vld [vmem:[#allocation4 + $0x50] sm:$0xf]
    %v347 = vld [vmem:[#allocation4 + $0x54] sm:$0xff]
    %v348 = vld [vmem:[#allocation4 + $0x5c] sm:$0xf]
    %v349 = vld [vmem:[#allocation4 + $0x60] sm:$0xff]
    %v350 = vld [vmem:[#allocation4 + $0x68] sm:$0xf]
    %v351 = vld [vmem:[#allocation4 + $0x6c] sm:$0xff]
    %v352 = vld [vmem:[#allocation4 + $0x74] sm:$0xf]
    %v353 = vld [vmem:[#allocation4 + $0x78] sm:$0xff]
    %v354 = vld [vmem:[#allocation4 + $0x80] sm:$0xf]
    %v355 = vld [vmem:[#allocation4 + $0x84] sm:$0xff]
    %v356 = vld [vmem:[#allocation4 + $0x8c] sm:$0xf]
    %v357 = vld [vmem:[#allocation4 + $0x90] sm:$0xff]
    %v358 = vld [vmem:[#allocation4 + $0x98] sm:$0xf]
    %v359 = vld [vmem:[#allocation4 + $0x9c] sm:$0xff]
    %v360 = vld [vmem:[#allocation4 + $0xa4] sm:$0xf]
    %v361 = vld [vmem:[#allocation4 + $0xa8] sm:$0xff]
    %v362 = vld [vmem:[#allocation4 + $0xb0] sm:$0xf]
    %v363 = vld [vmem:[#allocation4 + $0xb4] sm:$0xff]
    %v364 = vld [vmem:[#allocation4 + $0xbc] sm:$0xf]
    %v365 = vld [vmem:[#allocation6] sm:$0x7]
    %v367 = vlaneseq
    %v368 = vshrl.u32 %v367, 7
    %v369 = vsub.s32 0, %v368
    %v370 = vrot.slane %v365, %v369
    %v371 = vlaneseq
    %v372 = vshrl.u32 %v371, 7
    %v373 = vsub.s32 1, %v372
    %v374 = vrot.slane %v365, %v373
    %v375 = vlaneseq
    %v376 = vshrl.u32 %v375, 7
    %v377 = vsub.s32 2, %v376
    %v378 = vrot.slane %v365, %v377
    %v414 = vunpack.c.l.b16 %v333
    %v415 = vunpack.c.h.b16 %v333
    %v416 = vunpack.c.l.b16 %v334
    %v417 = vunpack.c.l.b16 %v335
    %v418 = vunpack.c.h.b16 %v335
    %v419 = vunpack.c.l.b16 %v336
    %v420 = vunpack.c.l.b16 %v337
    %v421 = vunpack.c.h.b16 %v337
    %v422 = vunpack.c.l.b16 %v338
    %v423 = vunpack.c.l.b16 %v339
    %v424 = vunpack.c.h.b16 %v339
    %v425 = vunpack.c.l.b16 %v340
    %v426 = vunpack.c.l.b16 %v341
    %v427 = vunpack.c.h.b16 %v341
    %v428 = vunpack.c.l.b16 %v342
    %v429 = vunpack.c.l.b16 %v343
    %v430 = vunpack.c.h.b16 %v343
    %v431 = vunpack.c.l.b16 %v344
    %v432 = vunpack.c.l.b16 %v345
    %v433 = vunpack.c.h.b16 %v345
    %v434 = vunpack.c.l.b16 %v346
    %v435 = vunpack.c.l.b16 %v347
    %v436 = vunpack.c.h.b16 %v347
    %v437 = vunpack.c.l.b16 %v348
    %v438 = vunpack.c.l.b16 %v349
    %v439 = vunpack.c.h.b16 %v349
    %v440 = vunpack.c.l.b16 %v350
    %v441 = vunpack.c.l.b16 %v351
    %v442 = vunpack.c.h.b16 %v351
    %v443 = vunpack.c.l.b16 %v352
    %v444 = vunpack.c.l.b16 %v353
    %v445 = vunpack.c.h.b16 %v353
    %v446 = vunpack.c.l.b16 %v354
    %v447 = vunpack.c.l.b16 %v355
    %v448 = vunpack.c.h.b16 %v355
    %v449 = vunpack.c.l.b16 %v356
    %v450 = vunpack.c.l.b16 %v357
    %v451 = vunpack.c.h.b16 %v357
    %v452 = vunpack.c.l.b16 %v358
    %v453 = vunpack.c.l.b16 %v359
    %v454 = vunpack.c.h.b16 %v359
    %v455 = vunpack.c.l.b16 %v360
    %v456 = vunpack.c.l.b16 %v361
    %v457 = vunpack.c.h.b16 %v361
    %v458 = vunpack.c.l.b16 %v362
    %v459 = vunpack.c.l.b16 %v363
    %v460 = vunpack.c.h.b16 %v363
    %v461 = vunpack.c.l.b16 %v364
    %v462 = vpack.c.b16 %v417, %v414
    %v463 = vpack.c.b16 %v418, %v415
    %v464 = vpack.c.b16 %v419, %v416
    %v465 = vpack.c.b16 %v423, %v420
    %v466 = vpack.c.b16 %v424, %v421
    %v467 = vpack.c.b16 %v425, %v422
    %v468 = vpack.c.b16 %v429, %v426
    %v469 = vpack.c.b16 %v430, %v427
    %v470 = vpack.c.b16 %v431, %v428
    %v471 = vpack.c.b16 %v435, %v432
    %v472 = vpack.c.b16 %v436, %v433
    %v473 = vpack.c.b16 %v437, %v434
    %v474 = vpack.c.b16 %v441, %v438
    %v475 = vpack.c.b16 %v442, %v439
    %v476 = vpack.c.b16 %v443, %v440
    %v477 = vpack.c.b16 %v447, %v444
    %v478 = vpack.c.b16 %v448, %v445
    %v479 = vpack.c.b16 %v449, %v446
    %v480 = vpack.c.b16 %v453, %v450
    %v481 = vpack.c.b16 %v454, %v451
    %v482 = vpack.c.b16 %v455, %v452
    %v483 = vpack.c.b16 %v459, %v456
    %v484 = vpack.c.b16 %v460, %v457
    %v485 = vpack.c.b16 %v461, %v458
    %510 = vmatprep.subr.bf16.mxu0 %v484
    %511 = vmatpush1.bf16.msra.mxu0 %v483
    %512 = vmatprep.subr.bf16.mxu0 %v481
    %513 = vmatpush1.bf16.msra.mxu0 %v480
    %514 = vmatprep.subr.bf16.mxu0 %v478
    %515 = vmatpush1.bf16.msra.mxu0 %v477
    %516 = vmatprep.subr.bf16.mxu0 %v475
    %517 = vmatpush1.bf16.msra.mxu0 %v474
    %518 = vmatprep.subr.bf16.mxu0 %v472
    %519 = vmatpush1.bf16.msra.mxu0 %v471
    %520 = vmatprep.subr.bf16.mxu0 %v469
    %521 = vmatpush1.bf16.msra.mxu0 %v468
    %522 = vmatprep.subr.bf16.mxu0 %v466
    %523 = vmatpush1.bf16.msra.mxu0 %v465
    %524 = vmatprep.subr.bf16.mxu0 %v463
    %525 = vmatpush1.bf16.msra.mxu0 %v462
    %526 = vmatprep.subr.bf16.mxu0 0
    %527 = vmatpush2.bf16.msra.mxu0 0
    %528 = vmatprep.subr.bf16.mxu0 0
    %529 = vmatpush2.bf16.msra.mxu0 0
    %530 = vmatprep.subr.bf16.mxu0 0
    %531 = vmatpush2.bf16.msra.mxu0 0
    %532 = vmatprep.subr.bf16.mxu0 0
    %533 = vmatpush2.bf16.msra.mxu0 0
    %534 = vmatprep.subr.bf16.mxu0 0
    %535 = vmatpush2.bf16.msra.mxu0 0
    %536 = vmatprep.subr.bf16.mxu0 0
    %537 = vmatpush2.bf16.msra.mxu0 0
    %538 = vmatprep.subr.bf16.mxu0 0
    %539 = vmatpush2.bf16.msra.mxu0 0
    %540 = vmatprep.subr.bf16.mxu0 0
    %541 = vmatpush2.bf16.msra.mxu0 0
    %542 = vmatprep.mubr.bf16.mxu0 0
    %543 = vmatmul.mubr.bf16.gmra.mxu0 %v332
    %v544 = vpop.f32.mrf.mxu0
    %v545 = vadd.f32 %v370, %v544
    %v546 = vpop.f32.mrf.mxu0
    %v547 = vadd.f32 %v374, %v546
    %v548 = vpop.f32.mrf.mxu0
    %v549 = vadd.f32 %v370, %v548
    %v550 = vpop.f32.mrf.mxu0
    %v551 = vadd.f32 %v374, %v550
    %552 = vdwg.mxu0
    %553 = vmatprep.subr.bf16.mxu0 0
    %554 = vmatpush1.bf16.msra.mxu0 %v485
    %555 = vmatprep.subr.bf16.mxu0 0
    %556 = vmatpush1.bf16.msra.mxu0 %v482
    %557 = vmatprep.subr.bf16.mxu0 0
    %558 = vmatpush1.bf16.msra.mxu0 %v479
    %559 = vmatprep.subr.bf16.mxu0 0
    %560 = vmatpush1.bf16.msra.mxu0 %v476
    %561 = vmatprep.subr.bf16.mxu0 0
    %562 = vmatpush1.bf16.msra.mxu0 %v473
    %563 = vmatprep.subr.bf16.mxu0 0
    %564 = vmatpush1.bf16.msra.mxu0 %v470
    %565 = vmatprep.subr.bf16.mxu0 0
    %566 = vmatpush1.bf16.msra.mxu0 %v467
    %567 = vmatprep.subr.bf16.mxu0 0
    %568 = vmatpush1.bf16.msra.mxu0 %v464
    %569 = vmatprep.subr.bf16.mxu0 0
    %570 = vmatpush2.bf16.msra.mxu0 0
    %571 = vmatprep.subr.bf16.mxu0 0
    %572 = vmatpush2.bf16.msra.mxu0 0
    %573 = vmatprep.subr.bf16.mxu0 0
    %574 = vmatpush2.bf16.msra.mxu0 0
    %575 = vmatprep.subr.bf16.mxu0 0
    %576 = vmatpush2.bf16.msra.mxu0 0
    %577 = vmatprep.subr.bf16.mxu0 0
    %578 = vmatpush2.bf16.msra.mxu0 0
    %579 = vmatprep.subr.bf16.mxu0 0
    %580 = vmatpush2.bf16.msra.mxu0 0
    %581 = vmatprep.subr.bf16.mxu0 0
    %582 = vmatpush2.bf16.msra.mxu0 0
    %583 = vmatprep.subr.bf16.mxu0 0
    %584 = vmatpush2.bf16.msra.mxu0 0
    %585 = vmatprep.mubr.bf16.mxu0 0
    %586 = vmatmul.mubr.bf16.gmra.mxu0 %v332
    %v587 = vpop.f32.mrf.mxu0
    %v588 = vadd.f32 %v378, %v587
    %v589 = vpop.f32.mrf.mxu0
    %v590 = vpop.f32.mrf.mxu0
    %v591 = vadd.f32 %v378, %v590
    %v592 = vpop.f32.mrf.mxu0
    %593 = vdwg.mxu0
    %v594 = vmul.f32 %v545, 0.17677669
    %v595 = vmul.f32 %v549, 0.17677669
    %v596 = vpack.c.bf16 %v594, %v594
    %v597 = vpack.c.bf16 %v595, %v595
    %v598 = vpack.c.bf16 %v547, %v547
    %v599 = vpack.c.bf16 %v551, %v551
    %v600 = vpack.c.bf16 %v588, %v588
    %v601 = vpack.c.bf16 %v591, %v591
    %s602 = smul.u32 0, 2
    %s603 = sld [smem:[#allocation3 + %s602]]
    %v604 = vstv %s603
    %s605 = sadd.s32 %s602, 1
    %s606 = sld [smem:[#allocation3 + %s605]]
    %v607 = vstv %s606
    %vm608 = vcmp.ge.s32.totalorder %v206, %v604
    %vm609 = vcmp.ge.s32.totalorder %v206, %v607
    %v610 = vsel %vm608, -1e+30, 0.0
    %v611 = vsel %vm609, -1e+30, 0.0
    %612 = vmatprep.subr.bf16.mxu0 0
    %613 = vmatpush1.bf16.xpose.msra.mxu0 0
    %614 = vmatprep.subr.bf16.mxu0 0
    %615 = vmatpush1.bf16.xpose.msra.mxu0 0
    %616 = vmatprep.subr.bf16.mxu0 0
    %617 = vmatpush1.bf16.xpose.msra.mxu0 0
    %618 = vmatprep.subr.bf16.mxu0 0
    %619 = vmatpush1.bf16.xpose.msra.mxu0 0
    %620 = vmatprep.subr.bf16.mxu0 0
    %621 = vmatpush1.bf16.xpose.msra.mxu0 0
    %622 = vmatprep.subr.bf16.mxu0 0
    %623 = vmatpush1.bf16.xpose.msra.mxu0 0
    %624 = vmatprep.subr.bf16.mxu0 0
    %625 = vmatpush1.bf16.xpose.msra.mxu0 0
    %626 = vmatprep.subr.bf16.mxu0 0
    %627 = vmatpush1.bf16.xpose.msra.mxu0 %v598
    %628 = vmatprep.subr.bf16.mxu0 0
    %629 = vmatpush2.bf16.xpose.msra.mxu0 0
    %630 = vmatprep.subr.bf16.mxu0 0
    %631 = vmatpush2.bf16.xpose.msra.mxu0 0
    %632 = vmatprep.subr.bf16.mxu0 0
    %633 = vmatpush2.bf16.xpose.msra.mxu0 0
    %634 = vmatprep.subr.bf16.mxu0 0
    %635 = vmatpush2.bf16.xpose.msra.mxu0 0
    %636 = vmatprep.subr.bf16.mxu0 0
    %637 = vmatpush2.bf16.xpose.msra.mxu0 0
    %638 = vmatprep.subr.bf16.mxu0 0
    %639 = vmatpush2.bf16.xpose.msra.mxu0 0
    %640 = vmatprep.subr.bf16.mxu0 0
    %641 = vmatpush2.bf16.xpose.msra.mxu0 0
    %642 = vmatprep.subr.bf16.mxu0 0
    %643 = vmatpush2.bf16.xpose.msra.mxu0 0
    %644 = vmatprep.mubr.bf16.mxu0 0
    %645 = vmatmul.mubr.bf16.gmra.mxu0 %v596
    %v646 = vpop.f32.mrf.mxu0
    %v647 = vadd.f32 %v610, %v646
    %v648 = vpop.f32.mrf.mxu0
    %v649 = vpop.f32.mrf.mxu0
    %v650 = vpop.f32.mrf.mxu0
    %651 = vdwg.mxu0
    %652 = vmatprep.subr.bf16.mxu0 0
    %653 = vmatpush1.bf16.xpose.msra.mxu0 0
    %654 = vmatprep.subr.bf16.mxu0 0
    %655 = vmatpush1.bf16.xpose.msra.mxu0 0
    %656 = vmatprep.subr.bf16.mxu0 0
    %657 = vmatpush1.bf16.xpose.msra.mxu0 0
    %658 = vmatprep.subr.bf16.mxu0 0
    %659 = vmatpush1.bf16.xpose.msra.mxu0 0
    %660 = vmatprep.subr.bf16.mxu0 0
    %661 = vmatpush1.bf16.xpose.msra.mxu0 0
    %662 = vmatprep.subr.bf16.mxu0 0
    %663 = vmatpush1.bf16.xpose.msra.mxu0 0
    %664 = vmatprep.subr.bf16.mxu0 0
    %665 = vmatpush1.bf16.xpose.msra.mxu0 0
    %666 = vmatprep.subr.bf16.mxu0 0
    %667 = vmatpush1.bf16.xpose.msra.mxu0 %v599
    %668 = vmatprep.subr.bf16.mxu0 0
    %669 = vmatpush2.bf16.xpose.msra.mxu0 0
    %670 = vmatprep.subr.bf16.mxu0 0
    %671 = vmatpush2.bf16.xpose.msra.mxu0 0
    %672 = vmatprep.subr.bf16.mxu0 0
    %673 = vmatpush2.bf16.xpose.msra.mxu0 0
    %674 = vmatprep.subr.bf16.mxu0 0
    %675 = vmatpush2.bf16.xpose.msra.mxu0 0
    %676 = vmatprep.subr.bf16.mxu0 0
    %677 = vmatpush2.bf16.xpose.msra.mxu0 0
    %678 = vmatprep.subr.bf16.mxu0 0
    %679 = vmatpush2.bf16.xpose.msra.mxu0 0
    %680 = vmatprep.subr.bf16.mxu0 0
    %681 = vmatpush2.bf16.xpose.msra.mxu0 0
    %682 = vmatprep.subr.bf16.mxu0 0
    %683 = vmatpush2.bf16.xpose.msra.mxu0 0
    %684 = vmatprep.mubr.bf16.mxu0 0
    %685 = vmatmul.mubr.bf16.gmra.mxu0 %v597
    %v686 = vpop.f32.mrf.mxu0
    %v687 = vadd.f32 %v611, %v686
    %v688 = vpop.f32.mrf.mxu0
    %v689 = vpop.f32.mrf.mxu0
    %v690 = vpop.f32.mrf.mxu0
    %691 = vdwg.mxu0
    %vm692 = vcmask 64512
    %v693 = vsel %vm692, %v647, -inf
    %694 = vmax.xlane.f32.xlu0 %v693
    %v695 = vpop.xlane.xlu0 %694
    %v696 = vsel %vm692, %v687, -inf
    %697 = vmax.xlane.f32.xlu0 %v696
    %v698 = vpop.xlane.xlu0 %697
    %v699 = vsub.f32 %v647, %v695
    %v700 = vsub.f32 %v687, %v698
    %v701 = vmul.f32 %v699, 1.442695
    %v702 = vpow.pop %v701
    %v703 = vmul.f32 %v700, 1.442695
    %v704 = vpow.pop %v703
    %v705 = vsel %vm692, %v702, 0.0
    %706 = vadd.xlane.f32.xlu0 %v705
    %v707 = vpop.xlane.xlu0 %706
    %v708 = vsel %vm692, %v704, 0.0
    %709 = vadd.xlane.f32.xlu0 %v708
    %v710 = vpop.xlane.xlu0 %709
    %v711 = vrcp.pop %v707
    %v712 = vmul.f32 %v702, %v711
    %v713 = vrcp.pop %v710
    %v714 = vmul.f32 %v704, %v713
    %v715 = vpack.c.bf16 %v712, %v712
    %v716 = vpack.c.bf16 %v714, %v714
    %v718 = vsel %vm692, %v715, 0
    %vm720 = vcmask 1043456
    %v722 = vsel %vm720, %v600, 0
    %724 = vmatprep.subr.bf16.mxu0 0
    %725 = vmatpush1.bf16.msra.mxu0 0
    %726 = vmatprep.subr.bf16.mxu0 0
    %727 = vmatpush1.bf16.msra.mxu0 0
    %728 = vmatprep.subr.bf16.mxu0 0
    %729 = vmatpush1.bf16.msra.mxu0 0
    %730 = vmatprep.subr.bf16.mxu0 0
    %731 = vmatpush1.bf16.msra.mxu0 0
    %732 = vmatprep.subr.bf16.mxu0 0
    %733 = vmatpush1.bf16.msra.mxu0 0
    %734 = vmatprep.subr.bf16.mxu0 0
    %735 = vmatpush1.bf16.msra.mxu0 0
    %736 = vmatprep.subr.bf16.mxu0 0
    %737 = vmatpush1.bf16.msra.mxu0 0
    %738 = vmatprep.subr.bf16.mxu0 0
    %739 = vmatpush1.bf16.msra.mxu0 %v722
    %740 = vmatprep.subr.bf16.mxu0 0
    %741 = vmatpush2.bf16.msra.mxu0 0
    %742 = vmatprep.subr.bf16.mxu0 0
    %743 = vmatpush2.bf16.msra.mxu0 0
    %744 = vmatprep.subr.bf16.mxu0 0
    %745 = vmatpush2.bf16.msra.mxu0 0
    %746 = vmatprep.subr.bf16.mxu0 0
    %747 = vmatpush2.bf16.msra.mxu0 0
    %748 = vmatprep.subr.bf16.mxu0 0
    %749 = vmatpush2.bf16.msra.mxu0 0
    %750 = vmatprep.subr.bf16.mxu0 0
    %751 = vmatpush2.bf16.msra.mxu0 0
    %752 = vmatprep.subr.bf16.mxu0 0
    %753 = vmatpush2.bf16.msra.mxu0 0
    %754 = vmatprep.subr.bf16.mxu0 0
    %755 = vmatpush2.bf16.msra.mxu0 0
    %756 = vmatprep.mubr.bf16.mxu0 0
    %757 = vmatmul.mubr.bf16.gmra.mxu0 %v718
    %v758 = vpop.f32.mrf.mxu0
    %v759 = vadd.f32 0.0, %v758
    %v760 = vpop.f32.mrf.mxu0
    %v761 = vpop.f32.mrf.mxu0
    %v762 = vpop.f32.mrf.mxu0
    %763 = vdwg.mxu0
    %v765 = vsel %vm692, %v716, 0
    %v768 = vsel %vm720, %v601, 0
    %770 = vmatprep.subr.bf16.mxu0 0
    %771 = vmatpush1.bf16.msra.mxu0 0
    %772 = vmatprep.subr.bf16.mxu0 0
    %773 = vmatpush1.bf16.msra.mxu0 0
    %774 = vmatprep.subr.bf16.mxu0 0
    %775 = vmatpush1.bf16.msra.mxu0 0
    %776 = vmatprep.subr.bf16.mxu0 0
    %777 = vmatpush1.bf16.msra.mxu0 0
    %778 = vmatprep.subr.bf16.mxu0 0
    %779 = vmatpush1.bf16.msra.mxu0 0
    %780 = vmatprep.subr.bf16.mxu0 0
    %781 = vmatpush1.bf16.msra.mxu0 0
    %782 = vmatprep.subr.bf16.mxu0 0
    %783 = vmatpush1.bf16.msra.mxu0 0
    %784 = vmatprep.subr.bf16.mxu0 0
    %785 = vmatpush1.bf16.msra.mxu0 %v768
    %786 = vmatprep.subr.bf16.mxu0 0
    %787 = vmatpush2.bf16.msra.mxu0 0
    %788 = vmatprep.subr.bf16.mxu0 0
    %789 = vmatpush2.bf16.msra.mxu0 0
    %790 = vmatprep.subr.bf16.mxu0 0
    %791 = vmatpush2.bf16.msra.mxu0 0
    %792 = vmatprep.subr.bf16.mxu0 0
    %793 = vmatpush2.bf16.msra.mxu0 0
    %794 = vmatprep.subr.bf16.mxu0 0
    %795 = vmatpush2.bf16.msra.mxu0 0
    %796 = vmatprep.subr.bf16.mxu0 0
    %797 = vmatpush2.bf16.msra.mxu0 0
    %798 = vmatprep.subr.bf16.mxu0 0
    %799 = vmatpush2.bf16.msra.mxu0 0
    %800 = vmatprep.subr.bf16.mxu0 0
    %801 = vmatpush2.bf16.msra.mxu0 0
    %802 = vmatprep.mubr.bf16.mxu0 0
    %803 = vmatmul.mubr.bf16.gmra.mxu0 %v765
    %v804 = vpop.f32.mrf.mxu0
    %v805 = vadd.f32 0.0, %v804
    %v806 = vpop.f32.mrf.mxu0
    %v807 = vpop.f32.mrf.mxu0
    %v808 = vpop.f32.mrf.mxu0
    %809 = vdwg.mxu0
    %v810 = vpack.c.bf16 %v805, %v759
    %v811 = vld [vmem:[#allocation8] sm:$0xf]
    %v812 = vld [vmem:[#allocation8 + $0x4] sm:$0xf]
    %v813 = vld [vmem:[#allocation8 + $0x8] sm:$0xf]
    %v814 = vld [vmem:[#allocation8 + $0xc] sm:$0xf]
    %v815 = vld [vmem:[#allocation8 + $0x10] sm:$0xf]
    %v816 = vld [vmem:[#allocation8 + $0x14] sm:$0xf]
    %v817 = vld [vmem:[#allocation8 + $0x18] sm:$0xf]
    %v818 = vld [vmem:[#allocation8 + $0x1c] sm:$0xf]
    %v819 = vld [vmem:[#allocation8 + $0x20] sm:$0xf]
    %v820 = vld [vmem:[#allocation8 + $0x24] sm:$0xf]
    %v821 = vld [vmem:[#allocation8 + $0x28] sm:$0xf]
    %v822 = vld [vmem:[#allocation8 + $0x2c] sm:$0xf]
    %v823 = vld [vmem:[#allocation8 + $0x30] sm:$0xf]
    %v824 = vld [vmem:[#allocation8 + $0x34] sm:$0xf]
    %v825 = vld [vmem:[#allocation8 + $0x38] sm:$0xf]
    %v826 = vld [vmem:[#allocation8 + $0x3c] sm:$0xf]
    %v827 = vld [vmem:[#allocation9] sm:$0x1]
    %v829 = vlaneseq
    %v830 = vshrl.u32 %v829, 7
    %v831 = vsub.s32 0, %v830
    %v832 = vrot.slane %v827, %v831
    %v850 = vunpack.c.l.b16 %v811
    %v851 = vunpack.c.l.b16 %v812
    %v852 = vunpack.c.l.b16 %v813
    %v853 = vunpack.c.l.b16 %v814
    %v854 = vunpack.c.l.b16 %v815
    %v855 = vunpack.c.l.b16 %v816
    %v856 = vunpack.c.l.b16 %v817
    %v857 = vunpack.c.l.b16 %v818
    %v858 = vunpack.c.l.b16 %v819
    %v859 = vunpack.c.l.b16 %v820
    %v860 = vunpack.c.l.b16 %v821
    %v861 = vunpack.c.l.b16 %v822
    %v862 = vunpack.c.l.b16 %v823
    %v863 = vunpack.c.l.b16 %v824
    %v864 = vunpack.c.l.b16 %v825
    %v865 = vunpack.c.l.b16 %v826
    %v866 = vpack.c.b16 %v851, %v850
    %v867 = vpack.c.b16 %v853, %v852
    %v868 = vpack.c.b16 %v855, %v854
    %v869 = vpack.c.b16 %v857, %v856
    %v870 = vpack.c.b16 %v859, %v858
    %v871 = vpack.c.b16 %v861, %v860
    %v872 = vpack.c.b16 %v863, %v862
    %v873 = vpack.c.b16 %v865, %v864
    %882 = vmatprep.subr.bf16.mxu0 0
    %883 = vmatpush1.bf16.msra.mxu0 %v873
    %884 = vmatprep.subr.bf16.mxu0 0
    %885 = vmatpush1.bf16.msra.mxu0 %v872
    %886 = vmatprep.subr.bf16.mxu0 0
    %887 = vmatpush1.bf16.msra.mxu0 %v871
    %888 = vmatprep.subr.bf16.mxu0 0
    %889 = vmatpush1.bf16.msra.mxu0 %v870
    %890 = vmatprep.subr.bf16.mxu0 0
    %891 = vmatpush1.bf16.msra.mxu0 %v869
    %892 = vmatprep.subr.bf16.mxu0 0
    %893 = vmatpush1.bf16.msra.mxu0 %v868
    %894 = vmatprep.subr.bf16.mxu0 0
    %895 = vmatpush1.bf16.msra.mxu0 %v867
    %896 = vmatprep.subr.bf16.mxu0 0
    %897 = vmatpush1.bf16.msra.mxu0 %v866
    %898 = vmatprep.subr.bf16.mxu0 0
    %899 = vmatpush2.bf16.msra.mxu0 0
    %900 = vmatprep.subr.bf16.mxu0 0
    %901 = vmatpush2.bf16.msra.mxu0 0
    %902 = vmatprep.subr.bf16.mxu0 0
    %903 = vmatpush2.bf16.msra.mxu0 0
    %904 = vmatprep.subr.bf16.mxu0 0
    %905 = vmatpush2.bf16.msra.mxu0 0
    %906 = vmatprep.subr.bf16.mxu0 0
    %907 = vmatpush2.bf16.msra.mxu0 0
    %908 = vmatprep.subr.bf16.mxu0 0
    %909 = vmatpush2.bf16.msra.mxu0 0
    %910 = vmatprep.subr.bf16.mxu0 0
    %911 = vmatpush2.bf16.msra.mxu0 0
    %912 = vmatprep.subr.bf16.mxu0 0
    %913 = vmatpush2.bf16.msra.mxu0 0
    %914 = vmatprep.mubr.bf16.mxu0 0
    %915 = vmatmul.mubr.bf16.gmra.mxu0 %v810
    %v916 = vpop.f32.mrf.mxu0
    %v917 = vadd.f32 %v832, %v916
    %v918 = vpop.f32.mrf.mxu0
    %v919 = vpop.f32.mrf.mxu0
    %v920 = vadd.f32 %v832, %v919
    %v921 = vpop.f32.mrf.mxu0
    %922 = vdwg.mxu0
    %v923 = vadd.f32 %v326, %v917
    %v924 = vadd.f32 %v329, %v920
    %v925 = vld [vmem:[#allocation17] sm:$0x1]
    %v926 = vld [vmem:[#allocation18] sm:$0x1]
    %927 = vadd.xlane.f32.xlu0 %v923
    %v928 = vpop.xlane.xlu0 %927
    %929 = vadd.xlane.f32.xlu0 %v924
    %v930 = vpop.xlane.xlu0 %929
    %v931 = vmul.f32 %v928, 0.03125
    %v932 = vmul.f32 %v930, 0.03125
    %v933 = vsub.f32 %v923, %v931
    %v934 = vsub.f32 %v924, %v932
    %v935 = vmul.f32 %v933, %v209
    %v936 = vmul.f32 %v934, %v209
    %v937 = vmul.f32 %v935, %v935
    %v938 = vmul.f32 %v936, %v936
    %939 = vadd.xlane.f32.xlu0 %v937
    %v940 = vpop.xlane.xlu0 %939
    %941 = vadd.xlane.f32.xlu0 %v938
    %v942 = vpop.xlane.xlu0 %941
    %v943 = vmul.f32 %v940, 0.03125
    %v944 = vmul.f32 %v942, 0.03125
    %v945 = vadd.f32 %v943, 1e-05
    %v946 = vadd.f32 %v944, 1e-05
    %v947 = vrsqrt.pop %v945
    %v948 = vrsqrt.pop %v946
    %v949 = vmul.f32 %v935, %v947
    %v950 = vmul.f32 %v936, %v948
    %v952 = vlaneseq
    %v953 = vshrl.u32 %v952, 7
    %v954 = vsub.s32 0, %v953
    %v955 = vrot.slane %v925, %v954
    %v957 = vmul.f32 %v949, %v955
    %v958 = vmul.f32 %v950, %v955
    %v960 = vlaneseq
    %v961 = vshrl.u32 %v960, 7
    %v962 = vsub.s32 0, %v961
    %v963 = vrot.slane %v926, %v962
    %v965 = vadd.f32 %v957, %v963
    %v966 = vadd.f32 %v958, %v963
    %v967 = vpack.c.bf16 %v966, %v965
    %v968 = vld [vmem:[#allocation11] sm:$0xff]
    %v969 = vld [vmem:[#allocation11 + $0x8] sm:$0xff]
    %v970 = vld [vmem:[#allocation11 + $0x10] sm:$0xff]
    %v971 = vld [vmem:[#allocation11 + $0x18] sm:$0xff]
    %v972 = vld [vmem:[#allocation11 + $0x20] sm:$0xff]
    %v973 = vld [vmem:[#allocation11 + $0x28] sm:$0xff]
    %v974 = vld [vmem:[#allocation11 + $0x30] sm:$0xff]
    %v975 = vld [vmem:[#allocation11 + $0x38] sm:$0xff]
    %v976 = vld [vmem:[#allocation11 + $0x40] sm:$0xff]
    %v977 = vld [vmem:[#allocation11 + $0x48] sm:$0xff]
    %v978 = vld [vmem:[#allocation11 + $0x50] sm:$0xff]
    %v979 = vld [vmem:[#allocation11 + $0x58] sm:$0xff]
    %v980 = vld [vmem:[#allocation11 + $0x60] sm:$0xff]
    %v981 = vld [vmem:[#allocation11 + $0x68] sm:$0xff]
    %v982 = vld [vmem:[#allocation11 + $0x70] sm:$0xff]
    %v983 = vld [vmem:[#allocation11 + $0x78] sm:$0xff]
    %v984 = vld [vmem:[#allocation11 + $0x80] sm:$0xff]
    %v985 = vld [vmem:[#allocation11 + $0x88] sm:$0xff]
    %v986 = vld [vmem:[#allocation11 + $0x90] sm:$0xff]
    %v987 = vld [vmem:[#allocation11 + $0x98] sm:$0xff]
    %v988 = vld [vmem:[#allocation11 + $0xa0] sm:$0xff]
    %v989 = vld [vmem:[#allocation11 + $0xa8] sm:$0xff]
    %v990 = vld [vmem:[#allocation11 + $0xb0] sm:$0xff]
    %v991 = vld [vmem:[#allocation11 + $0xb8] sm:$0xff]
    %v992 = vld [vmem:[#allocation11 + $0xc0] sm:$0xff]
    %v993 = vld [vmem:[#allocation11 + $0xc8] sm:$0xff]
    %v994 = vld [vmem:[#allocation11 + $0xd0] sm:$0xff]
    %v995 = vld [vmem:[#allocation11 + $0xd8] sm:$0xff]
    %v996 = vld [vmem:[#allocation11 + $0xe0] sm:$0xff]
    %v997 = vld [vmem:[#allocation11 + $0xe8] sm:$0xff]
    %v998 = vld [vmem:[#allocation11 + $0xf0] sm:$0xff]
    %v999 = vld [vmem:[#allocation11 + $0xf8] sm:$0xff]
    %v1000 = vld [vmem:[#allocation11 + $0x100] sm:$0xff]
    %v1001 = vld [vmem:[#allocation11 + $0x108] sm:$0xff]
    %v1002 = vld [vmem:[#allocation11 + $0x110] sm:$0xff]
    %v1003 = vld [vmem:[#allocation11 + $0x118] sm:$0xff]
    %v1004 = vld [vmem:[#allocation11 + $0x120] sm:$0xff]
    %v1005 = vld [vmem:[#allocation11 + $0x128] sm:$0xff]
    %v1006 = vld [vmem:[#allocation11 + $0x130] sm:$0xff]
    %v1007 = vld [vmem:[#allocation11 + $0x138] sm:$0xff]
    %v1008 = vld [vmem:[#allocation11 + $0x140] sm:$0xff]
    %v1009 = vld [vmem:[#allocation11 + $0x148] sm:$0xff]
    %v1010 = vld [vmem:[#allocation11 + $0x150] sm:$0xff]
    %v1011 = vld [vmem:[#allocation11 + $0x158] sm:$0xff]
    %v1012 = vld [vmem:[#allocation11 + $0x160] sm:$0xff]
    %v1013 = vld [vmem:[#allocation11 + $0x168] sm:$0xff]
    %v1014 = vld [vmem:[#allocation11 + $0x170] sm:$0xff]
    %v1015 = vld [vmem:[#allocation11 + $0x178] sm:$0xff]
    %v1016 = vld [vmem:[#allocation11 + $0x180] sm:$0xff]
    %v1017 = vld [vmem:[#allocation11 + $0x188] sm:$0xff]
    %v1018 = vld [vmem:[#allocation11 + $0x190] sm:$0xff]
    %v1019 = vld [vmem:[#allocation11 + $0x198] sm:$0xff]
    %v1020 = vld [vmem:[#allocation11 + $0x1a0] sm:$0xff]
    %v1021 = vld [vmem:[#allocation11 + $0x1a8] sm:$0xff]
    %v1022 = vld [vmem:[#allocation11 + $0x1b0] sm:$0xff]
    %v1023 = vld [vmem:[#allocation11 + $0x1b8] sm:$0xff]
    %v1024 = vld [vmem:[#allocation11 + $0x1c0] sm:$0xff]
    %v1025 = vld [vmem:[#allocation11 + $0x1c8] sm:$0xff]
    %v1026 = vld [vmem:[#allocation11 + $0x1d0] sm:$0xff]
    %v1027 = vld [vmem:[#allocation11 + $0x1d8] sm:$0xff]
    %v1028 = vld [vmem:[#allocation11 + $0x1e0] sm:$0xff]
    %v1029 = vld [vmem:[#allocation11 + $0x1e8] sm:$0xff]
    %v1030 = vld [vmem:[#allocation11 + $0x1f0] sm:$0xff]
    %v1031 = vld [vmem:[#allocation11 + $0x1f8] sm:$0xff]
    %v1032 = vld [vmem:[#allocation11 + $0x200] sm:$0xff]
    %v1033 = vld [vmem:[#allocation11 + $0x208] sm:$0xff]
    %v1034 = vld [vmem:[#allocation11 + $0x210] sm:$0xff]
    %v1035 = vld [vmem:[#allocation11 + $0x218] sm:$0xff]
    %v1036 = vld [vmem:[#allocation11 + $0x220] sm:$0xff]
    %v1037 = vld [vmem:[#allocation11 + $0x228] sm:$0xff]
    %v1038 = vld [vmem:[#allocation11 + $0x230] sm:$0xff]
    %v1039 = vld [vmem:[#allocation11 + $0x238] sm:$0xff]
    %v1040 = vld [vmem:[#allocation11 + $0x240] sm:$0xff]
    %v1041 = vld [vmem:[#allocation11 + $0x248] sm:$0xff]
    %v1042 = vld [vmem:[#allocation11 + $0x250] sm:$0xff]
    %v1043 = vld [vmem:[#allocation11 + $0x258] sm:$0xff]
    %v1044 = vld [vmem:[#allocation11 + $0x260] sm:$0xff]
    %v1045 = vld [vmem:[#allocation11 + $0x268] sm:$0xff]
    %v1046 = vld [vmem:[#allocation11 + $0x270] sm:$0xff]
    %v1047 = vld [vmem:[#allocation11 + $0x278] sm:$0xff]
    %v1048 = vld [vmem:[#allocation11 + $0x280] sm:$0xff]
    %v1049 = vld [vmem:[#allocation11 + $0x288] sm:$0xff]
    %v1050 = vld [vmem:[#allocation11 + $0x290] sm:$0xff]
    %v1051 = vld [vmem:[#allocation11 + $0x298] sm:$0xff]
    %v1052 = vld [vmem:[#allocation11 + $0x2a0] sm:$0xff]
    %v1053 = vld [vmem:[#allocation11 + $0x2a8] sm:$0xff]
    %v1054 = vld [vmem:[#allocation11 + $0x2b0] sm:$0xff]
    %v1055 = vld [vmem:[#allocation11 + $0x2b8] sm:$0xff]
    %v1056 = vld [vmem:[#allocation11 + $0x2c0] sm:$0xff]
    %v1057 = vld [vmem:[#allocation11 + $0x2c8] sm:$0xff]
    %v1058 = vld [vmem:[#allocation11 + $0x2d0] sm:$0xff]
    %v1059 = vld [vmem:[#allocation11 + $0x2d8] sm:$0xff]
    %v1060 = vld [vmem:[#allocation11 + $0x2e0] sm:$0xff]
    %v1061 = vld [vmem:[#allocation11 + $0x2e8] sm:$0xff]
    %v1062 = vld [vmem:[#allocation11 + $0x2f0] sm:$0xff]
    %v1063 = vld [vmem:[#allocation11 + $0x2f8] sm:$0xff]
    %v1064 = vld [vmem:[#allocation11 + $0x300] sm:$0xff]
    %v1065 = vld [vmem:[#allocation11 + $0x308] sm:$0xff]
    %v1066 = vld [vmem:[#allocation11 + $0x310] sm:$0xff]
    %v1067 = vld [vmem:[#allocation11 + $0x318] sm:$0xff]
    %v1068 = vld [vmem:[#allocation11 + $0x320] sm:$0xff]
    %v1069 = vld [vmem:[#allocation11 + $0x328] sm:$0xff]
    %v1070 = vld [vmem:[#allocation11 + $0x330] sm:$0xff]
    %v1071 = vld [vmem:[#allocation11 + $0x338] sm:$0xff]
    %v1072 = vld [vmem:[#allocation11 + $0x340] sm:$0xff]
    %v1073 = vld [vmem:[#allocation11 + $0x348] sm:$0xff]
    %v1074 = vld [vmem:[#allocation11 + $0x350] sm:$0xff]
    %v1075 = vld [vmem:[#allocation11 + $0x358] sm:$0xff]
    %v1076 = vld [vmem:[#allocation11 + $0x360] sm:$0xff]
    %v1077 = vld [vmem:[#allocation11 + $0x368] sm:$0xff]
    %v1078 = vld [vmem:[#allocation11 + $0x370] sm:$0xff]
    %v1079 = vld [vmem:[#allocation11 + $0x378] sm:$0xff]
    %v1080 = vld [vmem:[#allocation11 + $0x380] sm:$0xff]
    %v1081 = vld [vmem:[#allocation11 + $0x388] sm:$0xff]
    %v1082 = vld [vmem:[#allocation11 + $0x390] sm:$0xff]
    %v1083 = vld [vmem:[#allocation11 + $0x398] sm:$0xff]
    %v1084 = vld [vmem:[#allocation11 + $0x3a0] sm:$0xff]
    %v1085 = vld [vmem:[#allocation11 + $0x3a8] sm:$0xff]
    %v1086 = vld [vmem:[#allocation11 + $0x3b0] sm:$0xff]
    %v1087 = vld [vmem:[#allocation11 + $0x3b8] sm:$0xff]
    %v1088 = vld [vmem:[#allocation11 + $0x3c0] sm:$0xff]
    %v1089 = vld [vmem:[#allocation11 + $0x3c8] sm:$0xff]
    %v1090 = vld [vmem:[#allocation11 + $0x3d0] sm:$0xff]
    %v1091 = vld [vmem:[#allocation11 + $0x3d8] sm:$0xff]
    %v1092 = vld [vmem:[#allocation11 + $0x3e0] sm:$0xff]
    %v1093 = vld [vmem:[#allocation11 + $0x3e8] sm:$0xff]
    %v1094 = vld [vmem:[#allocation11 + $0x3f0] sm:$0xff]
    %v1095 = vld [vmem:[#allocation11 + $0x3f8] sm:$0xff]
    %v1096 = vld [vmem:[#allocation12] sm:$0xff]
    %v1097 = vld [vmem:[#allocation12 + $0x8] sm:$0xff]
    %v1100 = vlaneseq
    %v1101 = vshrl.u32 %v1100, 7
    %v1102 = vsub.s32 0, %v1101
    %v1103 = vrot.slane %v1096, %v1102
    %v1104 = vlaneseq
    %v1105 = vshrl.u32 %v1104, 7
    %v1106 = vsub.s32 1, %v1105
    %v1107 = vrot.slane %v1096, %v1106
    %v1108 = vlaneseq
    %v1109 = vshrl.u32 %v1108, 7
    %v1110 = vsub.s32 2, %v1109
    %v1111 = vrot.slane %v1096, %v1110
    %v1112 = vlaneseq
    %v1113 = vshrl.u32 %v1112, 7
    %v1114 = vsub.s32 3, %v1113
    %v1115 = vrot.slane %v1096, %v1114
    %v1116 = vlaneseq
    %v1117 = vshrl.u32 %v1116, 7
    %v1118 = vsub.s32 4, %v1117
    %v1119 = vrot.slane %v1096, %v1118
    %v1120 = vlaneseq
    %v1121 = vshrl.u32 %v1120, 7
    %v1122 = vsub.s32 5, %v1121
    %v1123 = vrot.slane %v1096, %v1122
    %v1124 = vlaneseq
    %v1125 = vshrl.u32 %v1124, 7
    %v1126 = vsub.s32 6, %v1125
    %v1127 = vrot.slane %v1096, %v1126
    %v1128 = vlaneseq
    %v1129 = vshrl.u32 %v1128, 7
    %v1130 = vsub.s32 7, %v1129
    %v1131 = vrot.slane %v1096, %v1130
    %v1132 = vlaneseq
    %v1133 = vshrl.u32 %v1132, 7
    %v1134 = vsub.s32 0, %v1133
    %v1135 = vrot.slane %v1097, %v1134
    %v1136 = vlaneseq
    %v1137 = vshrl.u32 %v1136, 7
    %v1138 = vsub.s32 1, %v1137
    %v1139 = vrot.slane %v1097, %v1138
    %v1140 = vlaneseq
    %v1141 = vshrl.u32 %v1140, 7
    %v1142 = vsub.s32 2, %v1141
    %v1143 = vrot.slane %v1097, %v1142
    %v1144 = vlaneseq
    %v1145 = vshrl.u32 %v1144, 7
    %v1146 = vsub.s32 3, %v1145
    %v1147 = vrot.slane %v1097, %v1146
    %v1148 = vlaneseq
    %v1149 = vshrl.u32 %v1148, 7
    %v1150 = vsub.s32 4, %v1149
    %v1151 = vrot.slane %v1097, %v1150
    %v1152 = vlaneseq
    %v1153 = vshrl.u32 %v1152, 7
    %v1154 = vsub.s32 5, %v1153
    %v1155 = vrot.slane %v1097, %v1154
    %v1156 = vlaneseq
    %v1157 = vshrl.u32 %v1156, 7
    %v1158 = vsub.s32 6, %v1157
    %v1159 = vrot.slane %v1097, %v1158
    %v1160 = vlaneseq
    %v1161 = vshrl.u32 %v1160, 7
    %v1162 = vsub.s32 7, %v1161
    %v1163 = vrot.slane %v1097, %v1162
    %v1308 = vunpack.c.l.b16 %v968
    %v1309 = vunpack.c.h.b16 %v968
    %v1310 = vunpack.c.l.b16 %v969
    %v1311 = vunpack.c.h.b16 %v969
    %v1312 = vunpack.c.l.b16 %v970
    %v1313 = vunpack.c.h.b16 %v970
    %v1314 = vunpack.c.l.b16 %v971
    %v1315 = vunpack.c.h.b16 %v971
    %v1316 = vunpack.c.l.b16 %v972
    %v1317 = vunpack.c.h.b16 %v972
    %v1318 = vunpack.c.l.b16 %v973
    %v1319 = vunpack.c.h.b16 %v973
    %v1320 = vunpack.c.l.b16 %v974
    %v1321 = vunpack.c.h.b16 %v974
    %v1322 = vunpack.c.l.b16 %v975
    %v1323 = vunpack.c.h.b16 %v975
    %v1324 = vunpack.c.l.b16 %v976
    %v1325 = vunpack.c.h.b16 %v976
    %v1326 = vunpack.c.l.b16 %v977
    %v1327 = vunpack.c.h.b16 %v977
    %v1328 = vunpack.c.l.b16 %v978
    %v1329 = vunpack.c.h.b16 %v978
    %v1330 = vunpack.c.l.b16 %v979
    %v1331 = vunpack.c.h.b16 %v979
    %v1332 = vunpack.c.l.b16 %v980
    %v1333 = vunpack.c.h.b16 %v980
    %v1334 = vunpack.c.l.b16 %v981
    %v1335 = vunpack.c.h.b16 %v981
    %v1336 = vunpack.c.l.b16 %v982
    %v1337 = vunpack.c.h.b16 %v982
    %v1338 = vunpack.c.l.b16 %v983
    %v1339 = vunpack.c.h.b16 %v983
    %v1340 = vunpack.c.l.b16 %v984
    %v1341 = vunpack.c.h.b16 %v984
    %v1342 = vunpack.c.l.b16 %v985
    %v1343 = vunpack.c.h.b16 %v985
    %v1344 = vunpack.c.l.b16 %v986
    %v1345 = vunpack.c.h.b16 %v986
    %v1346 = vunpack.c.l.b16 %v987
    %v1347 = vunpack.c.h.b16 %v987
    %v1348 = vunpack.c.l.b16 %v988
    %v1349 = vunpack.c.h.b16 %v988
    %v1350 = vunpack.c.l.b16 %v989
    %v1351 = vunpack.c.h.b16 %v989
    %v1352 = vunpack.c.l.b16 %v990
    %v1353 = vunpack.c.h.b16 %v990
    %v1354 = vunpack.c.l.b16 %v991
    %v1355 = vunpack.c.h.b16 %v991
    %v1356 = vunpack.c.l.b16 %v992
    %v1357 = vunpack.c.h.b16 %v992
    %v1358 = vunpack.c.l.b16 %v993
    %v1359 = vunpack.c.h.b16 %v993
    %v1360 = vunpack.c.l.b16 %v994
    %v1361 = vunpack.c.h.b16 %v994
    %v1362 = vunpack.c.l.b16 %v995
    %v1363 = vunpack.c.h.b16 %v995
    %v1364 = vunpack.c.l.b16 %v996
    %v1365 = vunpack.c.h.b16 %v996
    %v1366 = vunpack.c.l.b16 %v997
    %v1367 = vunpack.c.h.b16 %v997
    %v1368 = vunpack.c.l.b16 %v998
    %v1369 = vunpack.c.h.b16 %v998
    %v1370 = vunpack.c.l.b16 %v999
    %v1371 = vunpack.c.h.b16 %v999
    %v1372 = vunpack.c.l.b16 %v1000
    %v1373 = vunpack.c.h.b16 %v1000
    %v1374 = vunpack.c.l.b16 %v1001
    %v1375 = vunpack.c.h.b16 %v1001
    %v1376 = vunpack.c.l.b16 %v1002
    %v1377 = vunpack.c.h.b16 %v1002
    %v1378 = vunpack.c.l.b16 %v1003
    %v1379 = vunpack.c.h.b16 %v1003
    %v1380 = vunpack.c.l.b16 %v1004
    %v1381 = vunpack.c.h.b16 %v1004
    %v1382 = vunpack.c.l.b16 %v1005
    %v1383 = vunpack.c.h.b16 %v1005
    %v1384 = vunpack.c.l.b16 %v1006
    %v1385 = vunpack.c.h.b16 %v1006
    %v1386 = vunpack.c.l.b16 %v1007
    %v1387 = vunpack.c.h.b16 %v1007
    %v1388 = vunpack.c.l.b16 %v1008
    %v1389 = vunpack.c.h.b16 %v1008
    %v1390 = vunpack.c.l.b16 %v1009
    %v1391 = vunpack.c.h.b16 %v1009
    %v1392 = vunpack.c.l.b16 %v1010
    %v1393 = vunpack.c.h.b16 %v1010
    %v1394 = vunpack.c.l.b16 %v1011
    %v1395 = vunpack.c.h.b16 %v1011
    %v1396 = vunpack.c.l.b16 %v1012
    %v1397 = vunpack.c.h.b16 %v1012
    %v1398 = vunpack.c.l.b16 %v1013
    %v1399 = vunpack.c.h.b16 %v1013
    %v1400 = vunpack.c.l.b16 %v1014
    %v1401 = vunpack.c.h.b16 %v1014
    %v1402 = vunpack.c.l.b16 %v1015
    %v1403 = vunpack.c.h.b16 %v1015
    %v1404 = vunpack.c.l.b16 %v1016
    %v1405 = vunpack.c.h.b16 %v1016
    %v1406 = vunpack.c.l.b16 %v1017
    %v1407 = vunpack.c.h.b16 %v1017
    %v1408 = vunpack.c.l.b16 %v1018
    %v1409 = vunpack.c.h.b16 %v1018
    %v1410 = vunpack.c.l.b16 %v1019
    %v1411 = vunpack.c.h.b16 %v1019
    %v1412 = vunpack.c.l.b16 %v1020
    %v1413 = vunpack.c.h.b16 %v1020
    %v1414 = vunpack.c.l.b16 %v1021
    %v1415 = vunpack.c.h.b16 %v1021
    %v1416 = vunpack.c.l.b16 %v1022
    %v1417 = vunpack.c.h.b16 %v1022
    %v1418 = vunpack.c.l.b16 %v1023
    %v1419 = vunpack.c.h.b16 %v1023
    %v1420 = vunpack.c.l.b16 %v1024
    %v1421 = vunpack.c.h.b16 %v1024
    %v1422 = vunpack.c.l.b16 %v1025
    %v1423 = vunpack.c.h.b16 %v1025
    %v1424 = vunpack.c.l.b16 %v1026
    %v1425 = vunpack.c.h.b16 %v1026
    %v1426 = vunpack.c.l.b16 %v1027
    %v1427 = vunpack.c.h.b16 %v1027
    %v1428 = vunpack.c.l.b16 %v1028
    %v1429 = vunpack.c.h.b16 %v1028
    %v1430 = vunpack.c.l.b16 %v1029
    %v1431 = vunpack.c.h.b16 %v1029
    %v1432 = vunpack.c.l.b16 %v1030
    %v1433 = vunpack.c.h.b16 %v1030
    %v1434 = vunpack.c.l.b16 %v1031
    %v1435 = vunpack.c.h.b16 %v1031
    %v1436 = vunpack.c.l.b16 %v1032
    %v1437 = vunpack.c.h.b16 %v1032
    %v1438 = vunpack.c.l.b16 %v1033
    %v1439 = vunpack.c.h.b16 %v1033
    %v1440 = vunpack.c.l.b16 %v1034
    %v1441 = vunpack.c.h.b16 %v1034
    %v1442 = vunpack.c.l.b16 %v1035
    %v1443 = vunpack.c.h.b16 %v1035
    %v1444 = vunpack.c.l.b16 %v1036
    %v1445 = vunpack.c.h.b16 %v1036
    %v1446 = vunpack.c.l.b16 %v1037
    %v1447 = vunpack.c.h.b16 %v1037
    %v1448 = vunpack.c.l.b16 %v1038
    %v1449 = vunpack.c.h.b16 %v1038
    %v1450 = vunpack.c.l.b16 %v1039
    %v1451 = vunpack.c.h.b16 %v1039
    %v1452 = vunpack.c.l.b16 %v1040
    %v1453 = vunpack.c.h.b16 %v1040
    %v1454 = vunpack.c.l.b16 %v1041
    %v1455 = vunpack.c.h.b16 %v1041
    %v1456 = vunpack.c.l.b16 %v1042
    %v1457 = vunpack.c.h.b16 %v1042
    %v1458 = vunpack.c.l.b16 %v1043
    %v1459 = vunpack.c.h.b16 %v1043
    %v1460 = vunpack.c.l.b16 %v1044
    %v1461 = vunpack.c.h.b16 %v1044
    %v1462 = vunpack.c.l.b16 %v1045
    %v1463 = vunpack.c.h.b16 %v1045
    %v1464 = vunpack.c.l.b16 %v1046
    %v1465 = vunpack.c.h.b16 %v1046
    %v1466 = vunpack.c.l.b16 %v1047
    %v1467 = vunpack.c.h.b16 %v1047
    %v1468 = vunpack.c.l.b16 %v1048
    %v1469 = vunpack.c.h.b16 %v1048
    %v1470 = vunpack.c.l.b16 %v1049
    %v1471 = vunpack.c.h.b16 %v1049
    %v1472 = vunpack.c.l.b16 %v1050
    %v1473 = vunpack.c.h.b16 %v1050
    %v1474 = vunpack.c.l.b16 %v1051
    %v1475 = vunpack.c.h.b16 %v1051
    %v1476 = vunpack.c.l.b16 %v1052
    %v1477 = vunpack.c.h.b16 %v1052
    %v1478 = vunpack.c.l.b16 %v1053
    %v1479 = vunpack.c.h.b16 %v1053
    %v1480 = vunpack.c.l.b16 %v1054
    %v1481 = vunpack.c.h.b16 %v1054
    %v1482 = vunpack.c.l.b16 %v1055
    %v1483 = vunpack.c.h.b16 %v1055
    %v1484 = vunpack.c.l.b16 %v1056
    %v1485 = vunpack.c.h.b16 %v1056
    %v1486 = vunpack.c.l.b16 %v1057
    %v1487 = vunpack.c.h.b16 %v1057
    %v1488 = vunpack.c.l.b16 %v1058
    %v1489 = vunpack.c.h.b16 %v1058
    %v1490 = vunpack.c.l.b16 %v1059
    %v1491 = vunpack.c.h.b16 %v1059
    %v1492 = vunpack.c.l.b16 %v1060
    %v1493 = vunpack.c.h.b16 %v1060
    %v1494 = vunpack.c.l.b16 %v1061
    %v1495 = vunpack.c.h.b16 %v1061
    %v1496 = vunpack.c.l.b16 %v1062
    %v1497 = vunpack.c.h.b16 %v1062
    %v1498 = vunpack.c.l.b16 %v1063
    %v1499 = vunpack.c.h.b16 %v1063
    %v1500 = vunpack.c.l.b16 %v1064
    %v1501 = vunpack.c.h.b16 %v1064
    %v1502 = vunpack.c.l.b16 %v1065
    %v1503 = vunpack.c.h.b16 %v1065
    %v1504 = vunpack.c.l.b16 %v1066
    %v1505 = vunpack.c.h.b16 %v1066
    %v1506 = vunpack.c.l.b16 %v1067
    %v1507 = vunpack.c.h.b16 %v1067
    %v1508 = vunpack.c.l.b16 %v1068
    %v1509 = vunpack.c.h.b16 %v1068
    %v1510 = vunpack.c.l.b16 %v1069
    %v1511 = vunpack.c.h.b16 %v1069
    %v1512 = vunpack.c.l.b16 %v1070
    %v1513 = vunpack.c.h.b16 %v1070
    %v1514 = vunpack.c.l.b16 %v1071
    %v1515 = vunpack.c.h.b16 %v1071
    %v1516 = vunpack.c.l.b16 %v1072
    %v1517 = vunpack.c.h.b16 %v1072
    %v1518 = vunpack.c.l.b16 %v1073
    %v1519 = vunpack.c.h.b16 %v1073
    %v1520 = vunpack.c.l.b16 %v1074
    %v1521 = vunpack.c.h.b16 %v1074
    %v1522 = vunpack.c.l.b16 %v1075
    %v1523 = vunpack.c.h.b16 %v1075
    %v1524 = vunpack.c.l.b16 %v1076
    %v1525 = vunpack.c.h.b16 %v1076
    %v1526 = vunpack.c.l.b16 %v1077
    %v1527 = vunpack.c.h.b16 %v1077
    %v1528 = vunpack.c.l.b16 %v1078
    %v1529 = vunpack.c.h.b16 %v1078
    %v1530 = vunpack.c.l.b16 %v1079
    %v1531 = vunpack.c.h.b16 %v1079
    %v1532 = vunpack.c.l.b16 %v1080
    %v1533 = vunpack.c.h.b16 %v1080
    %v1534 = vunpack.c.l.b16 %v1081
    %v1535 = vunpack.c.h.b16 %v1081
    %v1536 = vunpack.c.l.b16 %v1082
    %v1537 = vunpack.c.h.b16 %v1082
    %v1538 = vunpack.c.l.b16 %v1083
    %v1539 = vunpack.c.h.b16 %v1083
    %v1540 = vunpack.c.l.b16 %v1084
    %v1541 = vunpack.c.h.b16 %v1084
    %v1542 = vunpack.c.l.b16 %v1085
    %v1543 = vunpack.c.h.b16 %v1085
    %v1544 = vunpack.c.l.b16 %v1086
    %v1545 = vunpack.c.h.b16 %v1086
    %v1546 = vunpack.c.l.b16 %v1087
    %v1547 = vunpack.c.h.b16 %v1087
    %v1548 = vunpack.c.l.b16 %v1088
    %v1549 = vunpack.c.h.b16 %v1088
    %v1550 = vunpack.c.l.b16 %v1089
    %v1551 = vunpack.c.h.b16 %v1089
    %v1552 = vunpack.c.l.b16 %v1090
    %v1553 = vunpack.c.h.b16 %v1090
    %v1554 = vunpack.c.l.b16 %v1091
    %v1555 = vunpack.c.h.b16 %v1091
    %v1556 = vunpack.c.l.b16 %v1092
    %v1557 = vunpack.c.h.b16 %v1092
    %v1558 = vunpack.c.l.b16 %v1093
    %v1559 = vunpack.c.h.b16 %v1093
    %v1560 = vunpack.c.l.b16 %v1094
    %v1561 = vunpack.c.h.b16 %v1094
    %v1562 = vunpack.c.l.b16 %v1095
    %v1563 = vunpack.c.h.b16 %v1095
    %v1564 = vpack.c.b16 %v1324, %v1308
    %v1565 = vpack.c.b16 %v1325, %v1309
    %v1566 = vpack.c.b16 %v1326, %v1310
    %v1567 = vpack.c.b16 %v1327, %v1311
    %v1568 = vpack.c.b16 %v1328, %v1312
    %v1569 = vpack.c.b16 %v1329, %v1313
    %v1570 = vpack.c.b16 %v1330, %v1314
    %v1571 = vpack.c.b16 %v1331, %v1315
    %v1572 = vpack.c.b16 %v1332, %v1316
    %v1573 = vpack.c.b16 %v1333, %v1317
    %v1574 = vpack.c.b16 %v1334, %v1318
    %v1575 = vpack.c.b16 %v1335, %v1319
    %v1576 = vpack.c.b16 %v1336, %v1320
    %v1577 = vpack.c.b16 %v1337, %v1321
    %v1578 = vpack.c.b16 %v1338, %v1322
    %v1579 = vpack.c.b16 %v1339, %v1323
    %v1580 = vpack.c.b16 %v1356, %v1340
    %v1581 = vpack.c.b16 %v1357, %v1341
    %v1582 = vpack.c.b16 %v1358, %v1342
    %v1583 = vpack.c.b16 %v1359, %v1343
    %v1584 = vpack.c.b16 %v1360, %v1344
    %v1585 = vpack.c.b16 %v1361, %v1345
    %v1586 = vpack.c.b16 %v1362, %v1346
    %v1587 = vpack.c.b16 %v1363, %v1347
    %v1588 = vpack.c.b16 %v1364, %v1348
    %v1589 = vpack.c.b16 %v1365, %v1349
    %v1590 = vpack.c.b16 %v1366, %v1350
    %v1591 = vpack.c.b16 %v1367, %v1351
    %v1592 = vpack.c.b16 %v1368, %v1352
    %v1593 = vpack.c.b16 %v1369, %v1353
    %v1594 = vpack.c.b16 %v1370, %v1354
    %v1595 = vpack.c.b16 %v1371, %v1355
    %v1596 = vpack.c.b16 %v1388, %v1372
    %v1597 = vpack.c.b16 %v1389, %v1373
    %v1598 = vpack.c.b16 %v1390, %v1374
    %v1599 = vpack.c.b16 %v1391, %v1375
    %v1600 = vpack.c.b16 %v1392, %v1376
    %v1601 = vpack.c.b16 %v1393, %v1377
    %v1602 = vpack.c.b16 %v1394, %v1378
    %v1603 = vpack.c.b16 %v1395, %v1379
    %v1604 = vpack.c.b16 %v1396, %v1380
    %v1605 = vpack.c.b16 %v1397, %v1381
    %v1606 = vpack.c.b16 %v1398, %v1382
    %v1607 = vpack.c.b16 %v1399, %v1383
    %v1608 = vpack.c.b16 %v1400, %v1384
    %v1609 = vpack.c.b16 %v1401, %v1385
    %v1610 = vpack.c.b16 %v1402, %v1386
    %v1611 = vpack.c.b16 %v1403, %v1387
    %v1612 = vpack.c.b16 %v1420, %v1404
    %v1613 = vpack.c.b16 %v1421, %v1405
    %v1614 = vpack.c.b16 %v1422, %v1406
    %v1615 = vpack.c.b16 %v1423, %v1407
    %v1616 = vpack.c.b16 %v1424, %v1408
    %v1617 = vpack.c.b16 %v1425, %v1409
    %v1618 = vpack.c.b16 %v1426, %v1410
    %v1619 = vpack.c.b16 %v1427, %v1411
    %v1620 = vpack.c.b16 %v1428, %v1412
    %v1621 = vpack.c.b16 %v1429, %v1413
    %v1622 = vpack.c.b16 %v1430, %v1414
    %v1623 = vpack.c.b16 %v1431, %v1415
    %v1624 = vpack.c.b16 %v1432, %v1416
    %v1625 = vpack.c.b16 %v1433, %v1417
    %v1626 = vpack.c.b16 %v1434, %v1418
    %v1627 = vpack.c.b16 %v1435, %v1419
    %v1628 = vpack.c.b16 %v1452, %v1436
    %v1629 = vpack.c.b16 %v1453, %v1437
    %v1630 = vpack.c.b16 %v1454, %v1438
    %v1631 = vpack.c.b16 %v1455, %v1439
    %v1632 = vpack.c.b16 %v1456, %v1440
    %v1633 = vpack.c.b16 %v1457, %v1441
    %v1634 = vpack.c.b16 %v1458, %v1442
    %v1635 = vpack.c.b16 %v1459, %v1443
    %v1636 = vpack.c.b16 %v1460, %v1444
    %v1637 = vpack.c.b16 %v1461, %v1445
    %v1638 = vpack.c.b16 %v1462, %v1446
    %v1639 = vpack.c.b16 %v1463, %v1447
    %v1640 = vpack.c.b16 %v1464, %v1448
    %v1641 = vpack.c.b16 %v1465, %v1449
    %v1642 = vpack.c.b16 %v1466, %v1450
    %v1643 = vpack.c.b16 %v1467, %v1451
    %v1644 = vpack.c.b16 %v1484, %v1468
    %v1645 = vpack.c.b16 %v1485, %v1469
    %v1646 = vpack.c.b16 %v1486, %v1470
    %v1647 = vpack.c.b16 %v1487, %v1471
    %v1648 = vpack.c.b16 %v1488, %v1472
    %v1649 = vpack.c.b16 %v1489, %v1473
    %v1650 = vpack.c.b16 %v1490, %v1474
    %v1651 = vpack.c.b16 %v1491, %v1475
    %v1652 = vpack.c.b16 %v1492, %v1476
    %v1653 = vpack.c.b16 %v1493, %v1477
    %v1654 = vpack.c.b16 %v1494, %v1478
    %v1655 = vpack.c.b16 %v1495, %v1479
    %v1656 = vpack.c.b16 %v1496, %v1480
    %v1657 = vpack.c.b16 %v1497, %v1481
    %v1658 = vpack.c.b16 %v1498, %v1482
    %v1659 = vpack.c.b16 %v1499, %v1483
    %v1660 = vpack.c.b16 %v1516, %v1500
    %v1661 = vpack.c.b16 %v1517, %v1501
    %v1662 = vpack.c.b16 %v1518, %v1502
    %v1663 = vpack.c.b16 %v1519, %v1503
    %v1664 = vpack.c.b16 %v1520, %v1504
    %v1665 = vpack.c.b16 %v1521, %v1505
    %v1666 = vpack.c.b16 %v1522, %v1506
    %v1667 = vpack.c.b16 %v1523, %v1507
    %v1668 = vpack.c.b16 %v1524, %v1508
    %v1669 = vpack.c.b16 %v1525, %v1509
    %v1670 = vpack.c.b16 %v1526, %v1510
    %v1671 = vpack.c.b16 %v1527, %v1511
    %v1672 = vpack.c.b16 %v1528, %v1512
    %v1673 = vpack.c.b16 %v1529, %v1513
    %v1674 = vpack.c.b16 %v1530, %v1514
    %v1675 = vpack.c.b16 %v1531, %v1515
    %v1676 = vpack.c.b16 %v1548, %v1532
    %v1677 = vpack.c.b16 %v1549, %v1533
    %v1678 = vpack.c.b16 %v1550, %v1534
    %v1679 = vpack.c.b16 %v1551, %v1535
    %v1680 = vpack.c.b16 %v1552, %v1536
    %v1681 = vpack.c.b16 %v1553, %v1537
    %v1682 = vpack.c.b16 %v1554, %v1538
    %v1683 = vpack.c.b16 %v1555, %v1539
    %v1684 = vpack.c.b16 %v1556, %v1540
    %v1685 = vpack.c.b16 %v1557, %v1541
    %v1686 = vpack.c.b16 %v1558, %v1542
    %v1687 = vpack.c.b16 %v1559, %v1543
    %v1688 = vpack.c.b16 %v1560, %v1544
    %v1689 = vpack.c.b16 %v1561, %v1545
    %v1690 = vpack.c.b16 %v1562, %v1546
    %v1691 = vpack.c.b16 %v1563, %v1547
    %1820 = vmatprep.subr.bf16.mxu0 %v1677
    %1821 = vmatpush1.bf16.msra.mxu0 %v1676
    %1822 = vmatprep.subr.bf16.mxu0 %v1661
    %1823 = vmatpush1.bf16.msra.mxu0 %v1660
    %1824 = vmatprep.subr.bf16.mxu0 %v1645
    %1825 = vmatpush1.bf16.msra.mxu0 %v1644
    %1826 = vmatprep.subr.bf16.mxu0 %v1629
    %1827 = vmatpush1.bf16.msra.mxu0 %v1628
    %1828 = vmatprep.subr.bf16.mxu0 %v1613
    %1829 = vmatpush1.bf16.msra.mxu0 %v1612
    %1830 = vmatprep.subr.bf16.mxu0 %v1597
    %1831 = vmatpush1.bf16.msra.mxu0 %v1596
    %1832 = vmatprep.subr.bf16.mxu0 %v1581
    %1833 = vmatpush1.bf16.msra.mxu0 %v1580
    %1834 = vmatprep.subr.bf16.mxu0 %v1565
    %1835 = vmatpush1.bf16.msra.mxu0 %v1564
    %1836 = vmatprep.subr.bf16.mxu0 0
    %1837 = vmatpush2.bf16.msra.mxu0 0
    %1838 = vmatprep.subr.bf16.mxu0 0
    %1839 = vmatpush2.bf16.msra.mxu0 0
    %1840 = vmatprep.subr.bf16.mxu0 0
    %1841 = vmatpush2.bf16.msra.mxu0 0
    %1842 = vmatprep.subr.bf16.mxu0 0
    %1843 = vmatpush2.bf16.msra.mxu0 0
    %1844 = vmatprep.subr.bf16.mxu0 0
    %1845 = vmatpush2.bf16.msra.mxu0 0
    %1846 = vmatprep.subr.bf16.mxu0 0
    %1847 = vmatpush2.bf16.msra.mxu0 0
    %1848 = vmatprep.subr.bf16.mxu0 0
    %1849 = vmatpush2.bf16.msra.mxu0 0
    %1850 = vmatprep.subr.bf16.mxu0 0
    %1851 = vmatpush2.bf16.msra.mxu0 0
    %1852 = vmatprep.mubr.bf16.mxu0 0
    %1853 = vmatmul.mubr.bf16.gmra.mxu0 %v967
    %v1854 = vpop.f32.mrf.mxu0
    %v1855 = vadd.f32 %v1103, %v1854
    %v1856 = vpop.f32.mrf.mxu0
    %v1857 = vadd.f32 %v1107, %v1856
    %v1858 = vpop.f32.mrf.mxu0
    %v1859 = vadd.f32 %v1103, %v1858
    %v1860 = vpop.f32.mrf.mxu0
    %v1861 = vadd.f32 %v1107, %v1860
    %1862 = vdwg.mxu0
    %1863 = vmatprep.subr.bf16.mxu0 %v1679
    %1864 = vmatpush1.bf16.msra.mxu0 %v1678
    %1865 = vmatprep.subr.bf16.mxu0 %v1663
    %1866 = vmatpush1.bf16.msra.mxu0 %v1662
    %1867 = vmatprep.subr.bf16.mxu0 %v1647
    %1868 = vmatpush1.bf16.msra.mxu0 %v1646
    %1869 = vmatprep.subr.bf16.mxu0 %v1631
    %1870 = vmatpush1.bf16.msra.mxu0 %v1630
    %1871 = vmatprep.subr.bf16.mxu0 %v1615
    %1872 = vmatpush1.bf16.msra.mxu0 %v1614
    %1873 = vmatprep.subr.bf16.mxu0 %v1599
    %1874 = vmatpush1.bf16.msra.mxu0 %v1598
    %1875 = vmatprep.subr.bf16.mxu0 %v1583
    %1876 = vmatpush1.bf16.msra.mxu0 %v1582
    %1877 = vmatprep.subr.bf16.mxu0 %v1567
    %1878 = vmatpush1.bf16.msra.mxu0 %v1566
    %1879 = vmatprep.subr.bf16.mxu0 0
    %1880 = vmatpush2.bf16.msra.mxu0 0
    %1881 = vmatprep.subr.bf16.mxu0 0
    %1882 = vmatpush2.bf16.msra.mxu0 0
    %1883 = vmatprep.subr.bf16.mxu0 0
    %1884 = vmatpush2.bf16.msra.mxu0 0
    %1885 = vmatprep.subr.bf16.mxu0 0
    %1886 = vmatpush2.bf16.msra.mxu0 0
    %1887 = vmatprep.subr.bf16.mxu0 0
    %1888 = vmatpush2.bf16.msra.mxu0 0
    %1889 = vmatprep.subr.bf16.mxu0 0
    %1890 = vmatpush2.bf16.msra.mxu0 0
    %1891 = vmatprep.subr.bf16.mxu0 0
    %1892 = vmatpush2.bf16.msra.mxu0 0
    %1893 = vmatprep.subr.bf16.mxu0 0
    %1894 = vmatpush2.bf16.msra.mxu0 0
    %1895 = vmatprep.mubr.bf16.mxu0 0
    %1896 = vmatmul.mubr.bf16.gmra.mxu0 %v967
    %v1897 = vpop.f32.mrf.mxu0
    %v1898 = vadd.f32 %v1111, %v1897
    %v1899 = vpop.f32.mrf.mxu0
    %v1900 = vadd.f32 %v1115, %v1899
    %v1901 = vpop.f32.mrf.mxu0
    %v1902 = vadd.f32 %v1111, %v1901
    %v1903 = vpop.f32.mrf.mxu0
    %v1904 = vadd.f32 %v1115, %v1903
    %1905 = vdwg.mxu0
    %1906 = vmatprep.subr.bf16.mxu0 %v1681
    %1907 = vmatpush1.bf16.msra.mxu0 %v1680
    %1908 = vmatprep.subr.bf16.mxu0 %v1665
    %1909 = vmatpush1.bf16.msra.mxu0 %v1664
    %1910 = vmatprep.subr.bf16.mxu0 %v1649
    %1911 = vmatpush1.bf16.msra.mxu0 %v1648
    %1912 = vmatprep.subr.bf16.mxu0 %v1633
    %1913 = vmatpush1.bf16.msra.mxu0 %v1632
    %1914 = vmatprep.subr.bf16.mxu0 %v1617
    %1915 = vmatpush1.bf16.msra.mxu0 %v1616
    %1916 = vmatprep.subr.bf16.mxu0 %v1601
    %1917 = vmatpush1.bf16.msra.mxu0 %v1600
    %1918 = vmatprep.subr.bf16.mxu0 %v1585
    %1919 = vmatpush1.bf16.msra.mxu0 %v1584
    %1920 = vmatprep.subr.bf16.mxu0 %v1569
    %1921 = vmatpush1.bf16.msra.mxu0 %v1568
    %1922 = vmatprep.subr.bf16.mxu0 0
    %1923 = vmatpush2.bf16.msra.mxu0 0
    %1924 = vmatprep.subr.bf16.mxu0 0
    %1925 = vmatpush2.bf16.msra.mxu0 0
    %1926 = vmatprep.subr.bf16.mxu0 0
    %1927 = vmatpush2.bf16.msra.mxu0 0
    %1928 = vmatprep.subr.bf16.mxu0 0
    %1929 = vmatpush2.bf16.msra.mxu0 0
    %1930 = vmatprep.subr.bf16.mxu0 0
    %1931 = vmatpush2.bf16.msra.mxu0 0
    %1932 = vmatprep.subr.bf16.mxu0 0
    %1933 = vmatpush2.bf16.msra.mxu0 0
    %1934 = vmatprep.subr.bf16.mxu0 0
    %1935 = vmatpush2.bf16.msra.mxu0 0
    %1936 = vmatprep.subr.bf16.mxu0 0
    %1937 = vmatpush2.bf16.msra.mxu0 0
    %1938 = vmatprep.mubr.bf16.mxu0 0
    %1939 = vmatmul.mubr.bf16.gmra.mxu0 %v967
    %v1940 = vpop.f32.mrf.mxu0
    %v1941 = vadd.f32 %v1119, %v1940
    %v1942 = vpop.f32.mrf.mxu0
    %v1943 = vadd.f32 %v1123, %v1942
    %v1944 = vpop.f32.mrf.mxu0
    %v1945 = vadd.f32 %v1119, %v1944
    %v1946 = vpop.f32.mrf.mxu0
    %v1947 = vadd.f32 %v1123, %v1946
    %1948 = vdwg.mxu0
    %1949 = vmatprep.subr.bf16.mxu0 %v1683
    %1950 = vmatpush1.bf16.msra.mxu0 %v1682
    %1951 = vmatprep.subr.bf16.mxu0 %v1667
    %1952 = vmatpush1.bf16.msra.mxu0 %v1666
    %1953 = vmatprep.subr.bf16.mxu0 %v1651
    %1954 = vmatpush1.bf16.msra.mxu0 %v1650
    %1955 = vmatprep.subr.bf16.mxu0 %v1635
    %1956 = vmatpush1.bf16.msra.mxu0 %v1634
    %1957 = vmatprep.subr.bf16.mxu0 %v1619
    %1958 = vmatpush1.bf16.msra.mxu0 %v1618
    %1959 = vmatprep.subr.bf16.mxu0 %v1603
    %1960 = vmatpush1.bf16.msra.mxu0 %v1602
    %1961 = vmatprep.subr.bf16.mxu0 %v1587
    %1962 = vmatpush1.bf16.msra.mxu0 %v1586
    %1963 = vmatprep.subr.bf16.mxu0 %v1571
    %1964 = vmatpush1.bf16.msra.mxu0 %v1570
    %1965 = vmatprep.subr.bf16.mxu0 0
    %1966 = vmatpush2.bf16.msra.mxu0 0
    %1967 = vmatprep.subr.bf16.mxu0 0
    %1968 = vmatpush2.bf16.msra.mxu0 0
    %1969 = vmatprep.subr.bf16.mxu0 0
    %1970 = vmatpush2.bf16.msra.mxu0 0
    %1971 = vmatprep.subr.bf16.mxu0 0
    %1972 = vmatpush2.bf16.msra.mxu0 0
    %1973 = vmatprep.subr.bf16.mxu0 0
    %1974 = vmatpush2.bf16.msra.mxu0 0
    %1975 = vmatprep.subr.bf16.mxu0 0
    %1976 = vmatpush2.bf16.msra.mxu0 0
    %1977 = vmatprep.subr.bf16.mxu0 0
    %1978 = vmatpush2.bf16.msra.mxu0 0
    %1979 = vmatprep.subr.bf16.mxu0 0
    %1980 = vmatpush2.bf16.msra.mxu0 0
    %1981 = vmatprep.mubr.bf16.mxu0 0
    %1982 = vmatmul.mubr.bf16.gmra.mxu0 %v967
    %v1983 = vpop.f32.mrf.mxu0
    %v1984 = vadd.f32 %v1127, %v1983
    %v1985 = vpop.f32.mrf.mxu0
    %v1986 = vadd.f32 %v1131, %v1985
    %v1987 = vpop.f32.mrf.mxu0
    %v1988 = vadd.f32 %v1127, %v1987
    %v1989 = vpop.f32.mrf.mxu0
    %v1990 = vadd.f32 %v1131, %v1989
    %1991 = vdwg.mxu0
    %1992 = vmatprep.subr.bf16.mxu0 %v1685
    %1993 = vmatpush1.bf16.msra.mxu0 %v1684
    %1994 = vmatprep.subr.bf16.mxu0 %v1669
    %1995 = vmatpush1.bf16.msra.mxu0 %v1668
    %1996 = vmatprep.subr.bf16.mxu0 %v1653
    %1997 = vmatpush1.bf16.msra.mxu0 %v1652
    %1998 = vmatprep.subr.bf16.mxu0 %v1637
    %1999 = vmatpush1.bf16.msra.mxu0 %v1636
    %2000 = vmatprep.subr.bf16.mxu0 %v1621
    %2001 = vmatpush1.bf16.msra.mxu0 %v1620
    %2002 = vmatprep.subr.bf16.mxu0 %v1605
    %2003 = vmatpush1.bf16.msra.mxu0 %v1604
    %2004 = vmatprep.subr.bf16.mxu0 %v1589
    %2005 = vmatpush1.bf16.msra.mxu0 %v1588
    %2006 = vmatprep.subr.bf16.mxu0 %v1573
    %2007 = vmatpush1.bf16.msra.mxu0 %v1572
    %2008 = vmatprep.subr.bf16.mxu0 0
    %2009 = vmatpush2.bf16.msra.mxu0 0
    %2010 = vmatprep.subr.bf16.mxu0 0
    %2011 = vmatpush2.bf16.msra.mxu0 0
    %2012 = vmatprep.subr.bf16.mxu0 0
    %2013 = vmatpush2.bf16.msra.mxu0 0
    %2014 = vmatprep.subr.bf16.mxu0 0
    %2015 = vmatpush2.bf16.msra.mxu0 0
    %2016 = vmatprep.subr.bf16.mxu0 0
    %2017 = vmatpush2.bf16.msra.mxu0 0
    %2018 = vmatprep.subr.bf16.mxu0 0
    %2019 = vmatpush2.bf16.msra.mxu0 0
    %2020 = vmatprep.subr.bf16.mxu0 0
    %2021 = vmatpush2.bf16.msra.mxu0 0
    %2022 = vmatprep.subr.bf16.mxu0 0
    %2023 = vmatpush2.bf16.msra.mxu0 0
    %2024 = vmatprep.mubr.bf16.mxu0 0
    %2025 = vmatmul.mubr.bf16.gmra.mxu0 %v967
    %v2026 = vpop.f32.mrf.mxu0
    %v2027 = vadd.f32 %v1135, %v2026
    %v2028 = vpop.f32.mrf.mxu0
    %v2029 = vadd.f32 %v1139, %v2028
    %v2030 = vpop.f32.mrf.mxu0
    %v2031 = vadd.f32 %v1135, %v2030
    %v2032 = vpop.f32.mrf.mxu0
    %v2033 = vadd.f32 %v1139, %v2032
    %2034 = vdwg.mxu0
    %2035 = vmatprep.subr.bf16.mxu0 %v1687
    %2036 = vmatpush1.bf16.msra.mxu0 %v1686
    %2037 = vmatprep.subr.bf16.mxu0 %v1671
    %2038 = vmatpush1.bf16.msra.mxu0 %v1670
    %2039 = vmatprep.subr.bf16.mxu0 %v1655
    %2040 = vmatpush1.bf16.msra.mxu0 %v1654
    %2041 = vmatprep.subr.bf16.mxu0 %v1639
    %2042 = vmatpush1.bf16.msra.mxu0 %v1638
    %2043 = vmatprep.subr.bf16.mxu0 %v1623
    %2044 = vmatpush1.bf16.msra.mxu0 %v1622
    %2045 = vmatprep.subr.bf16.mxu0 %v1607
    %2046 = vmatpush1.bf16.msra.mxu0 %v1606
    %2047 = vmatprep.subr.bf16.mxu0 %v1591
    %2048 = vmatpush1.bf16.msra.mxu0 %v1590
    %2049 = vmatprep.subr.bf16.mxu0 %v1575
    %2050 = vmatpush1.bf16.msra.mxu0 %v1574
    %2051 = vmatprep.subr.bf16.mxu0 0
    %2052 = vmatpush2.bf16.msra.mxu0 0
    %2053 = vmatprep.subr.bf16.mxu0 0
    %2054 = vmatpush2.bf16.msra.mxu0 0
    %2055 = vmatprep.subr.bf16.mxu0 0
    %2056 = vmatpush2.bf16.msra.mxu0 0
    %2057 = vmatprep.subr.bf16.mxu0 0
    %2058 = vmatpush2.bf16.msra.mxu0 0
    %2059 = vmatprep.subr.bf16.mxu0 0
    %2060 = vmatpush2.bf16.msra.mxu0 0
    %2061 = vmatprep.subr.bf16.mxu0 0
    %2062 = vmatpush2.bf16.msra.mxu0 0
    %2063 = vmatprep.subr.bf16.mxu0 0
    %2064 = vmatpush2.bf16.msra.mxu0 0
    %2065 = vmatprep.subr.bf16.mxu0 0
    %2066 = vmatpush2.bf16.msra.mxu0 0
    %2067 = vmatprep.mubr.bf16.mxu0 0
    %2068 = vmatmul.mubr.bf16.gmra.mxu0 %v967
    %v2069 = vpop.f32.mrf.mxu0
    %v2070 = vadd.f32 %v1143, %v2069
    %v2071 = vpop.f32.mrf.mxu0
    %v2072 = vadd.f32 %v1147, %v2071
    %v2073 = vpop.f32.mrf.mxu0
    %v2074 = vadd.f32 %v1143, %v2073
    %v2075 = vpop.f32.mrf.mxu0
    %v2076 = vadd.f32 %v1147, %v2075
    %2077 = vdwg.mxu0
    %2078 = vmatprep.subr.bf16.mxu0 %v1689
    %2079 = vmatpush1.bf16.msra.mxu0 %v1688
    %2080 = vmatprep.subr.bf16.mxu0 %v1673
    %2081 = vmatpush1.bf16.msra.mxu0 %v1672
    %2082 = vmatprep.subr.bf16.mxu0 %v1657
    %2083 = vmatpush1.bf16.msra.mxu0 %v1656
    %2084 = vmatprep.subr.bf16.mxu0 %v1641
    %2085 = vmatpush1.bf16.msra.mxu0 %v1640
    %2086 = vmatprep.subr.bf16.mxu0 %v1625
    %2087 = vmatpush1.bf16.msra.mxu0 %v1624
    %2088 = vmatprep.subr.bf16.mxu0 %v1609
    %2089 = vmatpush1.bf16.msra.mxu0 %v1608
    %2090 = vmatprep.subr.bf16.mxu0 %v1593
    %2091 = vmatpush1.bf16.msra.mxu0 %v1592
    %2092 = vmatprep.subr.bf16.mxu0 %v1577
    %2093 = vmatpush1.bf16.msra.mxu0 %v1576
    %2094 = vmatprep.subr.bf16.mxu0 0
    %2095 = vmatpush2.bf16.msra.mxu0 0
    %2096 = vmatprep.subr.bf16.mxu0 0
    %2097 = vmatpush2.bf16.msra.mxu0 0
    %2098 = vmatprep.subr.bf16.mxu0 0
    %2099 = vmatpush2.bf16.msra.mxu0 0
    %2100 = vmatprep.subr.bf16.mxu0 0
    %2101 = vmatpush2.bf16.msra.mxu0 0
    %2102 = vmatprep.subr.bf16.mxu0 0
    %2103 = vmatpush2.bf16.msra.mxu0 0
    %2104 = vmatprep.subr.bf16.mxu0 0
    %2105 = vmatpush2.bf16.msra.mxu0 0
    %2106 = vmatprep.subr.bf16.mxu0 0
    %2107 = vmatpush2.bf16.msra.mxu0 0
    %2108 = vmatprep.subr.bf16.mxu0 0
    %2109 = vmatpush2.bf16.msra.mxu0 0
    %2110 = vmatprep.mubr.bf16.mxu0 0
    %2111 = vmatmul.mubr.bf16.gmra.mxu0 %v967
    %v2112 = vpop.f32.mrf.mxu0
    %v2113 = vadd.f32 %v1151, %v2112
    %v2114 = vpop.f32.mrf.mxu0
    %v2115 = vadd.f32 %v1155, %v2114
    %v2116 = vpop.f32.mrf.mxu0
    %v2117 = vadd.f32 %v1151, %v2116
    %v2118 = vpop.f32.mrf.mxu0
    %v2119 = vadd.f32 %v1155, %v2118
    %2120 = vdwg.mxu0
    %2121 = vmatprep.subr.bf16.mxu0 %v1691
    %2122 = vmatpush1.bf16.msra.mxu0 %v1690
    %2123 = vmatprep.subr.bf16.mxu0 %v1675
    %2124 = vmatpush1.bf16.msra.mxu0 %v1674
    %2125 = vmatprep.subr.bf16.mxu0 %v1659
    %2126 = vmatpush1.bf16.msra.mxu0 %v1658
    %2127 = vmatprep.subr.bf16.mxu0 %v1643
    %2128 = vmatpush1.bf16.msra.mxu0 %v1642
    %2129 = vmatprep.subr.bf16.mxu0 %v1627
    %2130 = vmatpush1.bf16.msra.mxu0 %v1626
    %2131 = vmatprep.subr.bf16.mxu0 %v1611
    %2132 = vmatpush1.bf16.msra.mxu0 %v1610
    %2133 = vmatprep.subr.bf16.mxu0 %v1595
    %2134 = vmatpush1.bf16.msra.mxu0 %v1594
    %2135 = vmatprep.subr.bf16.mxu0 %v1579
    %2136 = vmatpush1.bf16.msra.mxu0 %v1578
    %2137 = vmatprep.subr.bf16.mxu0 0
    %2138 = vmatpush2.bf16.msra.mxu0 0
    %2139 = vmatprep.subr.bf16.mxu0 0
    %2140 = vmatpush2.bf16.msra.mxu0 0
    %2141 = vmatprep.subr.bf16.mxu0 0
    %2142 = vmatpush2.bf16.msra.mxu0 0
    %2143 = vmatprep.subr.bf16.mxu0 0
    %2144 = vmatpush2.bf16.msra.mxu0 0
    %2145 = vmatprep.subr.bf16.mxu0 0
    %2146 = vmatpush2.bf16.msra.mxu0 0
    %2147 = vmatprep.subr.bf16.mxu0 0
    %2148 = vmatpush2.bf16.msra.mxu0 0
    %2149 = vmatprep.subr.bf16.mxu0 0
    %2150 = vmatpush2.bf16.msra.mxu0 0
    %2151 = vmatprep.subr.bf16.mxu0 0
    %2152 = vmatpush2.bf16.msra.mxu0 0
    %2153 = vmatprep.mubr.bf16.mxu0 0
    %2154 = vmatmul.mubr.bf16.gmra.mxu0 %v967
    %v2155 = vpop.f32.mrf.mxu0
    %v2156 = vadd.f32 %v1159, %v2155
    %v2157 = vpop.f32.mrf.mxu0
    %v2158 = vadd.f32 %v1163, %v2157
    %v2159 = vpop.f32.mrf.mxu0
    %v2160 = vadd.f32 %v1159, %v2159
    %v2161 = vpop.f32.mrf.mxu0
    %v2162 = vadd.f32 %v1163, %v2161
    %2163 = vdwg.mxu0
    %v2164 = vmax.f32 %v1855, 0.0
    %v2165 = vmax.f32 %v1857, 0.0
    %v2166 = vmax.f32 %v1898, 0.0
    %v2167 = vmax.f32 %v1900, 0.0
    %v2168 = vmax.f32 %v1941, 0.0
    %v2169 = vmax.f32 %v1943, 0.0
    %v2170 = vmax.f32 %v1984, 0.0
    %v2171 = vmax.f32 %v1986, 0.0
    %v2172 = vmax.f32 %v2027, 0.0
    %v2173 = vmax.f32 %v2029, 0.0
    %v2174 = vmax.f32 %v2070, 0.0
    %v2175 = vmax.f32 %v2072, 0.0
    %v2176 = vmax.f32 %v2113, 0.0
    %v2177 = vmax.f32 %v2115, 0.0
    %v2178 = vmax.f32 %v2156, 0.0
    %v2179 = vmax.f32 %v2158, 0.0
    %v2180 = vmax.f32 %v1859, 0.0
    %v2181 = vmax.f32 %v1861, 0.0
    %v2182 = vmax.f32 %v1902, 0.0
    %v2183 = vmax.f32 %v1904, 0.0
    %v2184 = vmax.f32 %v1945, 0.0
    %v2185 = vmax.f32 %v1947, 0.0
    %v2186 = vmax.f32 %v1988, 0.0
    %v2187 = vmax.f32 %v1990, 0.0
    %v2188 = vmax.f32 %v2031, 0.0
    %v2189 = vmax.f32 %v2033, 0.0
    %v2190 = vmax.f32 %v2074, 0.0
    %v2191 = vmax.f32 %v2076, 0.0
    %v2192 = vmax.f32 %v2117, 0.0
    %v2193 = vmax.f32 %v2119, 0.0
    %v2194 = vmax.f32 %v2160, 0.0
    %v2195 = vmax.f32 %v2162, 0.0
    %v2196 = vpack.c.bf16 %v2180, %v2164
    %v2197 = vpack.c.bf16 %v2181, %v2165
    %v2198 = vpack.c.bf16 %v2182, %v2166
    %v2199 = vpack.c.bf16 %v2183, %v2167
    %v2200 = vpack.c.bf16 %v2184, %v2168
    %v2201 = vpack.c.bf16 %v2185, %v2169
    %v2202 = vpack.c.bf16 %v2186, %v2170
    %v2203 = vpack.c.bf16 %v2187, %v2171
    %v2204 = vpack.c.bf16 %v2188, %v2172
    %v2205 = vpack.c.bf16 %v2189, %v2173
    %v2206 = vpack.c.bf16 %v2190, %v2174
    %v2207 = vpack.c.bf16 %v2191, %v2175
    %v2208 = vpack.c.bf16 %v2192, %v2176
    %v2209 = vpack.c.bf16 %v2193, %v2177
    %v2210 = vpack.c.bf16 %v2194, %v2178
    %v2211 = vpack.c.bf16 %v2195, %v2179
    %v2212 = vld [vmem:[#allocation14] sm:$0xf]
    %v2213 = vld [vmem:[#allocation14 + $0x4] sm:$0xf]
    %v2214 = vld [vmem:[#allocation14 + $0x8] sm:$0xf]
    %v2215 = vld [vmem:[#allocation14 + $0xc] sm:$0xf]
    %v2216 = vld [vmem:[#allocation14 + $0x10] sm:$0xf]
    %v2217 = vld [vmem:[#allocation14 + $0x14] sm:$0xf]
    %v2218 = vld [vmem:[#allocation14 + $0x18] sm:$0xf]
    %v2219 = vld [vmem:[#allocation14 + $0x1c] sm:$0xf]
    %v2220 = vld [vmem:[#allocation14 + $0x20] sm:$0xf]
    %v2221 = vld [vmem:[#allocation14 + $0x24] sm:$0xf]
    %v2222 = vld [vmem:[#allocation14 + $0x28] sm:$0xf]
    %v2223 = vld [vmem:[#allocation14 + $0x2c] sm:$0xf]
    %v2224 = vld [vmem:[#allocation14 + $0x30] sm:$0xf]
    %v2225 = vld [vmem:[#allocation14 + $0x34] sm:$0xf]
    %v2226 = vld [vmem:[#allocation14 + $0x38] sm:$0xf]
    %v2227 = vld [vmem:[#allocation14 + $0x3c] sm:$0xf]
    %v2228 = vld [vmem:[#allocation14 + $0x40] sm:$0xf]
    %v2229 = vld [vmem:[#allocation14 + $0x44] sm:$0xf]
    %v2230 = vld [vmem:[#allocation14 + $0x48] sm:$0xf]
    %v2231 = vld [vmem:[#allocation14 + $0x4c] sm:$0xf]
    %v2232 = vld [vmem:[#allocation14 + $0x50] sm:$0xf]
    %v2233 = vld [vmem:[#allocation14 + $0x54] sm:$0xf]
    %v2234 = vld [vmem:[#allocation14 + $0x58] sm:$0xf]
    %v2235 = vld [vmem:[#allocation14 + $0x5c] sm:$0xf]
    %v2236 = vld [vmem:[#allocation14 + $0x60] sm:$0xf]
    %v2237 = vld [vmem:[#allocation14 + $0x64] sm:$0xf]
    %v2238 = vld [vmem:[#allocation14 + $0x68] sm:$0xf]
    %v2239 = vld [vmem:[#allocation14 + $0x6c] sm:$0xf]
    %v2240 = vld [vmem:[#allocation14 + $0x70] sm:$0xf]
    %v2241 = vld [vmem:[#allocation14 + $0x74] sm:$0xf]
    %v2242 = vld [vmem:[#allocation14 + $0x78] sm:$0xf]
    %v2243 = vld [vmem:[#allocation14 + $0x7c] sm:$0xf]
    %v2244 = vld [vmem:[#allocation14 + $0x80] sm:$0xf]
    %v2245 = vld [vmem:[#allocation14 + $0x84] sm:$0xf]
    %v2246 = vld [vmem:[#allocation14 + $0x88] sm:$0xf]
    %v2247 = vld [vmem:[#allocation14 + $0x8c] sm:$0xf]
    %v2248 = vld [vmem:[#allocation14 + $0x90] sm:$0xf]
    %v2249 = vld [vmem:[#allocation14 + $0x94] sm:$0xf]
    %v2250 = vld [vmem:[#allocation14 + $0x98] sm:$0xf]
    %v2251 = vld [vmem:[#allocation14 + $0x9c] sm:$0xf]
    %v2252 = vld [vmem:[#allocation14 + $0xa0] sm:$0xf]
    %v2253 = vld [vmem:[#allocation14 + $0xa4] sm:$0xf]
    %v2254 = vld [vmem:[#allocation14 + $0xa8] sm:$0xf]
    %v2255 = vld [vmem:[#allocation14 + $0xac] sm:$0xf]
    %v2256 = vld [vmem:[#allocation14 + $0xb0] sm:$0xf]
    %v2257 = vld [vmem:[#allocation14 + $0xb4] sm:$0xf]
    %v2258 = vld [vmem:[#allocation14 + $0xb8] sm:$0xf]
    %v2259 = vld [vmem:[#allocation14 + $0xbc] sm:$0xf]
    %v2260 = vld [vmem:[#allocation14 + $0xc0] sm:$0xf]
    %v2261 = vld [vmem:[#allocation14 + $0xc4] sm:$0xf]
    %v2262 = vld [vmem:[#allocation14 + $0xc8] sm:$0xf]
    %v2263 = vld [vmem:[#allocation14 + $0xcc] sm:$0xf]
    %v2264 = vld [vmem:[#allocation14 + $0xd0] sm:$0xf]
    %v2265 = vld [vmem:[#allocation14 + $0xd4] sm:$0xf]
    %v2266 = vld [vmem:[#allocation14 + $0xd8] sm:$0xf]
    %v2267 = vld [vmem:[#allocation14 + $0xdc] sm:$0xf]
    %v2268 = vld [vmem:[#allocation14 + $0xe0] sm:$0xf]
    %v2269 = vld [vmem:[#allocation14 + $0xe4] sm:$0xf]
    %v2270 = vld [vmem:[#allocation14 + $0xe8] sm:$0xf]
    %v2271 = vld [vmem:[#allocation14 + $0xec] sm:$0xf]
    %v2272 = vld [vmem:[#allocation14 + $0xf0] sm:$0xf]
    %v2273 = vld [vmem:[#allocation14 + $0xf4] sm:$0xf]
    %v2274 = vld [vmem:[#allocation14 + $0xf8] sm:$0xf]
    %v2275 = vld [vmem:[#allocation14 + $0xfc] sm:$0xf]
    %v2276 = vld [vmem:[#allocation14 + $0x100] sm:$0xf]
    %v2277 = vld [vmem:[#allocation14 + $0x104] sm:$0xf]
    %v2278 = vld [vmem:[#allocation14 + $0x108] sm:$0xf]
    %v2279 = vld [vmem:[#allocation14 + $0x10c] sm:$0xf]
    %v2280 = vld [vmem:[#allocation14 + $0x110] sm:$0xf]
    %v2281 = vld [vmem:[#allocation14 + $0x114] sm:$0xf]
    %v2282 = vld [vmem:[#allocation14 + $0x118] sm:$0xf]
    %v2283 = vld [vmem:[#allocation14 + $0x11c] sm:$0xf]
    %v2284 = vld [vmem:[#allocation14 + $0x120] sm:$0xf]
    %v2285 = vld [vmem:[#allocation14 + $0x124] sm:$0xf]
    %v2286 = vld [vmem:[#allocation14 + $0x128] sm:$0xf]
    %v2287 = vld [vmem:[#allocation14 + $0x12c] sm:$0xf]
    %v2288 = vld [vmem:[#allocation14 + $0x130] sm:$0xf]
    %v2289 = vld [vmem:[#allocation14 + $0x134] sm:$0xf]
    %v2290 = vld [vmem:[#allocation14 + $0x138] sm:$0xf]
    %v2291 = vld [vmem:[#allocation14 + $0x13c] sm:$0xf]
    %v2292 = vld [vmem:[#allocation14 + $0x140] sm:$0xf]
    %v2293 = vld [vmem:[#allocation14 + $0x144] sm:$0xf]
    %v2294 = vld [vmem:[#allocation14 + $0x148] sm:$0xf]
    %v2295 = vld [vmem:[#allocation14 + $0x14c] sm:$0xf]
    %v2296 = vld [vmem:[#allocation14 + $0x150] sm:$0xf]
    %v2297 = vld [vmem:[#allocation14 + $0x154] sm:$0xf]
    %v2298 = vld [vmem:[#allocation14 + $0x158] sm:$0xf]
    %v2299 = vld [vmem:[#allocation14 + $0x15c] sm:$0xf]
    %v2300 = vld [vmem:[#allocation14 + $0x160] sm:$0xf]
    %v2301 = vld [vmem:[#allocation14 + $0x164] sm:$0xf]
    %v2302 = vld [vmem:[#allocation14 + $0x168] sm:$0xf]
    %v2303 = vld [vmem:[#allocation14 + $0x16c] sm:$0xf]
    %v2304 = vld [vmem:[#allocation14 + $0x170] sm:$0xf]
    %v2305 = vld [vmem:[#allocation14 + $0x174] sm:$0xf]
    %v2306 = vld [vmem:[#allocation14 + $0x178] sm:$0xf]
    %v2307 = vld [vmem:[#allocation14 + $0x17c] sm:$0xf]
    %v2308 = vld [vmem:[#allocation14 + $0x180] sm:$0xf]
    %v2309 = vld [vmem:[#allocation14 + $0x184] sm:$0xf]
    %v2310 = vld [vmem:[#allocation14 + $0x188] sm:$0xf]
    %v2311 = vld [vmem:[#allocation14 + $0x18c] sm:$0xf]
    %v2312 = vld [vmem:[#allocation14 + $0x190] sm:$0xf]
    %v2313 = vld [vmem:[#allocation14 + $0x194] sm:$0xf]
    %v2314 = vld [vmem:[#allocation14 + $0x198] sm:$0xf]
    %v2315 = vld [vmem:[#allocation14 + $0x19c] sm:$0xf]
    %v2316 = vld [vmem:[#allocation14 + $0x1a0] sm:$0xf]
    %v2317 = vld [vmem:[#allocation14 + $0x1a4] sm:$0xf]
    %v2318 = vld [vmem:[#allocation14 + $0x1a8] sm:$0xf]
    %v2319 = vld [vmem:[#allocation14 + $0x1ac] sm:$0xf]
    %v2320 = vld [vmem:[#allocation14 + $0x1b0] sm:$0xf]
    %v2321 = vld [vmem:[#allocation14 + $0x1b4] sm:$0xf]
    %v2322 = vld [vmem:[#allocation14 + $0x1b8] sm:$0xf]
    %v2323 = vld [vmem:[#allocation14 + $0x1bc] sm:$0xf]
    %v2324 = vld [vmem:[#allocation14 + $0x1c0] sm:$0xf]
    %v2325 = vld [vmem:[#allocation14 + $0x1c4] sm:$0xf]
    %v2326 = vld [vmem:[#allocation14 + $0x1c8] sm:$0xf]
    %v2327 = vld [vmem:[#allocation14 + $0x1cc] sm:$0xf]
    %v2328 = vld [vmem:[#allocation14 + $0x1d0] sm:$0xf]
    %v2329 = vld [vmem:[#allocation14 + $0x1d4] sm:$0xf]
    %v2330 = vld [vmem:[#allocation14 + $0x1d8] sm:$0xf]
    %v2331 = vld [vmem:[#allocation14 + $0x1dc] sm:$0xf]
    %v2332 = vld [vmem:[#allocation14 + $0x1e0] sm:$0xf]
    %v2333 = vld [vmem:[#allocation14 + $0x1e4] sm:$0xf]
    %v2334 = vld [vmem:[#allocation14 + $0x1e8] sm:$0xf]
    %v2335 = vld [vmem:[#allocation14 + $0x1ec] sm:$0xf]
    %v2336 = vld [vmem:[#allocation14 + $0x1f0] sm:$0xf]
    %v2337 = vld [vmem:[#allocation14 + $0x1f4] sm:$0xf]
    %v2338 = vld [vmem:[#allocation14 + $0x1f8] sm:$0xf]
    %v2339 = vld [vmem:[#allocation14 + $0x1fc] sm:$0xf]
    %v2340 = vld [vmem:[#allocation14 + $0x200] sm:$0xf]
    %v2341 = vld [vmem:[#allocation14 + $0x204] sm:$0xf]
    %v2342 = vld [vmem:[#allocation14 + $0x208] sm:$0xf]
    %v2343 = vld [vmem:[#allocation14 + $0x20c] sm:$0xf]
    %v2344 = vld [vmem:[#allocation14 + $0x210] sm:$0xf]
    %v2345 = vld [vmem:[#allocation14 + $0x214] sm:$0xf]
    %v2346 = vld [vmem:[#allocation14 + $0x218] sm:$0xf]
    %v2347 = vld [vmem:[#allocation14 + $0x21c] sm:$0xf]
    %v2348 = vld [vmem:[#allocation14 + $0x220] sm:$0xf]
    %v2349 = vld [vmem:[#allocation14 + $0x224] sm:$0xf]
    %v2350 = vld [vmem:[#allocation14 + $0x228] sm:$0xf]
    %v2351 = vld [vmem:[#allocation14 + $0x22c] sm:$0xf]
    %v2352 = vld [vmem:[#allocation14 + $0x230] sm:$0xf]
    %v2353 = vld [vmem:[#allocation14 + $0x234] sm:$0xf]
    %v2354 = vld [vmem:[#allocation14 + $0x238] sm:$0xf]
    %v2355 = vld [vmem:[#allocation14 + $0x23c] sm:$0xf]
    %v2356 = vld [vmem:[#allocation14 + $0x240] sm:$0xf]
    %v2357 = vld [vmem:[#allocation14 + $0x244] sm:$0xf]
    %v2358 = vld [vmem:[#allocation14 + $0x248] sm:$0xf]
    %v2359 = vld [vmem:[#allocation14 + $0x24c] sm:$0xf]
    %v2360 = vld [vmem:[#allocation14 + $0x250] sm:$0xf]
    %v2361 = vld [vmem:[#allocation14 + $0x254] sm:$0xf]
    %v2362 = vld [vmem:[#allocation14 + $0x258] sm:$0xf]
    %v2363 = vld [vmem:[#allocation14 + $0x25c] sm:$0xf]
    %v2364 = vld [vmem:[#allocation14 + $0x260] sm:$0xf]
    %v2365 = vld [vmem:[#allocation14 + $0x264] sm:$0xf]
    %v2366 = vld [vmem:[#allocation14 + $0x268] sm:$0xf]
    %v2367 = vld [vmem:[#allocation14 + $0x26c] sm:$0xf]
    %v2368 = vld [vmem:[#allocation14 + $0x270] sm:$0xf]
    %v2369 = vld [vmem:[#allocation14 + $0x274] sm:$0xf]
    %v2370 = vld [vmem:[#allocation14 + $0x278] sm:$0xf]
    %v2371 = vld [vmem:[#allocation14 + $0x27c] sm:$0xf]
    %v2372 = vld [vmem:[#allocation14 + $0x280] sm:$0xf]
    %v2373 = vld [vmem:[#allocation14 + $0x284] sm:$0xf]
    %v2374 = vld [vmem:[#allocation14 + $0x288] sm:$0xf]
    %v2375 = vld [vmem:[#allocation14 + $0x28c] sm:$0xf]
    %v2376 = vld [vmem:[#allocation14 + $0x290] sm:$0xf]
    %v2377 = vld [vmem:[#allocation14 + $0x294] sm:$0xf]
    %v2378 = vld [vmem:[#allocation14 + $0x298] sm:$0xf]
    %v2379 = vld [vmem:[#allocation14 + $0x29c] sm:$0xf]
    %v2380 = vld [vmem:[#allocation14 + $0x2a0] sm:$0xf]
    %v2381 = vld [vmem:[#allocation14 + $0x2a4] sm:$0xf]
    %v2382 = vld [vmem:[#allocation14 + $0x2a8] sm:$0xf]
    %v2383 = vld [vmem:[#allocation14 + $0x2ac] sm:$0xf]
    %v2384 = vld [vmem:[#allocation14 + $0x2b0] sm:$0xf]
    %v2385 = vld [vmem:[#allocation14 + $0x2b4] sm:$0xf]
    %v2386 = vld [vmem:[#allocation14 + $0x2b8] sm:$0xf]
    %v2387 = vld [vmem:[#allocation14 + $0x2bc] sm:$0xf]
    %v2388 = vld [vmem:[#allocation14 + $0x2c0] sm:$0xf]
    %v2389 = vld [vmem:[#allocation14 + $0x2c4] sm:$0xf]
    %v2390 = vld [vmem:[#allocation14 + $0x2c8] sm:$0xf]
    %v2391 = vld [vmem:[#allocation14 + $0x2cc] sm:$0xf]
    %v2392 = vld [vmem:[#allocation14 + $0x2d0] sm:$0xf]
    %v2393 = vld [vmem:[#allocation14 + $0x2d4] sm:$0xf]
    %v2394 = vld [vmem:[#allocation14 + $0x2d8] sm:$0xf]
    %v2395 = vld [vmem:[#allocation14 + $0x2dc] sm:$0xf]
    %v2396 = vld [vmem:[#allocation14 + $0x2e0] sm:$0xf]
    %v2397 = vld [vmem:[#allocation14 + $0x2e4] sm:$0xf]
    %v2398 = vld [vmem:[#allocation14 + $0x2e8] sm:$0xf]
    %v2399 = vld [vmem:[#allocation14 + $0x2ec] sm:$0xf]
    %v2400 = vld [vmem:[#allocation14 + $0x2f0] sm:$0xf]
    %v2401 = vld [vmem:[#allocation14 + $0x2f4] sm:$0xf]
    %v2402 = vld [vmem:[#allocation14 + $0x2f8] sm:$0xf]
    %v2403 = vld [vmem:[#allocation14 + $0x2fc] sm:$0xf]
    %v2404 = vld [vmem:[#allocation14 + $0x300] sm:$0xf]
    %v2405 = vld [vmem:[#allocation14 + $0x304] sm:$0xf]
    %v2406 = vld [vmem:[#allocation14 + $0x308] sm:$0xf]
    %v2407 = vld [vmem:[#allocation14 + $0x30c] sm:$0xf]
    %v2408 = vld [vmem:[#allocation14 + $0x310] sm:$0xf]
    %v2409 = vld [vmem:[#allocation14 + $0x314] sm:$0xf]
    %v2410 = vld [vmem:[#allocation14 + $0x318] sm:$0xf]
    %v2411 = vld [vmem:[#allocation14 + $0x31c] sm:$0xf]
    %v2412 = vld [vmem:[#allocation14 + $0x320] sm:$0xf]
    %v2413 = vld [vmem:[#allocation14 + $0x324] sm:$0xf]
    %v2414 = vld [vmem:[#allocation14 + $0x328] sm:$0xf]
    %v2415 = vld [vmem:[#allocation14 + $0x32c] sm:$0xf]
    %v2416 = vld [vmem:[#allocation14 + $0x330] sm:$0xf]
    %v2417 = vld [vmem:[#allocation14 + $0x334] sm:$0xf]
    %v2418 = vld [vmem:[#allocation14 + $0x338] sm:$0xf]
    %v2419 = vld [vmem:[#allocation14 + $0x33c] sm:$0xf]
    %v2420 = vld [vmem:[#allocation14 + $0x340] sm:$0xf]
    %v2421 = vld [vmem:[#allocation14 + $0x344] sm:$0xf]
    %v2422 = vld [vmem:[#allocation14 + $0x348] sm:$0xf]
    %v2423 = vld [vmem:[#allocation14 + $0x34c] sm:$0xf]
    %v2424 = vld [vmem:[#allocation14 + $0x350] sm:$0xf]
    %v2425 = vld [vmem:[#allocation14 + $0x354] sm:$0xf]
    %v2426 = vld [vmem:[#allocation14 + $0x358] sm:$0xf]
    %v2427 = vld [vmem:[#allocation14 + $0x35c] sm:$0xf]
    %v2428 = vld [vmem:[#allocation14 + $0x360] sm:$0xf]
    %v2429 = vld [vmem:[#allocation14 + $0x364] sm:$0xf]
    %v2430 = vld [vmem:[#allocation14 + $0x368] sm:$0xf]
    %v2431 = vld [vmem:[#allocation14 + $0x36c] sm:$0xf]
    %v2432 = vld [vmem:[#allocation14 + $0x370] sm:$0xf]
    %v2433 = vld [vmem:[#allocation14 + $0x374] sm:$0xf]
    %v2434 = vld [vmem:[#allocation14 + $0x378] sm:$0xf]
    %v2435 = vld [vmem:[#allocation14 + $0x37c] sm:$0xf]
    %v2436 = vld [vmem:[#allocation14 + $0x380] sm:$0xf]
    %v2437 = vld [vmem:[#allocation14 + $0x384] sm:$0xf]
    %v2438 = vld [vmem:[#allocation14 + $0x388] sm:$0xf]
    %v2439 = vld [vmem:[#allocation14 + $0x38c] sm:$0xf]
    %v2440 = vld [vmem:[#allocation14 + $0x390] sm:$0xf]
    %v2441 = vld [vmem:[#allocation14 + $0x394] sm:$0xf]
    %v2442 = vld [vmem:[#allocation14 + $0x398] sm:$0xf]
    %v2443 = vld [vmem:[#allocation14 + $0x39c] sm:$0xf]
    %v2444 = vld [vmem:[#allocation14 + $0x3a0] sm:$0xf]
    %v2445 = vld [vmem:[#allocation14 + $0x3a4] sm:$0xf]
    %v2446 = vld [vmem:[#allocation14 + $0x3a8] sm:$0xf]
    %v2447 = vld [vmem:[#allocation14 + $0x3ac] sm:$0xf]
    %v2448 = vld [vmem:[#allocation14 + $0x3b0] sm:$0xf]
    %v2449 = vld [vmem:[#allocation14 + $0x3b4] sm:$0xf]
    %v2450 = vld [vmem:[#allocation14 + $0x3b8] sm:$0xf]
    %v2451 = vld [vmem:[#allocation14 + $0x3bc] sm:$0xf]
    %v2452 = vld [vmem:[#allocation14 + $0x3c0] sm:$0xf]
    %v2453 = vld [vmem:[#allocation14 + $0x3c4] sm:$0xf]
    %v2454 = vld [vmem:[#allocation14 + $0x3c8] sm:$0xf]
    %v2455 = vld [vmem:[#allocation14 + $0x3cc] sm:$0xf]
    %v2456 = vld [vmem:[#allocation14 + $0x3d0] sm:$0xf]
    %v2457 = vld [vmem:[#allocation14 + $0x3d4] sm:$0xf]
    %v2458 = vld [vmem:[#allocation14 + $0x3d8] sm:$0xf]
    %v2459 = vld [vmem:[#allocation14 + $0x3dc] sm:$0xf]
    %v2460 = vld [vmem:[#allocation14 + $0x3e0] sm:$0xf]
    %v2461 = vld [vmem:[#allocation14 + $0x3e4] sm:$0xf]
    %v2462 = vld [vmem:[#allocation14 + $0x3e8] sm:$0xf]
    %v2463 = vld [vmem:[#allocation14 + $0x3ec] sm:$0xf]
    %v2464 = vld [vmem:[#allocation14 + $0x3f0] sm:$0xf]
    %v2465 = vld [vmem:[#allocation14 + $0x3f4] sm:$0xf]
    %v2466 = vld [vmem:[#allocation14 + $0x3f8] sm:$0xf]
    %v2467 = vld [vmem:[#allocation14 + $0x3fc] sm:$0xf]
    %v2468 = vld [vmem:[#allocation15] sm:$0x1]
    %v2470 = vlaneseq
    %v2471 = vshrl.u32 %v2470, 7
    %v2472 = vsub.s32 0, %v2471
    %v2473 = vrot.slane %v2468, %v2472
    %v2731 = vunpack.c.l.b16 %v2212
    %v2732 = vunpack.c.l.b16 %v2213
    %v2733 = vunpack.c.l.b16 %v2214
    %v2734 = vunpack.c.l.b16 %v2215
    %v2735 = vunpack.c.l.b16 %v2216
    %v2736 = vunpack.c.l.b16 %v2217
    %v2737 = vunpack.c.l.b16 %v2218
    %v2738 = vunpack.c.l.b16 %v2219
    %v2739 = vunpack.c.l.b16 %v2220
    %v2740 = vunpack.c.l.b16 %v2221
    %v2741 = vunpack.c.l.b16 %v2222
    %v2742 = vunpack.c.l.b16 %v2223
    %v2743 = vunpack.c.l.b16 %v2224
    %v2744 = vunpack.c.l.b16 %v2225
    %v2745 = vunpack.c.l.b16 %v2226
    %v2746 = vunpack.c.l.b16 %v2227
    %v2747 = vunpack.c.l.b16 %v2228
    %v2748 = vunpack.c.l.b16 %v2229
    %v2749 = vunpack.c.l.b16 %v2230
    %v2750 = vunpack.c.l.b16 %v2231
    %v2751 = vunpack.c.l.b16 %v2232
    %v2752 = vunpack.c.l.b16 %v2233
    %v2753 = vunpack.c.l.b16 %v2234
    %v2754 = vunpack.c.l.b16 %v2235
    %v2755 = vunpack.c.l.b16 %v2236
    %v2756 = vunpack.c.l.b16 %v2237
    %v2757 = vunpack.c.l.b16 %v2238
    %v2758 = vunpack.c.l.b16 %v2239
    %v2759 = vunpack.c.l.b16 %v2240
    %v2760 = vunpack.c.l.b16 %v2241
    %v2761 = vunpack.c.l.b16 %v2242
    %v2762 = vunpack.c.l.b16 %v2243
    %v2763 = vunpack.c.l.b16 %v2244
    %v2764 = vunpack.c.l.b16 %v2245
    %v2765 = vunpack.c.l.b16 %v2246
    %v2766 = vunpack.c.l.b16 %v2247
    %v2767 = vunpack.c.l.b16 %v2248
    %v2768 = vunpack.c.l.b16 %v2249
    %v2769 = vunpack.c.l.b16 %v2250
    %v2770 = vunpack.c.l.b16 %v2251
    %v2771 = vunpack.c.l.b16 %v2252
    %v2772 = vunpack.c.l.b16 %v2253
    %v2773 = vunpack.c.l.b16 %v2254
    %v2774 = vunpack.c.l.b16 %v2255
    %v2775 = vunpack.c.l.b16 %v2256
    %v2776 = vunpack.c.l.b16 %v2257
    %v2777 = vunpack.c.l.b16 %v2258
    %v2778 = vunpack.c.l.b16 %v2259
    %v2779 = vunpack.c.l.b16 %v2260
    %v2780 = vunpack.c.l.b16 %v2261
    %v2781 = vunpack.c.l.b16 %v2262
    %v2782 = vunpack.c.l.b16 %v2263
    %v2783 = vunpack.c.l.b16 %v2264
    %v2784 = vunpack.c.l.b16 %v2265
    %v2785 = vunpack.c.l.b16 %v2266
    %v2786 = vunpack.c.l.b16 %v2267
    %v2787 = vunpack.c.l.b16 %v2268
    %v2788 = vunpack.c.l.b16 %v2269
    %v2789 = vunpack.c.l.b16 %v2270
    %v2790 = vunpack.c.l.b16 %v2271
    %v2791 = vunpack.c.l.b16 %v2272
    %v2792 = vunpack.c.l.b16 %v2273
    %v2793 = vunpack.c.l.b16 %v2274
    %v2794 = vunpack.c.l.b16 %v2275
    %v2795 = vunpack.c.l.b16 %v2276
    %v2796 = vunpack.c.l.b16 %v2277
    %v2797 = vunpack.c.l.b16 %v2278
    %v2798 = vunpack.c.l.b16 %v2279
    %v2799 = vunpack.c.l.b16 %v2280
    %v2800 = vunpack.c.l.b16 %v2281
    %v2801 = vunpack.c.l.b16 %v2282
    %v2802 = vunpack.c.l.b16 %v2283
    %v2803 = vunpack.c.l.b16 %v2284
    %v2804 = vunpack.c.l.b16 %v2285
    %v2805 = vunpack.c.l.b16 %v2286
    %v2806 = vunpack.c.l.b16 %v2287
    %v2807 = vunpack.c.l.b16 %v2288
    %v2808 = vunpack.c.l.b16 %v2289
    %v2809 = vunpack.c.l.b16 %v2290
    %v2810 = vunpack.c.l.b16 %v2291
    %v2811 = vunpack.c.l.b16 %v2292
    %v2812 = vunpack.c.l.b16 %v2293
    %v2813 = vunpack.c.l.b16 %v2294
    %v2814 = vunpack.c.l.b16 %v2295
    %v2815 = vunpack.c.l.b16 %v2296
    %v2816 = vunpack.c.l.b16 %v2297
    %v2817 = vunpack.c.l.b16 %v2298
    %v2818 = vunpack.c.l.b16 %v2299
    %v2819 = vunpack.c.l.b16 %v2300
    %v2820 = vunpack.c.l.b16 %v2301
    %v2821 = vunpack.c.l.b16 %v2302
    %v2822 = vunpack.c.l.b16 %v2303
    %v2823 = vunpack.c.l.b16 %v2304
    %v2824 = vunpack.c.l.b16 %v2305
    %v2825 = vunpack.c.l.b16 %v2306
    %v2826 = vunpack.c.l.b16 %v2307
    %v2827 = vunpack.c.l.b16 %v2308
    %v2828 = vunpack.c.l.b16 %v2309
    %v2829 = vunpack.c.l.b16 %v2310
    %v2830 = vunpack.c.l.b16 %v2311
    %v2831 = vunpack.c.l.b16 %v2312
    %v2832 = vunpack.c.l.b16 %v2313
    %v2833 = vunpack.c.l.b16 %v2314
    %v2834 = vunpack.c.l.b16 %v2315
    %v2835 = vunpack.c.l.b16 %v2316
    %v2836 = vunpack.c.l.b16 %v2317
    %v2837 = vunpack.c.l.b16 %v2318
    %v2838 = vunpack.c.l.b16 %v2319
    %v2839 = vunpack.c.l.b16 %v2320
    %v2840 = vunpack.c.l.b16 %v2321
    %v2841 = vunpack.c.l.b16 %v2322
    %v2842 = vunpack.c.l.b16 %v2323
    %v2843 = vunpack.c.l.b16 %v2324
    %v2844 = vunpack.c.l.b16 %v2325
    %v2845 = vunpack.c.l.b16 %v2326
    %v2846 = vunpack.c.l.b16 %v2327
    %v2847 = vunpack.c.l.b16 %v2328
    %v2848 = vunpack.c.l.b16 %v2329
    %v2849 = vunpack.c.l.b16 %v2330
    %v2850 = vunpack.c.l.b16 %v2331
    %v2851 = vunpack.c.l.b16 %v2332
    %v2852 = vunpack.c.l.b16 %v2333
    %v2853 = vunpack.c.l.b16 %v2334
    %v2854 = vunpack.c.l.b16 %v2335
    %v2855 = vunpack.c.l.b16 %v2336
    %v2856 = vunpack.c.l.b16 %v2337
    %v2857 = vunpack.c.l.b16 %v2338
    %v2858 = vunpack.c.l.b16 %v2339
    %v2859 = vunpack.c.l.b16 %v2340
    %v2860 = vunpack.c.l.b16 %v2341
    %v2861 = vunpack.c.l.b16 %v2342
    %v2862 = vunpack.c.l.b16 %v2343
    %v2863 = vunpack.c.l.b16 %v2344
    %v2864 = vunpack.c.l.b16 %v2345
    %v2865 = vunpack.c.l.b16 %v2346
    %v2866 = vunpack.c.l.b16 %v2347
    %v2867 = vunpack.c.l.b16 %v2348
    %v2868 = vunpack.c.l.b16 %v2349
    %v2869 = vunpack.c.l.b16 %v2350
    %v2870 = vunpack.c.l.b16 %v2351
    %v2871 = vunpack.c.l.b16 %v2352
    %v2872 = vunpack.c.l.b16 %v2353
    %v2873 = vunpack.c.l.b16 %v2354
    %v2874 = vunpack.c.l.b16 %v2355
    %v2875 = vunpack.c.l.b16 %v2356
    %v2876 = vunpack.c.l.b16 %v2357
    %v2877 = vunpack.c.l.b16 %v2358
    %v2878 = vunpack.c.l.b16 %v2359
    %v2879 = vunpack.c.l.b16 %v2360
    %v2880 = vunpack.c.l.b16 %v2361
    %v2881 = vunpack.c.l.b16 %v2362
    %v2882 = vunpack.c.l.b16 %v2363
    %v2883 = vunpack.c.l.b16 %v2364
    %v2884 = vunpack.c.l.b16 %v2365
    %v2885 = vunpack.c.l.b16 %v2366
    %v2886 = vunpack.c.l.b16 %v2367
    %v2887 = vunpack.c.l.b16 %v2368
    %v2888 = vunpack.c.l.b16 %v2369
    %v2889 = vunpack.c.l.b16 %v2370
    %v2890 = vunpack.c.l.b16 %v2371
    %v2891 = vunpack.c.l.b16 %v2372
    %v2892 = vunpack.c.l.b16 %v2373
    %v2893 = vunpack.c.l.b16 %v2374
    %v2894 = vunpack.c.l.b16 %v2375
    %v2895 = vunpack.c.l.b16 %v2376
    %v2896 = vunpack.c.l.b16 %v2377
    %v2897 = vunpack.c.l.b16 %v2378
    %v2898 = vunpack.c.l.b16 %v2379
    %v2899 = vunpack.c.l.b16 %v2380
    %v2900 = vunpack.c.l.b16 %v2381
    %v2901 = vunpack.c.l.b16 %v2382
    %v2902 = vunpack.c.l.b16 %v2383
    %v2903 = vunpack.c.l.b16 %v2384
    %v2904 = vunpack.c.l.b16 %v2385
    %v2905 = vunpack.c.l.b16 %v2386
    %v2906 = vunpack.c.l.b16 %v2387
    %v2907 = vunpack.c.l.b16 %v2388
    %v2908 = vunpack.c.l.b16 %v2389
    %v2909 = vunpack.c.l.b16 %v2390
    %v2910 = vunpack.c.l.b16 %v2391
    %v2911 = vunpack.c.l.b16 %v2392
    %v2912 = vunpack.c.l.b16 %v2393
    %v2913 = vunpack.c.l.b16 %v2394
    %v2914 = vunpack.c.l.b16 %v2395
    %v2915 = vunpack.c.l.b16 %v2396
    %v2916 = vunpack.c.l.b16 %v2397
    %v2917 = vunpack.c.l.b16 %v2398
    %v2918 = vunpack.c.l.b16 %v2399
    %v2919 = vunpack.c.l.b16 %v2400
    %v2920 = vunpack.c.l.b16 %v2401
    %v2921 = vunpack.c.l.b16 %v2402
    %v2922 = vunpack.c.l.b16 %v2403
    %v2923 = vunpack.c.l.b16 %v2404
    %v2924 = vunpack.c.l.b16 %v2405
    %v2925 = vunpack.c.l.b16 %v2406
    %v2926 = vunpack.c.l.b16 %v2407
    %v2927 = vunpack.c.l.b16 %v2408
    %v2928 = vunpack.c.l.b16 %v2409
    %v2929 = vunpack.c.l.b16 %v2410
    %v2930 = vunpack.c.l.b16 %v2411
    %v2931 = vunpack.c.l.b16 %v2412
    %v2932 = vunpack.c.l.b16 %v2413
    %v2933 = vunpack.c.l.b16 %v2414
    %v2934 = vunpack.c.l.b16 %v2415
    %v2935 = vunpack.c.l.b16 %v2416
    %v2936 = vunpack.c.l.b16 %v2417
    %v2937 = vunpack.c.l.b16 %v2418
    %v2938 = vunpack.c.l.b16 %v2419
    %v2939 = vunpack.c.l.b16 %v2420
    %v2940 = vunpack.c.l.b16 %v2421
    %v2941 = vunpack.c.l.b16 %v2422
    %v2942 = vunpack.c.l.b16 %v2423
    %v2943 = vunpack.c.l.b16 %v2424
    %v2944 = vunpack.c.l.b16 %v2425
    %v2945 = vunpack.c.l.b16 %v2426
    %v2946 = vunpack.c.l.b16 %v2427
    %v2947 = vunpack.c.l.b16 %v2428
    %v2948 = vunpack.c.l.b16 %v2429
    %v2949 = vunpack.c.l.b16 %v2430
    %v2950 = vunpack.c.l.b16 %v2431
    %v2951 = vunpack.c.l.b16 %v2432
    %v2952 = vunpack.c.l.b16 %v2433
    %v2953 = vunpack.c.l.b16 %v2434
    %v2954 = vunpack.c.l.b16 %v2435
    %v2955 = vunpack.c.l.b16 %v2436
    %v2956 = vunpack.c.l.b16 %v2437
    %v2957 = vunpack.c.l.b16 %v2438
    %v2958 = vunpack.c.l.b16 %v2439
    %v2959 = vunpack.c.l.b16 %v2440
    %v2960 = vunpack.c.l.b16 %v2441
    %v2961 = vunpack.c.l.b16 %v2442
    %v2962 = vunpack.c.l.b16 %v2443
    %v2963 = vunpack.c.l.b16 %v2444
    %v2964 = vunpack.c.l.b16 %v2445
    %v2965 = vunpack.c.l.b16 %v2446
    %v2966 = vunpack.c.l.b16 %v2447
    %v2967 = vunpack.c.l.b16 %v2448
    %v2968 = vunpack.c.l.b16 %v2449
    %v2969 = vunpack.c.l.b16 %v2450
    %v2970 = vunpack.c.l.b16 %v2451
    %v2971 = vunpack.c.l.b16 %v2452
    %v2972 = vunpack.c.l.b16 %v2453
    %v2973 = vunpack.c.l.b16 %v2454
    %v2974 = vunpack.c.l.b16 %v2455
    %v2975 = vunpack.c.l.b16 %v2456
    %v2976 = vunpack.c.l.b16 %v2457
    %v2977 = vunpack.c.l.b16 %v2458
    %v2978 = vunpack.c.l.b16 %v2459
    %v2979 = vunpack.c.l.b16 %v2460
    %v2980 = vunpack.c.l.b16 %v2461
    %v2981 = vunpack.c.l.b16 %v2462
    %v2982 = vunpack.c.l.b16 %v2463
    %v2983 = vunpack.c.l.b16 %v2464
    %v2984 = vunpack.c.l.b16 %v2465
    %v2985 = vunpack.c.l.b16 %v2466
    %v2986 = vunpack.c.l.b16 %v2467
    %v2987 = vpack.c.b16 %v2732, %v2731
    %v2988 = vpack.c.b16 %v2734, %v2733
    %v2989 = vpack.c.b16 %v2736, %v2735
    %v2990 = vpack.c.b16 %v2738, %v2737
    %v2991 = vpack.c.b16 %v2740, %v2739
    %v2992 = vpack.c.b16 %v2742, %v2741
    %v2993 = vpack.c.b16 %v2744, %v2743
    %v2994 = vpack.c.b16 %v2746, %v2745
    %v2995 = vpack.c.b16 %v2748, %v2747
    %v2996 = vpack.c.b16 %v2750, %v2749
    %v2997 = vpack.c.b16 %v2752, %v2751
    %v2998 = vpack.c.b16 %v2754, %v2753
    %v2999 = vpack.c.b16 %v2756, %v2755
    %v3000 = vpack.c.b16 %v2758, %v2757
    %v3001 = vpack.c.b16 %v2760, %v2759
    %v3002 = vpack.c.b16 %v2762, %v2761
    %v3003 = vpack.c.b16 %v2764, %v2763
    %v3004 = vpack.c.b16 %v2766, %v2765
    %v3005 = vpack.c.b16 %v2768, %v2767
    %v3006 = vpack.c.b16 %v2770, %v2769
    %v3007 = vpack.c.b16 %v2772, %v2771
    %v3008 = vpack.c.b16 %v2774, %v2773
    %v3009 = vpack.c.b16 %v2776, %v2775
    %v3010 = vpack.c.b16 %v2778, %v2777
    %v3011 = vpack.c.b16 %v2780, %v2779
    %v3012 = vpack.c.b16 %v2782, %v2781
    %v3013 = vpack.c.b16 %v2784, %v2783
    %v3014 = vpack.c.b16 %v2786, %v2785
    %v3015 = vpack.c.b16 %v2788, %v2787
    %v3016 = vpack.c.b16 %v2790, %v2789
    %v3017 = vpack.c.b16 %v2792, %v2791
    %v3018 = vpack.c.b16 %v2794, %v2793
    %v3019 = vpack.c.b16 %v2796, %v2795
    %v3020 = vpack.c.b16 %v2798, %v2797
    %v3021 = vpack.c.b16 %v2800, %v2799
    %v3022 = vpack.c.b16 %v2802, %v2801
    %v3023 = vpack.c.b16 %v2804, %v2803
    %v3024 = vpack.c.b16 %v2806, %v2805
    %v3025 = vpack.c.b16 %v2808, %v2807
    %v3026 = vpack.c.b16 %v2810, %v2809
    %v3027 = vpack.c.b16 %v2812, %v2811
    %v3028 = vpack.c.b16 %v2814, %v2813
    %v3029 = vpack.c.b16 %v2816, %v2815
    %v3030 = vpack.c.b16 %v2818, %v2817
    %v3031 = vpack.c.b16 %v2820, %v2819
    %v3032 = vpack.c.b16 %v2822, %v2821
    %v3033 = vpack.c.b16 %v2824, %v2823
    %v3034 = vpack.c.b16 %v2826, %v2825
    %v3035 = vpack.c.b16 %v2828, %v2827
    %v3036 = vpack.c.b16 %v2830, %v2829
    %v3037 = vpack.c.b16 %v2832, %v2831
    %v3038 = vpack.c.b16 %v2834, %v2833
    %v3039 = vpack.c.b16 %v2836, %v2835
    %v3040 = vpack.c.b16 %v2838, %v2837
    %v3041 = vpack.c.b16 %v2840, %v2839
    %v3042 = vpack.c.b16 %v2842, %v2841
    %v3043 = vpack.c.b16 %v2844, %v2843
    %v3044 = vpack.c.b16 %v2846, %v2845
    %v3045 = vpack.c.b16 %v2848, %v2847
    %v3046 = vpack.c.b16 %v2850, %v2849
    %v3047 = vpack.c.b16 %v2852, %v2851
    %v3048 = vpack.c.b16 %v2854, %v2853
    %v3049 = vpack.c.b16 %v2856, %v2855
    %v3050 = vpack.c.b16 %v2858, %v2857
    %v3051 = vpack.c.b16 %v2860, %v2859
    %v3052 = vpack.c.b16 %v2862, %v2861
    %v3053 = vpack.c.b16 %v2864, %v2863
    %v3054 = vpack.c.b16 %v2866, %v2865
    %v3055 = vpack.c.b16 %v2868, %v2867
    %v3056 = vpack.c.b16 %v2870, %v2869
    %v3057 = vpack.c.b16 %v2872, %v2871
    %v3058 = vpack.c.b16 %v2874, %v2873
    %v3059 = vpack.c.b16 %v2876, %v2875
    %v3060 = vpack.c.b16 %v2878, %v2877
    %v3061 = vpack.c.b16 %v2880, %v2879
    %v3062 = vpack.c.b16 %v2882, %v2881
    %v3063 = vpack.c.b16 %v2884, %v2883
    %v3064 = vpack.c.b16 %v2886, %v2885
    %v3065 = vpack.c.b16 %v2888, %v2887
    %v3066 = vpack.c.b16 %v2890, %v2889
    %v3067 = vpack.c.b16 %v2892, %v2891
    %v3068 = vpack.c.b16 %v2894, %v2893
    %v3069 = vpack.c.b16 %v2896, %v2895
    %v3070 = vpack.c.b16 %v2898, %v2897
    %v3071 = vpack.c.b16 %v2900, %v2899
    %v3072 = vpack.c.b16 %v2902, %v2901
    %v3073 = vpack.c.b16 %v2904, %v2903
    %v3074 = vpack.c.b16 %v2906, %v2905
    %v3075 = vpack.c.b16 %v2908, %v2907
    %v3076 = vpack.c.b16 %v2910, %v2909
    %v3077 = vpack.c.b16 %v2912, %v2911
    %v3078 = vpack.c.b16 %v2914, %v2913
    %v3079 = vpack.c.b16 %v2916, %v2915
    %v3080 = vpack.c.b16 %v2918, %v2917
    %v3081 = vpack.c.b16 %v2920, %v2919
    %v3082 = vpack.c.b16 %v2922, %v2921
    %v3083 = vpack.c.b16 %v2924, %v2923
    %v3084 = vpack.c.b16 %v2926, %v2925
    %v3085 = vpack.c.b16 %v2928, %v2927
    %v3086 = vpack.c.b16 %v2930, %v2929
    %v3087 = vpack.c.b16 %v2932, %v2931
    %v3088 = vpack.c.b16 %v2934, %v2933
    %v3089 = vpack.c.b16 %v2936, %v2935
    %v3090 = vpack.c.b16 %v2938, %v2937
    %v3091 = vpack.c.b16 %v2940, %v2939
    %v3092 = vpack.c.b16 %v2942, %v2941
    %v3093 = vpack.c.b16 %v2944, %v2943
    %v3094 = vpack.c.b16 %v2946, %v2945
    %v3095 = vpack.c.b16 %v2948, %v2947
    %v3096 = vpack.c.b16 %v2950, %v2949
    %v3097 = vpack.c.b16 %v2952, %v2951
    %v3098 = vpack.c.b16 %v2954, %v2953
    %v3099 = vpack.c.b16 %v2956, %v2955
    %v3100 = vpack.c.b16 %v2958, %v2957
    %v3101 = vpack.c.b16 %v2960, %v2959
    %v3102 = vpack.c.b16 %v2962, %v2961
    %v3103 = vpack.c.b16 %v2964, %v2963
    %v3104 = vpack.c.b16 %v2966, %v2965
    %v3105 = vpack.c.b16 %v2968, %v2967
    %v3106 = vpack.c.b16 %v2970, %v2969
    %v3107 = vpack.c.b16 %v2972, %v2971
    %v3108 = vpack.c.b16 %v2974, %v2973
    %v3109 = vpack.c.b16 %v2976, %v2975
    %v3110 = vpack.c.b16 %v2978, %v2977
    %v3111 = vpack.c.b16 %v2980, %v2979
    %v3112 = vpack.c.b16 %v2982, %v2981
    %v3113 = vpack.c.b16 %v2984, %v2983
    %v3114 = vpack.c.b16 %v2986, %v2985
    %3243 = vmatprep.subr.bf16.mxu0 0
    %3244 = vmatpush1.bf16.msra.mxu0 %v2994
    %3245 = vmatprep.subr.bf16.mxu0 0
    %3246 = vmatpush1.bf16.msra.mxu0 %v2993
    %3247 = vmatprep.subr.bf16.mxu0 0
    %3248 = vmatpush1.bf16.msra.mxu0 %v2992
    %3249 = vmatprep.subr.bf16.mxu0 0
    %3250 = vmatpush1.bf16.msra.mxu0 %v2991
    %3251 = vmatprep.subr.bf16.mxu0 0
    %3252 = vmatpush1.bf16.msra.mxu0 %v2990
    %3253 = vmatprep.subr.bf16.mxu0 0
    %3254 = vmatpush1.bf16.msra.mxu0 %v2989
    %3255 = vmatprep.subr.bf16.mxu0 0
    %3256 = vmatpush1.bf16.msra.mxu0 %v2988
    %3257 = vmatprep.subr.bf16.mxu0 0
    %3258 = vmatpush1.bf16.msra.mxu0 %v2987
    %3259 = vmatprep.subr.bf16.mxu0 0
    %3260 = vmatpush2.bf16.msra.mxu0 %v3002
    %3261 = vmatprep.subr.bf16.mxu0 0
    %3262 = vmatpush2.bf16.msra.mxu0 %v3001
    %3263 = vmatprep.subr.bf16.mxu0 0
    %3264 = vmatpush2.bf16.msra.mxu0 %v3000
    %3265 = vmatprep.subr.bf16.mxu0 0
    %3266 = vmatpush2.bf16.msra.mxu0 %v2999
    %3267 = vmatprep.subr.bf16.mxu0 0
    %3268 = vmatpush2.bf16.msra.mxu0 %v2998
    %3269 = vmatprep.subr.bf16.mxu0 0
    %3270 = vmatpush2.bf16.msra.mxu0 %v2997
    %3271 = vmatprep.subr.bf16.mxu0 0
    %3272 = vmatpush2.bf16.msra.mxu0 %v2996
    %3273 = vmatprep.subr.bf16.mxu0 0
    %3274 = vmatpush2.bf16.msra.mxu0 %v2995
    %3275 = vmatprep.mubr.bf16.mxu0 %v2197
    %3276 = vmatmul.mubr.bf16.gmra.mxu0 %v2196
    %v3277 = vpop.f32.mrf.mxu0
    %v3278 = vadd.f32 %v2473, %v3277
    %v3279 = vpop.f32.mrf.mxu0
    %v3280 = vpop.f32.mrf.mxu0
    %v3281 = vadd.f32 %v2473, %v3280
    %v3282 = vpop.f32.mrf.mxu0
    %3283 = vdwg.mxu0
    %3284 = vmatprep.subr.bf16.mxu0 0
    %3285 = vmatpush1.bf16.msra.mxu0 %v3010
    %3286 = vmatprep.subr.bf16.mxu0 0
    %3287 = vmatpush1.bf16.msra.mxu0 %v3009
    %3288 = vmatprep.subr.bf16.mxu0 0
    %3289 = vmatpush1.bf16.msra.mxu0 %v3008
    %3290 = vmatprep.subr.bf16.mxu0 0
    %3291 = vmatpush1.bf16.msra.mxu0 %v3007
    %3292 = vmatprep.subr.bf16.mxu0 0
    %3293 = vmatpush1.bf16.msra.mxu0 %v3006
    %3294 = vmatprep.subr.bf16.mxu0 0
    %3295 = vmatpush1.bf16.msra.mxu0 %v3005
    %3296 = vmatprep.subr.bf16.mxu0 0
    %3297 = vmatpush1.bf16.msra.mxu0 %v3004
    %3298 = vmatprep.subr.bf16.mxu0 0
    %3299 = vmatpush1.bf16.msra.mxu0 %v3003
    %3300 = vmatprep.subr.bf16.mxu0 0
    %3301 = vmatpush2.bf16.msra.mxu0 %v3018
    %3302 = vmatprep.subr.bf16.mxu0 0
    %3303 = vmatpush2.bf16.msra.mxu0 %v3017
    %3304 = vmatprep.subr.bf16.mxu0 0
    %3305 = vmatpush2.bf16.msra.mxu0 %v3016
    %3306 = vmatprep.subr.bf16.mxu0 0
    %3307 = vmatpush2.bf16.msra.mxu0 %v3015
    %3308 = vmatprep.subr.bf16.mxu0 0
    %3309 = vmatpush2.bf16.msra.mxu0 %v3014
    %3310 = vmatprep.subr.bf16.mxu0 0
    %3311 = vmatpush2.bf16.msra.mxu0 %v3013
    %3312 = vmatprep.subr.bf16.mxu0 0
    %3313 = vmatpush2.bf16.msra.mxu0 %v3012
    %3314 = vmatprep.subr.bf16.mxu0 0
    %3315 = vmatpush2.bf16.msra.mxu0 %v3011
    %3316 = vmatprep.mubr.bf16.mxu0 %v2199
    %3317 = vmatmul.mubr.bf16.gmra.mxu0 %v2198
    %v3318 = vpop.f32.mrf.mxu0
    %v3319 = vadd.f32 %v3278, %v3318
    %v3320 = vpop.f32.mrf.mxu0
    %v3321 = vpop.f32.mrf.mxu0
    %v3322 = vadd.f32 %v3281, %v3321
    %v3323 = vpop.f32.mrf.mxu0
    %3324 = vdwg.mxu0
    %3325 = vmatprep.subr.bf16.mxu0 0
    %3326 = vmatpush1.bf16.msra.mxu0 %v3026
    %3327 = vmatprep.subr.bf16.mxu0 0
    %3328 = vmatpush1.bf16.msra.mxu0 %v3025
    %3329 = vmatprep.subr.bf16.mxu0 0
    %3330 = vmatpush1.bf16.msra.mxu0 %v3024
    %3331 = vmatprep.subr.bf16.mxu0 0
    %3332 = vmatpush1.bf16.msra.mxu0 %v3023
    %3333 = vmatprep.subr.bf16.mxu0 0
    %3334 = vmatpush1.bf16.msra.mxu0 %v3022
    %3335 = vmatprep.subr.bf16.mxu0 0
    %3336 = vmatpush1.bf16.msra.mxu0 %v3021
    %3337 = vmatprep.subr.bf16.mxu0 0
    %3338 = vmatpush1.bf16.msra.mxu0 %v3020
    %3339 = vmatprep.subr.bf16.mxu0 0
    %3340 = vmatpush1.bf16.msra.mxu0 %v3019
    %3341 = vmatprep.subr.bf16.mxu0 0
    %3342 = vmatpush2.bf16.msra.mxu0 %v3034
    %3343 = vmatprep.subr.bf16.mxu0 0
    %3344 = vmatpush2.bf16.msra.mxu0 %v3033
    %3345 = vmatprep.subr.bf16.mxu0 0
    %3346 = vmatpush2.bf16.msra.mxu0 %v3032
    %3347 = vmatprep.subr.bf16.mxu0 0
    %3348 = vmatpush2.bf16.msra.mxu0 %v3031
    %3349 = vmatprep.subr.bf16.mxu0 0
    %3350 = vmatpush2.bf16.msra.mxu0 %v3030
    %3351 = vmatprep.subr.bf16.mxu0 0
    %3352 = vmatpush2.bf16.msra.mxu0 %v3029
    %3353 = vmatprep.subr.bf16.mxu0 0
    %3354 = vmatpush2.bf16.msra.mxu0 %v3028
    %3355 = vmatprep.subr.bf16.mxu0 0
    %3356 = vmatpush2.bf16.msra.mxu0 %v3027
    %3357 = vmatprep.mubr.bf16.mxu0 %v2201
    %3358 = vmatmul.mubr.bf16.gmra.mxu0 %v2200
    %v3359 = vpop.f32.mrf.mxu0
    %v3360 = vadd.f32 %v3319, %v3359
    %v3361 = vpop.f32.mrf.mxu0
    %v3362 = vpop.f32.mrf.mxu0
    %v3363 = vadd.f32 %v3322, %v3362
    %v3364 = vpop.f32.mrf.mxu0
    %3365 = vdwg.mxu0
    %3366 = vmatprep.subr.bf16.mxu0 0
    %3367 = vmatpush1.bf16.msra.mxu0 %v3042
    %3368 = vmatprep.subr.bf16.mxu0 0
    %3369 = vmatpush1.bf16.msra.mxu0 %v3041
    %3370 = vmatprep.subr.bf16.mxu0 0
    %3371 = vmatpush1.bf16.msra.mxu0 %v3040
    %3372 = vmatprep.subr.bf16.mxu0 0
    %3373 = vmatpush1.bf16.msra.mxu0 %v3039
    %3374 = vmatprep.subr.bf16.mxu0 0
    %3375 = vmatpush1.bf16.msra.mxu0 %v3038
    %3376 = vmatprep.subr.bf16.mxu0 0
    %3377 = vmatpush1.bf16.msra.mxu0 %v3037
    %3378 = vmatprep.subr.bf16.mxu0 0
    %3379 = vmatpush1.bf16.msra.mxu0 %v3036
    %3380 = vmatprep.subr.bf16.mxu0 0
    %3381 = vmatpush1.bf16.msra.mxu0 %v3035
    %3382 = vmatprep.subr.bf16.mxu0 0
    %3383 = vmatpush2.bf16.msra.mxu0 %v3050
    %3384 = vmatprep.subr.bf16.mxu0 0
    %3385 = vmatpush2.bf16.msra.mxu0 %v3049
    %3386 = vmatprep.subr.bf16.mxu0 0
    %3387 = vmatpush2.bf16.msra.mxu0 %v3048
    %3388 = vmatprep.subr.bf16.mxu0 0
    %3389 = vmatpush2.bf16.msra.mxu0 %v3047
    %3390 = vmatprep.subr.bf16.mxu0 0
    %3391 = vmatpush2.bf16.msra.mxu0 %v3046
    %3392 = vmatprep.subr.bf16.mxu0 0
    %3393 = vmatpush2.bf16.msra.mxu0 %v3045
    %3394 = vmatprep.subr.bf16.mxu0 0
    %3395 = vmatpush2.bf16.msra.mxu0 %v3044
    %3396 = vmatprep.subr.bf16.mxu0 0
    %3397 = vmatpush2.bf16.msra.mxu0 %v3043
    %3398 = vmatprep.mubr.bf16.mxu0 %v2203
    %3399 = vmatmul.mubr.bf16.gmra.mxu0 %v2202
    %v3400 = vpop.f32.mrf.mxu0
    %v3401 = vadd.f32 %v3360, %v3400
    %v3402 = vpop.f32.mrf.mxu0
    %v3403 = vpop.f32.mrf.mxu0
    %v3404 = vadd.f32 %v3363, %v3403
    %v3405 = vpop.f32.mrf.mxu0
    %3406 = vdwg.mxu0
    %3407 = vmatprep.subr.bf16.mxu0 0
    %3408 = vmatpush1.bf16.msra.mxu0 %v3058
    %3409 = vmatprep.subr.bf16.mxu0 0
    %3410 = vmatpush1.bf16.msra.mxu0 %v3057
    %3411 = vmatprep.subr.bf16.mxu0 0
    %3412 = vmatpush1.bf16.msra.mxu0 %v3056
    %3413 = vmatprep.subr.bf16.mxu0 0
    %3414 = vmatpush1.bf16.msra.mxu0 %v3055
    %3415 = vmatprep.subr.bf16.mxu0 0
    %3416 = vmatpush1.bf16.msra.mxu0 %v3054
    %3417 = vmatprep.subr.bf16.mxu0 0
    %3418 = vmatpush1.bf16.msra.mxu0 %v3053
    %3419 = vmatprep.subr.bf16.mxu0 0
    %3420 = vmatpush1.bf16.msra.mxu0 %v3052
    %3421 = vmatprep.subr.bf16.mxu0 0
    %3422 = vmatpush1.bf16.msra.mxu0 %v3051
    %3423 = vmatprep.subr.bf16.mxu0 0
    %3424 = vmatpush2.bf16.msra.mxu0 %v3066
    %3425 = vmatprep.subr.bf16.mxu0 0
    %3426 = vmatpush2.bf16.msra.mxu0 %v3065
    %3427 = vmatprep.subr.bf16.mxu0 0
    %3428 = vmatpush2.bf16.msra.mxu0 %v3064
    %3429 = vmatprep.subr.bf16.mxu0 0
    %3430 = vmatpush2.bf16.msra.mxu0 %v3063
    %3431 = vmatprep.subr.bf16.mxu0 0
    %3432 = vmatpush2.bf16.msra.mxu0 %v3062
    %3433 = vmatprep.subr.bf16.mxu0 0
    %3434 = vmatpush2.bf16.msra.mxu0 %v3061
    %3435 = vmatprep.subr.bf16.mxu0 0
    %3436 = vmatpush2.bf16.msra.mxu0 %v3060
    %3437 = vmatprep.subr.bf16.mxu0 0
    %3438 = vmatpush2.bf16.msra.mxu0 %v3059
    %3439 = vmatprep.mubr.bf16.mxu0 %v2205
    %3440 = vmatmul.mubr.bf16.gmra.mxu0 %v2204
    %v3441 = vpop.f32.mrf.mxu0
    %v3442 = vadd.f32 %v3401, %v3441
    %v3443 = vpop.f32.mrf.mxu0
    %v3444 = vpop.f32.mrf.mxu0
    %v3445 = vadd.f32 %v3404, %v3444
    %v3446 = vpop.f32.mrf.mxu0
    %3447 = vdwg.mxu0
    %3448 = vmatprep.subr.bf16.mxu0 0
    %3449 = vmatpush1.bf16.msra.mxu0 %v3074
    %3450 = vmatprep.subr.bf16.mxu0 0
    %3451 = vmatpush1.bf16.msra.mxu0 %v3073
    %3452 = vmatprep.subr.bf16.mxu0 0
    %3453 = vmatpush1.bf16.msra.mxu0 %v3072
    %3454 = vmatprep.subr.bf16.mxu0 0
    %3455 = vmatpush1.bf16.msra.mxu0 %v3071
    %3456 = vmatprep.subr.bf16.mxu0 0
    %3457 = vmatpush1.bf16.msra.mxu0 %v3070
    %3458 = vmatprep.subr.bf16.mxu0 0
    %3459 = vmatpush1.bf16.msra.mxu0 %v3069
    %3460 = vmatprep.subr.bf16.mxu0 0
    %3461 = vmatpush1.bf16.msra.mxu0 %v3068
    %3462 = vmatprep.subr.bf16.mxu0 0
    %3463 = vmatpush1.bf16.msra.mxu0 %v3067
    %3464 = vmatprep.subr.bf16.mxu0 0
    %3465 = vmatpush2.bf16.msra.mxu0 %v3082
    %3466 = vmatprep.subr.bf16.mxu0 0
    %3467 = vmatpush2.bf16.msra.mxu0 %v3081
    %3468 = vmatprep.subr.bf16.mxu0 0
    %3469 = vmatpush2.bf16.msra.mxu0 %v3080
    %3470 = vmatprep.subr.bf16.mxu0 0
    %3471 = vmatpush2.bf16.msra.mxu0 %v3079
    %3472 = vmatprep.subr.bf16.mxu0 0
    %3473 = vmatpush2.bf16.msra.mxu0 %v3078
    %3474 = vmatprep.subr.bf16.mxu0 0
    %3475 = vmatpush2.bf16.msra.mxu0 %v3077
    %3476 = vmatprep.subr.bf16.mxu0 0
    %3477 = vmatpush2.bf16.msra.mxu0 %v3076
    %3478 = vmatprep.subr.bf16.mxu0 0
    %3479 = vmatpush2.bf16.msra.mxu0 %v3075
    %3480 = vmatprep.mubr.bf16.mxu0 %v2207
    %3481 = vmatmul.mubr.bf16.gmra.mxu0 %v2206
    %v3482 = vpop.f32.mrf.mxu0
    %v3483 = vadd.f32 %v3442, %v3482
    %v3484 = vpop.f32.mrf.mxu0
    %v3485 = vpop.f32.mrf.mxu0
    %v3486 = vadd.f32 %v3445, %v3485
    %v3487 = vpop.f32.mrf.mxu0
    %3488 = vdwg.mxu0
    %3489 = vmatprep.subr.bf16.mxu0 0
    %3490 = vmatpush1.bf16.msra.mxu0 %v3090
    %3491 = vmatprep.subr.bf16.mxu0 0
    %3492 = vmatpush1.bf16.msra.mxu0 %v3089
    %3493 = vmatprep.subr.bf16.mxu0 0
    %3494 = vmatpush1.bf16.msra.mxu0 %v3088
    %3495 = vmatprep.subr.bf16.mxu0 0
    %3496 = vmatpush1.bf16.msra.mxu0 %v3087
    %3497 = vmatprep.subr.bf16.mxu0 0
    %3498 = vmatpush1.bf16.msra.mxu0 %v3086
    %3499 = vmatprep.subr.bf16.mxu0 0
    %3500 = vmatpush1.bf16.msra.mxu0 %v3085
    %3501 = vmatprep.subr.bf16.mxu0 0
    %3502 = vmatpush1.bf16.msra.mxu0 %v3084
    %3503 = vmatprep.subr.bf16.mxu0 0
    %3504 = vmatpush1.bf16.msra.mxu0 %v3083
    %3505 = vmatprep.subr.bf16.mxu0 0
    %3506 = vmatpush2.bf16.msra.mxu0 %v3098
    %3507 = vmatprep.subr.bf16.mxu0 0
    %3508 = vmatpush2.bf16.msra.mxu0 %v3097
    %3509 = vmatprep.subr.bf16.mxu0 0
    %3510 = vmatpush2.bf16.msra.mxu0 %v3096
    %3511 = vmatprep.subr.bf16.mxu0 0
    %3512 = vmatpush2.bf16.msra.mxu0 %v3095
    %3513 = vmatprep.subr.bf16.mxu0 0
    %3514 = vmatpush2.bf16.msra.mxu0 %v3094
    %3515 = vmatprep.subr.bf16.mxu0 0
    %3516 = vmatpush2.bf16.msra.mxu0 %v3093
    %3517 = vmatprep.subr.bf16.mxu0 0
    %3518 = vmatpush2.bf16.msra.mxu0 %v3092
    %3519 = vmatprep.subr.bf16.mxu0 0
    %3520 = vmatpush2.bf16.msra.mxu0 %v3091
    %3521 = vmatprep.mubr.bf16.mxu0 %v2209
    %3522 = vmatmul.mubr.bf16.gmra.mxu0 %v2208
    %v3523 = vpop.f32.mrf.mxu0
    %v3524 = vadd.f32 %v3483, %v3523
    %v3525 = vpop.f32.mrf.mxu0
    %v3526 = vpop.f32.mrf.mxu0
    %v3527 = vadd.f32 %v3486, %v3526
    %v3528 = vpop.f32.mrf.mxu0
    %3529 = vdwg.mxu0
    %3530 = vmatprep.subr.bf16.mxu0 0
    %3531 = vmatpush1.bf16.msra.mxu0 %v3106
    %3532 = vmatprep.subr.bf16.mxu0 0
    %3533 = vmatpush1.bf16.msra.mxu0 %v3105
    %3534 = vmatprep.subr.bf16.mxu0 0
    %3535 = vmatpush1.bf16.msra.mxu0 %v3104
    %3536 = vmatprep.subr.bf16.mxu0 0
    %3537 = vmatpush1.bf16.msra.mxu0 %v3103
    %3538 = vmatprep.subr.bf16.mxu0 0
    %3539 = vmatpush1.bf16.msra.mxu0 %v3102
    %3540 = vmatprep.subr.bf16.mxu0 0
    %3541 = vmatpush1.bf16.msra.mxu0 %v3101
    %3542 = vmatprep.subr.bf16.mxu0 0
    %3543 = vmatpush1.bf16.msra.mxu0 %v3100
    %3544 = vmatprep.subr.bf16.mxu0 0
    %3545 = vmatpush1.bf16.msra.mxu0 %v3099
    %3546 = vmatprep.subr.bf16.mxu0 0
    %3547 = vmatpush2.bf16.msra.mxu0 %v3114
    %3548 = vmatprep.subr.bf16.mxu0 0
    %3549 = vmatpush2.bf16.msra.mxu0 %v3113
    %3550 = vmatprep.subr.bf16.mxu0 0
    %3551 = vmatpush2.bf16.msra.mxu0 %v3112
    %3552 = vmatprep.subr.bf16.mxu0 0
    %3553 = vmatpush2.bf16.msra.mxu0 %v3111
    %3554 = vmatprep.subr.bf16.mxu0 0
    %3555 = vmatpush2.bf16.msra.mxu0 %v3110
    %3556 = vmatprep.subr.bf16.mxu0 0
    %3557 = vmatpush2.bf16.msra.mxu0 %v3109
    %3558 = vmatprep.subr.bf16.mxu0 0
    %3559 = vmatpush2.bf16.msra.mxu0 %v3108
    %3560 = vmatprep.subr.bf16.mxu0 0
    %3561 = vmatpush2.bf16.msra.mxu0 %v3107
    %3562 = vmatprep.mubr.bf16.mxu0 %v2211
    %3563 = vmatmul.mubr.bf16.gmra.mxu0 %v2210
    %v3564 = vpop.f32.mrf.mxu0
    %v3565 = vadd.f32 %v3524, %v3564
    %v3566 = vpop.f32.mrf.mxu0
    %v3567 = vpop.f32.mrf.mxu0
    %v3568 = vadd.f32 %v3527, %v3567
    %v3569 = vpop.f32.mrf.mxu0
    %3570 = vdwg.mxu0
    %v3571 = vadd.f32 %v965, %v3565
    %v3572 = vadd.f32 %v966, %v3568
    %v3573 = vld [vmem:[#allocation20] sm:$0x1]
    %v3574 = vld [vmem:[#allocation21] sm:$0x1]
    %3575 = vadd.xlane.f32.xlu0 %v3571
    %v3576 = vpop.xlane.xlu0 %3575
    %3577 = vadd.xlane.f32.xlu0 %v3572
    %v3578 = vpop.xlane.xlu0 %3577
    %v3579 = vmul.f32 %v3576, 0.03125
    %v3580 = vmul.f32 %v3578, 0.03125
    %v3581 = vsub.f32 %v3571, %v3579
    %v3582 = vsub.f32 %v3572, %v3580
    %v3583 = vmul.f32 %v3581, %v209
    %v3584 = vmul.f32 %v3582, %v209
    %v3585 = vmul.f32 %v3583, %v3583
    %v3586 = vmul.f32 %v3584, %v3584
    %3587 = vadd.xlane.f32.xlu0 %v3585
    %v3588 = vpop.xlane.xlu0 %3587
    %3589 = vadd.xlane.f32.xlu0 %v3586
    %v3590 = vpop.xlane.xlu0 %3589
    %v3591 = vmul.f32 %v3588, 0.03125
    %v3592 = vmul.f32 %v3590, 0.03125
    %v3593 = vadd.f32 %v3591, 1e-05
    %v3594 = vadd.f32 %v3592, 1e-05
    %v3595 = vrsqrt.pop %v3593
    %v3596 = vrsqrt.pop %v3594
    %v3597 = vmul.f32 %v3583, %v3595
    %v3598 = vmul.f32 %v3584, %v3596
    %v3600 = vlaneseq
    %v3601 = vshrl.u32 %v3600, 7
    %v3602 = vsub.s32 0, %v3601
    %v3603 = vrot.slane %v3573, %v3602
    %v3605 = vmul.f32 %v3597, %v3603
    %v3606 = vmul.f32 %v3598, %v3603
    %v3608 = vlaneseq
    %v3609 = vshrl.u32 %v3608, 7
    %v3610 = vsub.s32 0, %v3609
    %v3611 = vrot.slane %v3574, %v3610
    %v3613 = vadd.f32 %v3605, %v3611
    %v3614 = vadd.f32 %v3606, %v3611
    %3615 = vst [vmem:[%s16] sm:$0xff] %v3613
    %3616 = vst [vmem:[%s16 + $0x8] sm:$0xff] %v3614
    // Predicated region
    $region110: #{encoder_forward.1} parent=1 // pred_check
      _
    $region111: #{encoder_forward.1} parent=1 // pred_check_branch
      %3618 = sbr.rel (0) target = $region113
    $region112: #{encoder_forward.1} parent=1 // pred_region
      _
    $region113: #{encoder_forward.1} parent=1 // pred_fallthru
      _
    // Predicated region
    $region114: #{encoder_forward.1} parent=1 // pred_check
      _
    $region115: #{encoder_forward.1} parent=1 // pred_check_branch
      %3620 = sbr.rel (0) target = $region117
    $region116: #{encoder_forward.1} parent=1 // pred_region
      _
    $region117: #{encoder_forward.1} parent=1 // pred_fallthru
      _
    %3621 = vsyncpa [#allocation5], 1
    %3622 = vsyncpa [#allocation7], 1
    %3623 = vsyncpa [#allocation10], 1
    %3624 = vsyncpa [#allocation13], 1
    %3625 = vsyncpa [#allocation16], 1
    %3626 = vsyncpa [#allocation19], 1
    %3627 = vsyncpa [#allocation22], 1

</llo_original>
